<compile_context>
chip_gen: v5e
topology: v5e:2x2
jax: 0.10.0
libtpu: 0.0.40
codegen_flags: <defaults>
</compile_context>

<pallas_src>
import jax
import jax.numpy as jnp
from jax.experimental import pallas as pl
from jax.experimental.pallas import tpu as pltpu


def _leaky_relu(x, slope=0.2):
    return jnp.where(x > 0, x, slope * x)


def nftomo_kernel(
    xT_ref,
    w1_ref, b1_ref,
    w2_ref, b2_ref,
    w3_ref, b3_ref,
    w4_ref, b4_ref,
    w5_ref, b5_ref,
    w6_ref, b6_ref,
    w7_ref, b7_ref,
    o_ref,
):
    xT = xT_ref[...]                           # (2, Bt) f32, batch on lanes

    # Layer 1 (in_features=2): two broadcast FMAs on the VPU -- a K=2 MXU
    # matmul would use <2% of a pass.
    w1 = w1_ref[...]                           # (128, 2) f32
    h = (xT[0:1, :] * w1[:, 0:1]
         + xT[1:2, :] * w1[:, 1:2]
         + b1_ref[...])                        # (128, Bt) f32
    h = _leaky_relu(h)

    def linear(h, w_ref, b_ref):
        # bf16 MXU inputs, f32 accumulation; bias add stays in f32.
        return (
            jnp.dot(w_ref[...], h.astype(jnp.bfloat16),
                    preferred_element_type=jnp.float32)
            + b_ref[...]
        )

    h = _leaky_relu(linear(h, w2_ref, b2_ref))   # (256, Bt)
    h = _leaky_relu(linear(h, w3_ref, b3_ref))   # (256, Bt)
    h = _leaky_relu(linear(h, w4_ref, b4_ref))   # (256, Bt)
    h = _leaky_relu(linear(h, w5_ref, b5_ref))   # (256, Bt)
    h = _leaky_relu(linear(h, w6_ref, b6_ref))   # (128, Bt)

    # Layer 7 (out_features=1): elementwise multiply + sublane reduction
    # (XLU); the result is already lane-dense for the store.
    logits = jnp.sum(h * w7_ref[...], axis=0, keepdims=True) + b7_ref[...]
    o_ref[...] = (jax.nn.sigmoid(logits) * jnp.float32(-8.0)).astype(o_ref.dtype)


def nftomo_forward(x, params, *, block_b=None):
    """x: (B, 2) float32.
    params: list of (w, b) pairs in torch layout: w (out, in), b (out,)."""
    B = x.shape[0]
    if block_b is None:
        # Big lane-dense tile, capped so VMEM stays small and (for v7x) the
        # grid keeps >= 2 steps whenever B allows it.
        block_b = min(2048, max(128, (B // 2 // 128) * 128))
    assert block_b % 128 == 0, "block_b must be a multiple of 128 (lane width)"

    # Pad the batch to a multiple of block_b; padded rows are sliced off.
    pad = (-B) % block_b
    if pad:
        x = jnp.concatenate([x, jnp.zeros((pad, x.shape[1]), x.dtype)], axis=0)
    Bp = B + pad
    xT = x.astype(jnp.float32).T                       # (2, Bp), batch on lanes

    n_layers = len(params)
    flat = [xT]
    in_specs = [pl.BlockSpec((2, block_b), lambda i: (0, i))]
    for li, (w, b) in enumerate(params):
        if li == 0:
            w_prep = w.astype(jnp.float32)             # (128, 2)  VPU layer
        elif li == n_layers - 1:
            w_prep = w.T.astype(jnp.float32)           # (128, 1)  VPU/XLU layer
        else:
            w_prep = w.astype(jnp.bfloat16)            # MXU layers: bf16 inputs
        b_prep = b.reshape(-1, 1).astype(jnp.float32)  # (out, 1)
        flat += [w_prep, b_prep]
        # Grid-invariant operands: same block every step (weights stay
        # resident in VMEM, no re-DMA across grid iterations).
        in_specs += [pl.BlockSpec(w_prep.shape, lambda i: (0, 0)),
                     pl.BlockSpec(b_prep.shape, lambda i: (0, 0))]

    out = pl.pallas_call(
        nftomo_kernel,
        out_shape=jax.ShapeDtypeStruct((1, Bp), jnp.float32),
        grid_spec=pltpu.PrefetchScalarGridSpec(
            num_scalar_prefetch=0,
            grid=(Bp // block_b,),
            in_specs=in_specs,
            out_specs=pl.BlockSpec((1, block_b), lambda i: (0, i)),
        ),
        compiler_params=pltpu.CompilerParams(
            dimension_semantics=("parallel",),
            vmem_limit_bytes=32 * 1024 * 1024,   # headroom over v5e's 16 MiB default
        ),
    )(*flat)

    return out.reshape(Bp, 1)[:B]


def init_params(key):
    """torch.nn.Linear-style init: U[-1/sqrt(fan_in), 1/sqrt(fan_in)].
    Weights in torch layout (out_features, in_features), biases (out_features,)."""
    dims = [(2, 128), (128, 256), (256, 256), (256, 256),
            (256, 256), (256, 128), (128, 1)]
    params = []
    for fan_in, fan_out in dims:
        key, kw, kb = jax.random.split(key, 3)
        bound = 1.0 / (fan_in ** 0.5)
        w = jax.random.uniform(kw, (fan_out, fan_in), jnp.float32, -bound, bound)
        b = jax.random.uniform(kb, (fan_out,), jnp.float32, -bound, bound)
        params.append((w, b))
    return params


def reference_forward(x, params, *, emulate_kernel_dtypes=False):
    """Pure-JAX reference.  With emulate_kernel_dtypes=True the middle layers
    use bf16 matmul inputs with f32 accumulation, matching the kernel."""
    h = x.astype(jnp.float32)
    n = len(params)
    for i, (w, b) in enumerate(params):
        if emulate_kernel_dtypes and 0 < i < n - 1:
            z = jnp.dot(h.astype(jnp.bfloat16), w.T.astype(jnp.bfloat16),
                        preferred_element_type=jnp.float32) + b
        else:
            z = h @ w.T + b
        if i < n - 1:
            h = jnp.where(z > 0, z, 0.2 * z)
        else:
            h = jax.nn.sigmoid(z)
    return (h * (-8.0)).reshape(-1, 1)


if __name__ == "__main__":
    key = jax.random.PRNGKey(0)
    key, kx = jax.random.split(key)

    # Small batch of (x1, x2) coordinate pairs, like the original script's
    # np.linspace meshes (kept small: 512 points).
    B = 512
    x = jax.random.uniform(kx, (B, 2), jnp.float32, -1.0, 1.0)

    params = init_params(key)

    out = nftomo_forward(x, params)   # block_b -> 256, grid of 2
    out = jax.block_until_ready(out)
    assert out.shape == (B, 1)

    # Numerics-matched reference (bf16 MXU inputs, f32 accumulation).
    ref_bf16 = reference_forward(x, params, emulate_kernel_dtypes=True)
    assert jnp.allclose(out, ref_bf16, atol=1e-2, rtol=1e-2), \
        float(jnp.max(jnp.abs(out - ref_bf16)))

    # Full-f32 reference: semantics preserved within bf16 matmul error.
    ref_f32 = reference_forward(x, params, emulate_kernel_dtypes=False)
    assert jnp.allclose(out, ref_f32, atol=0.25, rtol=0.1), \
        float(jnp.max(jnp.abs(out - ref_f32)))

    print("KERNEL_OK")
</pallas_src>

<mosaic_0001>
module attributes {stable_mosaic.version = 11 : i64} {
  func.func @nftomo_kernel(%arg0: i32, %arg1: memref<2x256xf32, #tpu.memory_space<vmem>>, %arg2: memref<128x2xf32, #tpu.memory_space<vmem>>, %arg3: memref<128x1xf32, #tpu.memory_space<vmem>>, %arg4: memref<256x128xbf16, #tpu.memory_space<vmem>>, %arg5: memref<256x1xf32, #tpu.memory_space<vmem>>, %arg6: memref<256x256xbf16, #tpu.memory_space<vmem>>, %arg7: memref<256x1xf32, #tpu.memory_space<vmem>>, %arg8: memref<256x256xbf16, #tpu.memory_space<vmem>>, %arg9: memref<256x1xf32, #tpu.memory_space<vmem>>, %arg10: memref<256x256xbf16, #tpu.memory_space<vmem>>, %arg11: memref<256x1xf32, #tpu.memory_space<vmem>>, %arg12: memref<128x256xbf16, #tpu.memory_space<vmem>>, %arg13: memref<128x1xf32, #tpu.memory_space<vmem>>, %arg14: memref<128x1xf32, #tpu.memory_space<vmem>>, %arg15: memref<1x1xf32, #tpu.memory_space<vmem>>, %arg16: memref<1x256xf32, #tpu.memory_space<vmem>>) attributes {dimension_semantics = [#tpu.dimension_semantics<parallel>], iteration_bounds = array<i64: 2>, scalar_prefetch = 0 : i64, scratch_operands = 0 : i64, tpu.core_type = #tpu.core_type<tc>, window_params = [{transform_indices = @transform_0, window_bounds = array<i64: 2, 256>}, {pipeline_mode = #tpu.pipeline_mode<synchronous>, transform_indices = @transform_1, window_bounds = array<i64: 128, 2>}, {pipeline_mode = #tpu.pipeline_mode<synchronous>, transform_indices = @transform_2, window_bounds = array<i64: 128, 1>}, {pipeline_mode = #tpu.pipeline_mode<synchronous>, transform_indices = @transform_3, window_bounds = array<i64: 256, 128>}, {pipeline_mode = #tpu.pipeline_mode<synchronous>, transform_indices = @transform_4, window_bounds = array<i64: 256, 1>}, {pipeline_mode = #tpu.pipeline_mode<synchronous>, transform_indices = @transform_5, window_bounds = array<i64: 256, 256>}, {pipeline_mode = #tpu.pipeline_mode<synchronous>, transform_indices = @transform_6, window_bounds = array<i64: 256, 1>}, {pipeline_mode = #tpu.pipeline_mode<synchronous>, transform_indices = @transform_7, window_bounds = array<i64: 256, 256>}, {pipeline_mode = #tpu.pipeline_mode<synchronous>, transform_indices = @transform_8, window_bounds = array<i64: 256, 1>}, {pipeline_mode = #tpu.pipeline_mode<synchronous>, transform_indices = @transform_9, window_bounds = array<i64: 256, 256>}, {pipeline_mode = #tpu.pipeline_mode<synchronous>, transform_indices = @transform_10, window_bounds = array<i64: 256, 1>}, {pipeline_mode = #tpu.pipeline_mode<synchronous>, transform_indices = @transform_11, window_bounds = array<i64: 128, 256>}, {pipeline_mode = #tpu.pipeline_mode<synchronous>, transform_indices = @transform_12, window_bounds = array<i64: 128, 1>}, {pipeline_mode = #tpu.pipeline_mode<synchronous>, transform_indices = @transform_13, window_bounds = array<i64: 128, 1>}, {pipeline_mode = #tpu.pipeline_mode<synchronous>, transform_indices = @transform_14, window_bounds = array<i64: 1, 1>}, {transform_indices = @transform_15, window_bounds = array<i64: 1, 256>}]} {
    %c0 = arith.constant 0 : index
    %c0_0 = arith.constant 0 : index
    %0 = vector.load %arg1[%c0, %c0_0] : memref<2x256xf32, #tpu.memory_space<vmem>>, vector<2x256xf32>
    %c0_1 = arith.constant 0 : index
    %c0_2 = arith.constant 0 : index
    %1 = vector.load %arg2[%c0_1, %c0_2] : memref<128x2xf32, #tpu.memory_space<vmem>>, vector<128x2xf32>
    %2 = vector.extract_strided_slice %0 {offsets = [0, 0], sizes = [1, 256], strides = [1, 1]} : vector<2x256xf32> to vector<1x256xf32>
    %3 = vector.extract_strided_slice %1 {offsets = [0, 0], sizes = [128, 1], strides = [1, 1]} : vector<128x2xf32> to vector<128x1xf32>
    %4 = vector.broadcast %2 : vector<1x256xf32> to vector<128x256xf32>
    %5 = vector.broadcast %3 : vector<128x1xf32> to vector<128x256xf32>
    %6 = arith.mulf %4, %5 : vector<128x256xf32>
    %7 = vector.extract_strided_slice %0 {offsets = [1, 0], sizes = [1, 256], strides = [1, 1]} : vector<2x256xf32> to vector<1x256xf32>
    %8 = vector.extract_strided_slice %1 {offsets = [0, 1], sizes = [128, 1], strides = [1, 1]} : vector<128x2xf32> to vector<128x1xf32>
    %9 = vector.broadcast %7 : vector<1x256xf32> to vector<128x256xf32>
    %10 = vector.broadcast %8 : vector<128x1xf32> to vector<128x256xf32>
    %11 = arith.mulf %9, %10 : vector<128x256xf32>
    %12 = arith.addf %6, %11 : vector<128x256xf32>
    %c0_3 = arith.constant 0 : index
    %c0_4 = arith.constant 0 : index
    %13 = vector.load %arg3[%c0_3, %c0_4] : memref<128x1xf32, #tpu.memory_space<vmem>>, vector<128x1xf32>
    %14 = vector.broadcast %13 : vector<128x1xf32> to vector<128x256xf32>
    %15 = arith.addf %12, %14 : vector<128x256xf32>
    %cst = arith.constant 0.000000e+00 : f32
    %16 = vector.broadcast %cst : f32 to vector<128x256xf32>
    %17 = arith.cmpf ogt, %15, %16 : vector<128x256xf32>
    %cst_5 = arith.constant 2.000000e-01 : f32
    %18 = vector.broadcast %cst_5 : f32 to vector<128x256xf32>
    %19 = arith.mulf %18, %15 : vector<128x256xf32>
    %20 = arith.select %17, %15, %19 : vector<128x256xi1>, vector<128x256xf32>
    %c0_6 = arith.constant 0 : index
    %c0_7 = arith.constant 0 : index
    %21 = vector.load %arg4[%c0_6, %c0_7] : memref<256x128xbf16, #tpu.memory_space<vmem>>, vector<256x128xbf16>
    %22 = arith.truncf %20 : vector<128x256xf32> to vector<128x256xbf16>
    %cst_8 = arith.constant dense<0.000000e+00> : vector<256x256xf32>
    %23 = tpu.matmul %21, %22, %cst_8 {dimension_numbers = #tpu.dot_dimension_numbers<[1], [0], [0], [1], [0, 0, 1, 1], [], []>} : vector<256x128xbf16>, vector<128x256xbf16>, vector<256x256xf32> -> vector<256x256xf32>
    %c0_9 = arith.constant 0 : index
    %c0_10 = arith.constant 0 : index
    %24 = vector.load %arg5[%c0_9, %c0_10] : memref<256x1xf32, #tpu.memory_space<vmem>>, vector<256x1xf32>
    %25 = vector.broadcast %24 : vector<256x1xf32> to vector<256x256xf32>
    %26 = arith.addf %23, %25 : vector<256x256xf32>
    %cst_11 = arith.constant 0.000000e+00 : f32
    %27 = vector.broadcast %cst_11 : f32 to vector<256x256xf32>
    %28 = arith.cmpf ogt, %26, %27 : vector<256x256xf32>
    %cst_12 = arith.constant 2.000000e-01 : f32
    %29 = vector.broadcast %cst_12 : f32 to vector<256x256xf32>
    %30 = arith.mulf %29, %26 : vector<256x256xf32>
    %31 = arith.select %28, %26, %30 : vector<256x256xi1>, vector<256x256xf32>
    %c0_13 = arith.constant 0 : index
    %c0_14 = arith.constant 0 : index
    %32 = vector.load %arg6[%c0_13, %c0_14] : memref<256x256xbf16, #tpu.memory_space<vmem>>, vector<256x256xbf16>
    %33 = arith.truncf %31 : vector<256x256xf32> to vector<256x256xbf16>
    %cst_15 = arith.constant dense<0.000000e+00> : vector<256x256xf32>
    %34 = tpu.matmul %32, %33, %cst_15 {dimension_numbers = #tpu.dot_dimension_numbers<[1], [0], [0], [1], [0, 0, 1, 1], [], []>} : vector<256x256xbf16>, vector<256x256xbf16>, vector<256x256xf32> -> vector<256x256xf32>
    %c0_16 = arith.constant 0 : index
    %c0_17 = arith.constant 0 : index
    %35 = vector.load %arg7[%c0_16, %c0_17] : memref<256x1xf32, #tpu.memory_space<vmem>>, vector<256x1xf32>
    %36 = vector.broadcast %35 : vector<256x1xf32> to vector<256x256xf32>
    %37 = arith.addf %34, %36 : vector<256x256xf32>
    %cst_18 = arith.constant 0.000000e+00 : f32
    %38 = vector.broadcast %cst_18 : f32 to vector<256x256xf32>
    %39 = arith.cmpf ogt, %37, %38 : vector<256x256xf32>
    %cst_19 = arith.constant 2.000000e-01 : f32
    %40 = vector.broadcast %cst_19 : f32 to vector<256x256xf32>
    %41 = arith.mulf %40, %37 : vector<256x256xf32>
    %42 = arith.select %39, %37, %41 : vector<256x256xi1>, vector<256x256xf32>
    %c0_20 = arith.constant 0 : index
    %c0_21 = arith.constant 0 : index
    %43 = vector.load %arg8[%c0_20, %c0_21] : memref<256x256xbf16, #tpu.memory_space<vmem>>, vector<256x256xbf16>
    %44 = arith.truncf %42 : vector<256x256xf32> to vector<256x256xbf16>
    %cst_22 = arith.constant dense<0.000000e+00> : vector<256x256xf32>
    %45 = tpu.matmul %43, %44, %cst_22 {dimension_numbers = #tpu.dot_dimension_numbers<[1], [0], [0], [1], [0, 0, 1, 1], [], []>} : vector<256x256xbf16>, vector<256x256xbf16>, vector<256x256xf32> -> vector<256x256xf32>
    %c0_23 = arith.constant 0 : index
    %c0_24 = arith.constant 0 : index
    %46 = vector.load %arg9[%c0_23, %c0_24] : memref<256x1xf32, #tpu.memory_space<vmem>>, vector<256x1xf32>
    %47 = vector.broadcast %46 : vector<256x1xf32> to vector<256x256xf32>
    %48 = arith.addf %45, %47 : vector<256x256xf32>
    %cst_25 = arith.constant 0.000000e+00 : f32
    %49 = vector.broadcast %cst_25 : f32 to vector<256x256xf32>
    %50 = arith.cmpf ogt, %48, %49 : vector<256x256xf32>
    %cst_26 = arith.constant 2.000000e-01 : f32
    %51 = vector.broadcast %cst_26 : f32 to vector<256x256xf32>
    %52 = arith.mulf %51, %48 : vector<256x256xf32>
    %53 = arith.select %50, %48, %52 : vector<256x256xi1>, vector<256x256xf32>
    %c0_27 = arith.constant 0 : index
    %c0_28 = arith.constant 0 : index
    %54 = vector.load %arg10[%c0_27, %c0_28] : memref<256x256xbf16, #tpu.memory_space<vmem>>, vector<256x256xbf16>
    %55 = arith.truncf %53 : vector<256x256xf32> to vector<256x256xbf16>
    %cst_29 = arith.constant dense<0.000000e+00> : vector<256x256xf32>
    %56 = tpu.matmul %54, %55, %cst_29 {dimension_numbers = #tpu.dot_dimension_numbers<[1], [0], [0], [1], [0, 0, 1, 1], [], []>} : vector<256x256xbf16>, vector<256x256xbf16>, vector<256x256xf32> -> vector<256x256xf32>
    %c0_30 = arith.constant 0 : index
    %c0_31 = arith.constant 0 : index
    %57 = vector.load %arg11[%c0_30, %c0_31] : memref<256x1xf32, #tpu.memory_space<vmem>>, vector<256x1xf32>
    %58 = vector.broadcast %57 : vector<256x1xf32> to vector<256x256xf32>
    %59 = arith.addf %56, %58 : vector<256x256xf32>
    %cst_32 = arith.constant 0.000000e+00 : f32
    %60 = vector.broadcast %cst_32 : f32 to vector<256x256xf32>
    %61 = arith.cmpf ogt, %59, %60 : vector<256x256xf32>
    %cst_33 = arith.constant 2.000000e-01 : f32
    %62 = vector.broadcast %cst_33 : f32 to vector<256x256xf32>
    %63 = arith.mulf %62, %59 : vector<256x256xf32>
    %64 = arith.select %61, %59, %63 : vector<256x256xi1>, vector<256x256xf32>
    %c0_34 = arith.constant 0 : index
    %c0_35 = arith.constant 0 : index
    %65 = vector.load %arg12[%c0_34, %c0_35] : memref<128x256xbf16, #tpu.memory_space<vmem>>, vector<128x256xbf16>
    %66 = arith.truncf %64 : vector<256x256xf32> to vector<256x256xbf16>
    %cst_36 = arith.constant dense<0.000000e+00> : vector<128x256xf32>
    %67 = tpu.matmul %65, %66, %cst_36 {dimension_numbers = #tpu.dot_dimension_numbers<[1], [0], [0], [1], [0, 0, 1, 1], [], []>} : vector<128x256xbf16>, vector<256x256xbf16>, vector<128x256xf32> -> vector<128x256xf32>
    %c0_37 = arith.constant 0 : index
    %c0_38 = arith.constant 0 : index
    %68 = vector.load %arg13[%c0_37, %c0_38] : memref<128x1xf32, #tpu.memory_space<vmem>>, vector<128x1xf32>
    %69 = vector.broadcast %68 : vector<128x1xf32> to vector<128x256xf32>
    %70 = arith.addf %67, %69 : vector<128x256xf32>
    %cst_39 = arith.constant 0.000000e+00 : f32
    %71 = vector.broadcast %cst_39 : f32 to vector<128x256xf32>
    %72 = arith.cmpf ogt, %70, %71 : vector<128x256xf32>
    %cst_40 = arith.constant 2.000000e-01 : f32
    %73 = vector.broadcast %cst_40 : f32 to vector<128x256xf32>
    %74 = arith.mulf %73, %70 : vector<128x256xf32>
    %75 = arith.select %72, %70, %74 : vector<128x256xi1>, vector<128x256xf32>
    %c0_41 = arith.constant 0 : index
    %c0_42 = arith.constant 0 : index
    %76 = vector.load %arg14[%c0_41, %c0_42] : memref<128x1xf32, #tpu.memory_space<vmem>>, vector<128x1xf32>
    %77 = vector.broadcast %76 : vector<128x1xf32> to vector<128x256xf32>
    %78 = arith.mulf %75, %77 : vector<128x256xf32>
    %cst_43 = arith.constant dense<0.000000e+00> : vector<256xf32>
    %79 = vector.multi_reduction <add>, %78, %cst_43 [0] : vector<128x256xf32> to vector<256xf32>
    %80 = vector.shape_cast %79 : vector<256xf32> to vector<1x256xf32>
    %c0_44 = arith.constant 0 : index
    %c0_45 = arith.constant 0 : index
    %81 = vector.load %arg15[%c0_44, %c0_45] : memref<1x1xf32, #tpu.memory_space<vmem>>, vector<1x1xf32>
    %82 = vector.broadcast %81 : vector<1x1xf32> to vector<1x256xf32>
    %83 = arith.addf %80, %82 : vector<1x256xf32>
    %84 = arith.negf %83 : vector<1x256xf32>
    %85 = math.exp %84 : vector<1x256xf32>
    %cst_46 = arith.constant 1.000000e+00 : f32
    %86 = vector.broadcast %cst_46 : f32 to vector<1x256xf32>
    %87 = arith.addf %86, %85 : vector<1x256xf32>
    %88 = arith.divf %86, %87 : vector<1x256xf32>
    %cst_47 = arith.constant -8.000000e+00 : f32
    %89 = vector.broadcast %cst_47 : f32 to vector<1x256xf32>
    %90 = arith.mulf %88, %89 : vector<1x256xf32>
    %c0_48 = arith.constant 0 : index
    %c0_49 = arith.constant 0 : index
    %91 = vector.load %arg16[%c0_48, %c0_49] : memref<1x256xf32, #tpu.memory_space<vmem>>, vector<1x256xf32>
    tpu.vector_store %arg16[%c0_48, %c0_49], %90 {strides = array<i32>} : memref<1x256xf32, #tpu.memory_space<vmem>>, vector<1x256xf32>,
    return
  }
  func.func @transform_0(%arg0: i32) -> (i32, i32) {
    %c0_i32 = arith.constant 0 : i32
    %c0_i32_0 = arith.constant 0 : i32
    return %c0_i32, %arg0 : i32, i32
  }
  func.func @transform_1(%arg0: i32) -> (i32, i32) {
    %c0_i32 = arith.constant 0 : i32
    %c0_i32_0 = arith.constant 0 : i32
    %c0_i32_1 = arith.constant 0 : i32
    return %c0_i32, %c0_i32_0 : i32, i32
  }
  func.func @transform_2(%arg0: i32) -> (i32, i32) {
    %c0_i32 = arith.constant 0 : i32
    %c0_i32_0 = arith.constant 0 : i32
    %c0_i32_1 = arith.constant 0 : i32
    return %c0_i32, %c0_i32_0 : i32, i32
  }
  func.func @transform_3(%arg0: i32) -> (i32, i32) {
    %c0_i32 = arith.constant 0 : i32
    %c0_i32_0 = arith.constant 0 : i32
    %c0_i32_1 = arith.constant 0 : i32
    return %c0_i32, %c0_i32_0 : i32, i32
  }
  func.func @transform_4(%arg0: i32) -> (i32, i32) {
    %c0_i32 = arith.constant 0 : i32
    %c0_i32_0 = arith.constant 0 : i32
    %c0_i32_1 = arith.constant 0 : i32
    return %c0_i32, %c0_i32_0 : i32, i32
  }
  func.func @transform_5(%arg0: i32) -> (i32, i32) {
    %c0_i32 = arith.constant 0 : i32
    %c0_i32_0 = arith.constant 0 : i32
    %c0_i32_1 = arith.constant 0 : i32
    return %c0_i32, %c0_i32_0 : i32, i32
  }
  func.func @transform_6(%arg0: i32) -> (i32, i32) {
    %c0_i32 = arith.constant 0 : i32
    %c0_i32_0 = arith.constant 0 : i32
    %c0_i32_1 = arith.constant 0 : i32
    return %c0_i32, %c0_i32_0 : i32, i32
  }
  func.func @transform_7(%arg0: i32) -> (i32, i32) {
    %c0_i32 = arith.constant 0 : i32
    %c0_i32_0 = arith.constant 0 : i32
    %c0_i32_1 = arith.constant 0 : i32
    return %c0_i32, %c0_i32_0 : i32, i32
  }
  func.func @transform_8(%arg0: i32) -> (i32, i32) {
    %c0_i32 = arith.constant 0 : i32
    %c0_i32_0 = arith.constant 0 : i32
    %c0_i32_1 = arith.constant 0 : i32
    return %c0_i32, %c0_i32_0 : i32, i32
  }
  func.func @transform_9(%arg0: i32) -> (i32, i32) {
    %c0_i32 = arith.constant 0 : i32
    %c0_i32_0 = arith.constant 0 : i32
    %c0_i32_1 = arith.constant 0 : i32
    return %c0_i32, %c0_i32_0 : i32, i32
  }
  func.func @transform_10(%arg0: i32) -> (i32, i32) {
    %c0_i32 = arith.constant 0 : i32
    %c0_i32_0 = arith.constant 0 : i32
    %c0_i32_1 = arith.constant 0 : i32
    return %c0_i32, %c0_i32_0 : i32, i32
  }
  func.func @transform_11(%arg0: i32) -> (i32, i32) {
    %c0_i32 = arith.constant 0 : i32
    %c0_i32_0 = arith.constant 0 : i32
    %c0_i32_1 = arith.constant 0 : i32
    return %c0_i32, %c0_i32_0 : i32, i32
  }
  func.func @transform_12(%arg0: i32) -> (i32, i32) {
    %c0_i32 = arith.constant 0 : i32
    %c0_i32_0 = arith.constant 0 : i32
    %c0_i32_1 = arith.constant 0 : i32
    return %c0_i32, %c0_i32_0 : i32, i32
  }
  func.func @transform_13(%arg0: i32) -> (i32, i32) {
    %c0_i32 = arith.constant 0 : i32
    %c0_i32_0 = arith.constant 0 : i32
    %c0_i32_1 = arith.constant 0 : i32
    return %c0_i32, %c0_i32_0 : i32, i32
  }
  func.func @transform_14(%arg0: i32) -> (i32, i32) {
    %c0_i32 = arith.constant 0 : i32
    %c0_i32_0 = arith.constant 0 : i32
    %c0_i32_1 = arith.constant 0 : i32
    return %c0_i32, %c0_i32_0 : i32, i32
  }
  func.func @transform_15(%arg0: i32) -> (i32, i32) {
    %c0_i32 = arith.constant 0 : i32
    %c0_i32_0 = arith.constant 0 : i32
    return %c0_i32, %arg0 : i32, i32
  }
}

</mosaic_0001>

<llo_original>
// kernel: tpu_custom_call.1
$region0: #{tpu_custom_call.1}
  #allocation0 [shape = 'u32[]', space=smem, size = 0x4, offset = 0x4, fixed_abs, tag = 'smem constant byte address 0x4 - core index']
  #allocation1 [shape = 'u32[72,128]{1,0:T(1,128)}', space=vmem, size = 0x9000, scoped, tag = 'internal scratch']
  #allocation2 [shape = 'f32[1,1]{1,0:T(1,128)S(1)}', space=vmem, size = 0x200, scoped, tag = 'scoped memory for tpu_custom_call.1']
  %s0 = inlined_call_operand.vmem [shape: f32[2,512], index: 0, kind: input, shape index: {}]
  %s1 = inlined_call_operand.vmem [shape: f32[128,2], index: 1, kind: input, shape index: {}]
  %s2 = inlined_call_operand.vmem [shape: f32[128,1], index: 2, kind: input, shape index: {}]
  %s3 = inlined_call_operand.vmem [shape: bf16[256,128], index: 3, kind: input, shape index: {}]
  %s4 = inlined_call_operand.vmem [shape: f32[256,1], index: 4, kind: input, shape index: {}]
  %s5 = inlined_call_operand.vmem [shape: bf16[256,256], index: 5, kind: input, shape index: {}]
  %s6 = inlined_call_operand.vmem [shape: f32[256,1], index: 6, kind: input, shape index: {}]
  %s7 = inlined_call_operand.vmem [shape: bf16[256,256], index: 7, kind: input, shape index: {}]
  %s8 = inlined_call_operand.vmem [shape: f32[256,1], index: 8, kind: input, shape index: {}]
  %s9 = inlined_call_operand.vmem [shape: bf16[256,256], index: 9, kind: input, shape index: {}]
  %s10 = inlined_call_operand.vmem [shape: f32[256,1], index: 10, kind: input, shape index: {}]
  %s11 = inlined_call_operand.vmem [shape: bf16[128,256], index: 11, kind: input, shape index: {}]
  %s12 = inlined_call_operand.vmem [shape: f32[128,1], index: 12, kind: input, shape index: {}]
  %s13 = inlined_call_operand.vmem [shape: f32[128,1], index: 13, kind: input, shape index: {}]
  %s14 = inlined_call_operand.<no memory space> [shape: f32[1,1], index: 14, kind: input, shape index: {}]
  %s15 = inlined_call_operand.hbm [shape: f32[1,512], index: 15, kind: output, shape index: {}]
  %s16 = sld [smem:[#allocation0]]
  $region93: #{tpu_custom_call.1} parent=0
    _
  %s18 = ssub.s32 1, %s16
  %s19 = scalar_select 0, %s18, %s16
  %v20 = vstv %s14
  %21 = vst [vmem:[#allocation2] sm:$0x1] %v20
  $region1: #{tpu_custom_call.1} parent=0
    #allocation3 [shape = 'u8[2048]{0}', space=vmem, size = 0x800, scoped, tag = 'output window, operand 0']
    #allocation4 [shape = 's32[2]{0}', space=sflag, size = 0x8, scoped, tag = 'scoped memory for tpu_custom_call.1']
    %22 = vsyncpa [#allocation4], 0
    %s23 = scalar_lea.sflag [#allocation4], 1
    %24 = vsyncpa %s23, 0
    loop: start=0, step=1, limit=4
    $region2: #{tpu_custom_call.1} parent=1 // loop_pre_header
      _
    $region3: #{tpu_custom_call.1} parent=1 // loop_header
      %s26 = sphi 0, %s30
      %p27 = scmp.ge.s32.totalorder %s26, 4
      %s36 = sphi 0, %s38
      %s39 = sphi 0, %s36
      %s40 = sphi 0, %s39
      %s56 = sphi 0, %s40
      %s60 = sphi 0, %s60
      %s62 = sphi 0, %s60
      %s63 = sphi 0, %s62
      %s77 = sphi 0, %s63
      %s81 = sphi 0, %s81
      %s83 = sphi 0, %s81
      %s84 = sphi 0, %s83
      %s98 = sphi 0, %s84
      %s102 = sphi 0, %s102
      %s104 = sphi 0, %s102
      %s105 = sphi 0, %s104
      %s119 = sphi 0, %s105
      %s123 = sphi 0, %s123
      %s125 = sphi 0, %s123
      %s126 = sphi 0, %s125
      %s140 = sphi 0, %s126
      %s144 = sphi 0, %s144
      %s146 = sphi 0, %s144
      %s147 = sphi 0, %s146
      %s161 = sphi 0, %s147
      %s165 = sphi 0, %s165
      %s167 = sphi 0, %s165
      %s168 = sphi 0, %s167
      %s182 = sphi 0, %s168
      %s186 = sphi 0, %s186
      %s188 = sphi 0, %s186
      %s189 = sphi 0, %s188
      %s203 = sphi 0, %s189
      %s207 = sphi 0, %s207
      %s209 = sphi 0, %s207
      %s210 = sphi 0, %s209
      %s224 = sphi 0, %s210
      %s228 = sphi 0, %s228
      %s230 = sphi 0, %s228
      %s231 = sphi 0, %s230
      %s245 = sphi 0, %s231
      %s249 = sphi 0, %s249
      %s251 = sphi 0, %s249
      %s252 = sphi 0, %s251
      %s266 = sphi 0, %s252
      %s270 = sphi 0, %s270
      %s272 = sphi 0, %s270
      %s273 = sphi 0, %s272
      %s287 = sphi 0, %s273
      %s291 = sphi 0, %s291
      %s293 = sphi 0, %s291
      %s294 = sphi 0, %s293
      %s308 = sphi 0, %s294
      %s312 = sphi 0, %s312
      %s314 = sphi 0, %s312
      %s315 = sphi 0, %s314
      %s329 = sphi 0, %s315
      %s333 = sphi 0, %s333
      %s335 = sphi 0, %s333
      %s336 = sphi 0, %s335
      %s350 = sphi 0, %s336
      %s356 = sphi 0, %s358
      %s359 = sphi 0, %s356
      %s360 = sphi 0, %s359
      %s376 = sphi 0, %s360
    $region4: #{tpu_custom_call.1} parent=1 // loop_header_branch
      %29 = sbr.rel (%p27) target = $region8
    $region5: #{tpu_custom_call.1} parent=1 // loop_body
      %s31 = ssub.s32 %s26, 1
      %s32 = ssub.s32 %s26, 2
      %s33 = sadd.s32 %s26, 1
      %s34 = ssub.s32 %s26, %s33
      %p35 = scmp.eq.s32.totalorder %s34, 0
      %s37 = sadd.s32 %s36, 1
      %s38 = scalar_select %p35, %s36, %s37
      %p41 = pneg %p35
      %p42 = scmp.eq.s32.totalorder %s26, 1
      %p43 = por %p41, %p42
      %p44 = scmp.ne.s32.totalorder %s36, %s39
      %p45 = scmp.eq.s32.totalorder %s26, 0
      %p46 = por %p44, %p45
      %p47 = scmp.ne.s32.totalorder %s36, %s39
      %p48 = scmp.eq.s32.totalorder %s31, 1
      %p49 = por %p47, %p48
      %p50 = scmp.ne.s32.totalorder %s39, %s40
      %p51 = scmp.eq.s32.totalorder %s31, 0
      %p52 = por %p50, %p51
      %p53 = scmp.ne.s32.totalorder %s39, %s40
      %p54 = scmp.eq.s32.totalorder %s32, 1
      %p55 = por %p53, %p54
      %p57 = scmp.ne.s32.totalorder %s40, %s56
      %p58 = scmp.eq.s32.totalorder %s32, 0
      %p59 = por %p57, %p58
      %s61 = sadd.s32 %s60, 1
      %p64 = scmp.eq.s32.totalorder %s26, 1
      %p65 = scmp.ne.s32.totalorder %s60, %s62
      %p66 = scmp.eq.s32.totalorder %s26, 0
      %p67 = por %p65, %p66
      %p68 = scmp.ne.s32.totalorder %s60, %s62
      %p69 = scmp.eq.s32.totalorder %s31, 1
      %p70 = por %p68, %p69
      %p71 = scmp.ne.s32.totalorder %s62, %s63
      %p72 = scmp.eq.s32.totalorder %s31, 0
      %p73 = por %p71, %p72
      %p74 = scmp.ne.s32.totalorder %s62, %s63
      %p75 = scmp.eq.s32.totalorder %s32, 1
      %p76 = por %p74, %p75
      %p78 = scmp.ne.s32.totalorder %s63, %s77
      %p79 = scmp.eq.s32.totalorder %s32, 0
      %p80 = por %p78, %p79
      %s82 = sadd.s32 %s81, 1
      %p85 = scmp.eq.s32.totalorder %s26, 1
      %p86 = scmp.ne.s32.totalorder %s81, %s83
      %p87 = scmp.eq.s32.totalorder %s26, 0
      %p88 = por %p86, %p87
      %p89 = scmp.ne.s32.totalorder %s81, %s83
      %p90 = scmp.eq.s32.totalorder %s31, 1
      %p91 = por %p89, %p90
      %p92 = scmp.ne.s32.totalorder %s83, %s84
      %p93 = scmp.eq.s32.totalorder %s31, 0
      %p94 = por %p92, %p93
      %p95 = scmp.ne.s32.totalorder %s83, %s84
      %p96 = scmp.eq.s32.totalorder %s32, 1
      %p97 = por %p95, %p96
      %p99 = scmp.ne.s32.totalorder %s84, %s98
      %p100 = scmp.eq.s32.totalorder %s32, 0
      %p101 = por %p99, %p100
      %s103 = sadd.s32 %s102, 1
      %p106 = scmp.eq.s32.totalorder %s26, 1
      %p107 = scmp.ne.s32.totalorder %s102, %s104
      %p108 = scmp.eq.s32.totalorder %s26, 0
      %p109 = por %p107, %p108
      %p110 = scmp.ne.s32.totalorder %s102, %s104
      %p111 = scmp.eq.s32.totalorder %s31, 1
      %p112 = por %p110, %p111
      %p113 = scmp.ne.s32.totalorder %s104, %s105
      %p114 = scmp.eq.s32.totalorder %s31, 0
      %p115 = por %p113, %p114
      %p116 = scmp.ne.s32.totalorder %s104, %s105
      %p117 = scmp.eq.s32.totalorder %s32, 1
      %p118 = por %p116, %p117
      %p120 = scmp.ne.s32.totalorder %s105, %s119
      %p121 = scmp.eq.s32.totalorder %s32, 0
      %p122 = por %p120, %p121
      %s124 = sadd.s32 %s123, 1
      %p127 = scmp.eq.s32.totalorder %s26, 1
      %p128 = scmp.ne.s32.totalorder %s123, %s125
      %p129 = scmp.eq.s32.totalorder %s26, 0
      %p130 = por %p128, %p129
      %p131 = scmp.ne.s32.totalorder %s123, %s125
      %p132 = scmp.eq.s32.totalorder %s31, 1
      %p133 = por %p131, %p132
      %p134 = scmp.ne.s32.totalorder %s125, %s126
      %p135 = scmp.eq.s32.totalorder %s31, 0
      %p136 = por %p134, %p135
      %p137 = scmp.ne.s32.totalorder %s125, %s126
      %p138 = scmp.eq.s32.totalorder %s32, 1
      %p139 = por %p137, %p138
      %p141 = scmp.ne.s32.totalorder %s126, %s140
      %p142 = scmp.eq.s32.totalorder %s32, 0
      %p143 = por %p141, %p142
      %s145 = sadd.s32 %s144, 1
      %p148 = scmp.eq.s32.totalorder %s26, 1
      %p149 = scmp.ne.s32.totalorder %s144, %s146
      %p150 = scmp.eq.s32.totalorder %s26, 0
      %p151 = por %p149, %p150
      %p152 = scmp.ne.s32.totalorder %s144, %s146
      %p153 = scmp.eq.s32.totalorder %s31, 1
      %p154 = por %p152, %p153
      %p155 = scmp.ne.s32.totalorder %s146, %s147
      %p156 = scmp.eq.s32.totalorder %s31, 0
      %p157 = por %p155, %p156
      %p158 = scmp.ne.s32.totalorder %s146, %s147
      %p159 = scmp.eq.s32.totalorder %s32, 1
      %p160 = por %p158, %p159
      %p162 = scmp.ne.s32.totalorder %s147, %s161
      %p163 = scmp.eq.s32.totalorder %s32, 0
      %p164 = por %p162, %p163
      %s166 = sadd.s32 %s165, 1
      %p169 = scmp.eq.s32.totalorder %s26, 1
      %p170 = scmp.ne.s32.totalorder %s165, %s167
      %p171 = scmp.eq.s32.totalorder %s26, 0
      %p172 = por %p170, %p171
      %p173 = scmp.ne.s32.totalorder %s165, %s167
      %p174 = scmp.eq.s32.totalorder %s31, 1
      %p175 = por %p173, %p174
      %p176 = scmp.ne.s32.totalorder %s167, %s168
      %p177 = scmp.eq.s32.totalorder %s31, 0
      %p178 = por %p176, %p177
      %p179 = scmp.ne.s32.totalorder %s167, %s168
      %p180 = scmp.eq.s32.totalorder %s32, 1
      %p181 = por %p179, %p180
      %p183 = scmp.ne.s32.totalorder %s168, %s182
      %p184 = scmp.eq.s32.totalorder %s32, 0
      %p185 = por %p183, %p184
      %s187 = sadd.s32 %s186, 1
      %p190 = scmp.eq.s32.totalorder %s26, 1
      %p191 = scmp.ne.s32.totalorder %s186, %s188
      %p192 = scmp.eq.s32.totalorder %s26, 0
      %p193 = por %p191, %p192
      %p194 = scmp.ne.s32.totalorder %s186, %s188
      %p195 = scmp.eq.s32.totalorder %s31, 1
      %p196 = por %p194, %p195
      %p197 = scmp.ne.s32.totalorder %s188, %s189
      %p198 = scmp.eq.s32.totalorder %s31, 0
      %p199 = por %p197, %p198
      %p200 = scmp.ne.s32.totalorder %s188, %s189
      %p201 = scmp.eq.s32.totalorder %s32, 1
      %p202 = por %p200, %p201
      %p204 = scmp.ne.s32.totalorder %s189, %s203
      %p205 = scmp.eq.s32.totalorder %s32, 0
      %p206 = por %p204, %p205
      %s208 = sadd.s32 %s207, 1
      %p211 = scmp.eq.s32.totalorder %s26, 1
      %p212 = scmp.ne.s32.totalorder %s207, %s209
      %p213 = scmp.eq.s32.totalorder %s26, 0
      %p214 = por %p212, %p213
      %p215 = scmp.ne.s32.totalorder %s207, %s209
      %p216 = scmp.eq.s32.totalorder %s31, 1
      %p217 = por %p215, %p216
      %p218 = scmp.ne.s32.totalorder %s209, %s210
      %p219 = scmp.eq.s32.totalorder %s31, 0
      %p220 = por %p218, %p219
      %p221 = scmp.ne.s32.totalorder %s209, %s210
      %p222 = scmp.eq.s32.totalorder %s32, 1
      %p223 = por %p221, %p222
      %p225 = scmp.ne.s32.totalorder %s210, %s224
      %p226 = scmp.eq.s32.totalorder %s32, 0
      %p227 = por %p225, %p226
      %s229 = sadd.s32 %s228, 1
      %p232 = scmp.eq.s32.totalorder %s26, 1
      %p233 = scmp.ne.s32.totalorder %s228, %s230
      %p234 = scmp.eq.s32.totalorder %s26, 0
      %p235 = por %p233, %p234
      %p236 = scmp.ne.s32.totalorder %s228, %s230
      %p237 = scmp.eq.s32.totalorder %s31, 1
      %p238 = por %p236, %p237
      %p239 = scmp.ne.s32.totalorder %s230, %s231
      %p240 = scmp.eq.s32.totalorder %s31, 0
      %p241 = por %p239, %p240
      %p242 = scmp.ne.s32.totalorder %s230, %s231
      %p243 = scmp.eq.s32.totalorder %s32, 1
      %p244 = por %p242, %p243
      %p246 = scmp.ne.s32.totalorder %s231, %s245
      %p247 = scmp.eq.s32.totalorder %s32, 0
      %p248 = por %p246, %p247
      %s250 = sadd.s32 %s249, 1
      %p253 = scmp.eq.s32.totalorder %s26, 1
      %p254 = scmp.ne.s32.totalorder %s249, %s251
      %p255 = scmp.eq.s32.totalorder %s26, 0
      %p256 = por %p254, %p255
      %p257 = scmp.ne.s32.totalorder %s249, %s251
      %p258 = scmp.eq.s32.totalorder %s31, 1
      %p259 = por %p257, %p258
      %p260 = scmp.ne.s32.totalorder %s251, %s252
      %p261 = scmp.eq.s32.totalorder %s31, 0
      %p262 = por %p260, %p261
      %p263 = scmp.ne.s32.totalorder %s251, %s252
      %p264 = scmp.eq.s32.totalorder %s32, 1
      %p265 = por %p263, %p264
      %p267 = scmp.ne.s32.totalorder %s252, %s266
      %p268 = scmp.eq.s32.totalorder %s32, 0
      %p269 = por %p267, %p268
      %s271 = sadd.s32 %s270, 1
      %p274 = scmp.eq.s32.totalorder %s26, 1
      %p275 = scmp.ne.s32.totalorder %s270, %s272
      %p276 = scmp.eq.s32.totalorder %s26, 0
      %p277 = por %p275, %p276
      %p278 = scmp.ne.s32.totalorder %s270, %s272
      %p279 = scmp.eq.s32.totalorder %s31, 1
      %p280 = por %p278, %p279
      %p281 = scmp.ne.s32.totalorder %s272, %s273
      %p282 = scmp.eq.s32.totalorder %s31, 0
      %p283 = por %p281, %p282
      %p284 = scmp.ne.s32.totalorder %s272, %s273
      %p285 = scmp.eq.s32.totalorder %s32, 1
      %p286 = por %p284, %p285
      %p288 = scmp.ne.s32.totalorder %s273, %s287
      %p289 = scmp.eq.s32.totalorder %s32, 0
      %p290 = por %p288, %p289
      %s292 = sadd.s32 %s291, 1
      %p295 = scmp.eq.s32.totalorder %s26, 1
      %p296 = scmp.ne.s32.totalorder %s291, %s293
      %p297 = scmp.eq.s32.totalorder %s26, 0
      %p298 = por %p296, %p297
      %p299 = scmp.ne.s32.totalorder %s291, %s293
      %p300 = scmp.eq.s32.totalorder %s31, 1
      %p301 = por %p299, %p300
      %p302 = scmp.ne.s32.totalorder %s293, %s294
      %p303 = scmp.eq.s32.totalorder %s31, 0
      %p304 = por %p302, %p303
      %p305 = scmp.ne.s32.totalorder %s293, %s294
      %p306 = scmp.eq.s32.totalorder %s32, 1
      %p307 = por %p305, %p306
      %p309 = scmp.ne.s32.totalorder %s294, %s308
      %p310 = scmp.eq.s32.totalorder %s32, 0
      %p311 = por %p309, %p310
      %s313 = sadd.s32 %s312, 1
      %p316 = scmp.eq.s32.totalorder %s26, 1
      %p317 = scmp.ne.s32.totalorder %s312, %s314
      %p318 = scmp.eq.s32.totalorder %s26, 0
      %p319 = por %p317, %p318
      %p320 = scmp.ne.s32.totalorder %s312, %s314
      %p321 = scmp.eq.s32.totalorder %s31, 1
      %p322 = por %p320, %p321
      %p323 = scmp.ne.s32.totalorder %s314, %s315
      %p324 = scmp.eq.s32.totalorder %s31, 0
      %p325 = por %p323, %p324
      %p326 = scmp.ne.s32.totalorder %s314, %s315
      %p327 = scmp.eq.s32.totalorder %s32, 1
      %p328 = por %p326, %p327
      %p330 = scmp.ne.s32.totalorder %s315, %s329
      %p331 = scmp.eq.s32.totalorder %s32, 0
      %p332 = por %p330, %p331
      %s334 = sadd.s32 %s333, 1
      %p337 = scmp.eq.s32.totalorder %s26, 1
      %p338 = scmp.ne.s32.totalorder %s333, %s335
      %p339 = scmp.eq.s32.totalorder %s26, 0
      %p340 = por %p338, %p339
      %p341 = scmp.ne.s32.totalorder %s333, %s335
      %p342 = scmp.eq.s32.totalorder %s31, 1
      %p343 = por %p341, %p342
      %p344 = scmp.ne.s32.totalorder %s335, %s336
      %p345 = scmp.eq.s32.totalorder %s31, 0
      %p346 = por %p344, %p345
      %p347 = scmp.ne.s32.totalorder %s335, %s336
      %p348 = scmp.eq.s32.totalorder %s32, 1
      %p349 = por %p347, %p348
      %p351 = scmp.ne.s32.totalorder %s336, %s350
      %p352 = scmp.eq.s32.totalorder %s32, 0
      %p353 = por %p351, %p352
      %s354 = ssub.s32 %s26, %s33
      %p355 = scmp.eq.s32.totalorder %s354, 0
      %s357 = sadd.s32 %s356, 1
      %s358 = scalar_select %p355, %s356, %s357
      %p361 = pneg %p355
      %p362 = scmp.eq.s32.totalorder %s26, 1
      %p363 = por %p361, %p362
      %p364 = scmp.ne.s32.totalorder %s356, %s359
      %p365 = scmp.eq.s32.totalorder %s26, 0
      %p366 = por %p364, %p365
      %p367 = scmp.ne.s32.totalorder %s356, %s359
      %p368 = scmp.eq.s32.totalorder %s31, 1
      %p369 = por %p367, %p368
      %p370 = scmp.ne.s32.totalorder %s359, %s360
      %p371 = scmp.eq.s32.totalorder %s31, 0
      %p372 = por %p370, %p371
      %p373 = scmp.ne.s32.totalorder %s359, %s360
      %p374 = scmp.eq.s32.totalorder %s32, 1
      %p375 = por %p373, %p374
      %p377 = scmp.ne.s32.totalorder %s360, %s376
      %p378 = scmp.eq.s32.totalorder %s32, 0
      %p379 = por %p377, %p378
      %p380 = scmp.le.s32.totalorder 1, %s26
      %p381 = scmp.lt.s32.totalorder %s26, 3
      %p382 = pnand %p380, %p381
      %p383 = pneg %p382
      // Predicated region
      $region9: #{tpu_custom_call.1} parent=5 // pred_check
        _
      $region10: #{tpu_custom_call.1} parent=5 // pred_check_branch
        %385 = sbr.rel (%p382) target = $region12
      $region11: #{tpu_custom_call.1} parent=5 // pred_region
        %s386 = ssub.s32 %s26, 1
        // Predicated region
        $region13: #{tpu_custom_call.1} parent=11 // pred_check
          %p387 = pneg %p73
        $region14: #{tpu_custom_call.1} parent=11 // pred_check_branch
          %389 = sbr.rel (%p387) target = $region16
        $region15: #{tpu_custom_call.1} parent=11 // pred_region
          _
        $region16: #{tpu_custom_call.1} parent=11 // pred_fallthru
          _
        // Predicated region
        $region17: #{tpu_custom_call.1} parent=11 // pred_check
          %p390 = pneg %p94
        $region18: #{tpu_custom_call.1} parent=11 // pred_check_branch
          %392 = sbr.rel (%p390) target = $region20
        $region19: #{tpu_custom_call.1} parent=11 // pred_region
          _
        $region20: #{tpu_custom_call.1} parent=11 // pred_fallthru
          _
        // Predicated region
        $region21: #{tpu_custom_call.1} parent=11 // pred_check
          %p393 = pneg %p115
        $region22: #{tpu_custom_call.1} parent=11 // pred_check_branch
          %395 = sbr.rel (%p393) target = $region24
        $region23: #{tpu_custom_call.1} parent=11 // pred_region
          _
        $region24: #{tpu_custom_call.1} parent=11 // pred_fallthru
          _
        // Predicated region
        $region25: #{tpu_custom_call.1} parent=11 // pred_check
          %p396 = pneg %p136
        $region26: #{tpu_custom_call.1} parent=11 // pred_check_branch
          %398 = sbr.rel (%p396) target = $region28
        $region27: #{tpu_custom_call.1} parent=11 // pred_region
          _
        $region28: #{tpu_custom_call.1} parent=11 // pred_fallthru
          _
        // Predicated region
        $region29: #{tpu_custom_call.1} parent=11 // pred_check
          %p399 = pneg %p157
        $region30: #{tpu_custom_call.1} parent=11 // pred_check_branch
          %401 = sbr.rel (%p399) target = $region32
        $region31: #{tpu_custom_call.1} parent=11 // pred_region
          _
        $region32: #{tpu_custom_call.1} parent=11 // pred_fallthru
          _
        // Predicated region
        $region33: #{tpu_custom_call.1} parent=11 // pred_check
          %p402 = pneg %p178
        $region34: #{tpu_custom_call.1} parent=11 // pred_check_branch
          %404 = sbr.rel (%p402) target = $region36
        $region35: #{tpu_custom_call.1} parent=11 // pred_region
          _
        $region36: #{tpu_custom_call.1} parent=11 // pred_fallthru
          _
        // Predicated region
        $region37: #{tpu_custom_call.1} parent=11 // pred_check
          %p405 = pneg %p199
        $region38: #{tpu_custom_call.1} parent=11 // pred_check_branch
          %407 = sbr.rel (%p405) target = $region40
        $region39: #{tpu_custom_call.1} parent=11 // pred_region
          _
        $region40: #{tpu_custom_call.1} parent=11 // pred_fallthru
          _
        // Predicated region
        $region41: #{tpu_custom_call.1} parent=11 // pred_check
          %p408 = pneg %p220
        $region42: #{tpu_custom_call.1} parent=11 // pred_check_branch
          %410 = sbr.rel (%p408) target = $region44
        $region43: #{tpu_custom_call.1} parent=11 // pred_region
          _
        $region44: #{tpu_custom_call.1} parent=11 // pred_fallthru
          _
        // Predicated region
        $region45: #{tpu_custom_call.1} parent=11 // pred_check
          %p411 = pneg %p241
        $region46: #{tpu_custom_call.1} parent=11 // pred_check_branch
          %413 = sbr.rel (%p411) target = $region48
        $region47: #{tpu_custom_call.1} parent=11 // pred_region
          _
        $region48: #{tpu_custom_call.1} parent=11 // pred_fallthru
          _
        // Predicated region
        $region49: #{tpu_custom_call.1} parent=11 // pred_check
          %p414 = pneg %p262
        $region50: #{tpu_custom_call.1} parent=11 // pred_check_branch
          %416 = sbr.rel (%p414) target = $region52
        $region51: #{tpu_custom_call.1} parent=11 // pred_region
          _
        $region52: #{tpu_custom_call.1} parent=11 // pred_fallthru
          _
        // Predicated region
        $region53: #{tpu_custom_call.1} parent=11 // pred_check
          %p417 = pneg %p283
        $region54: #{tpu_custom_call.1} parent=11 // pred_check_branch
          %419 = sbr.rel (%p417) target = $region56
        $region55: #{tpu_custom_call.1} parent=11 // pred_region
          _
        $region56: #{tpu_custom_call.1} parent=11 // pred_fallthru
          _
        // Predicated region
        $region57: #{tpu_custom_call.1} parent=11 // pred_check
          %p420 = pneg %p304
        $region58: #{tpu_custom_call.1} parent=11 // pred_check_branch
          %422 = sbr.rel (%p420) target = $region60
        $region59: #{tpu_custom_call.1} parent=11 // pred_region
          _
        $region60: #{tpu_custom_call.1} parent=11 // pred_fallthru
          _
        // Predicated region
        $region61: #{tpu_custom_call.1} parent=11 // pred_check
          %p423 = pneg %p325
        $region62: #{tpu_custom_call.1} parent=11 // pred_check_branch
          %425 = sbr.rel (%p423) target = $region64
        $region63: #{tpu_custom_call.1} parent=11 // pred_region
          _
        $region64: #{tpu_custom_call.1} parent=11 // pred_fallthru
          _
        // Predicated region
        $region65: #{tpu_custom_call.1} parent=11 // pred_check
          %p426 = pneg %p346
        $region66: #{tpu_custom_call.1} parent=11 // pred_check_branch
          %428 = sbr.rel (%p426) target = $region68
        $region67: #{tpu_custom_call.1} parent=11 // pred_region
          _
        $region68: #{tpu_custom_call.1} parent=11 // pred_fallthru
          _
      $region12: #{tpu_custom_call.1} parent=5 // pred_fallthru
        _
      %p429 = scmp.lt.s32.totalorder %s26, 2
      // Predicated region
      $region69: #{tpu_custom_call.1} parent=5 // pred_check
        %p430 = pneg %p429
      $region70: #{tpu_custom_call.1} parent=5 // pred_check_branch
        %432 = sbr.rel (%p430) target = $region72
      $region71: #{tpu_custom_call.1} parent=5 // pred_region
        // Predicated region
        $region73: #{tpu_custom_call.1} parent=71 // pred_check
          %p433 = pneg %p46
        $region74: #{tpu_custom_call.1} parent=71 // pred_check_branch
          %435 = sbr.rel (%p433) target = $region76
        $region75: #{tpu_custom_call.1} parent=71 // pred_region
          %s436 = smul.u32 2, %s26
          %p437 = scmp.lt.s32.totalorder %s436, 3
          %s438 = scalar_select %p437, %s436, 3
          %s439 = smul.addr %s438, 2
          %s440 = scalar_lea.vmem %s0, %s439
          %s441 = smul.u32 2, %s26
        $region76: #{tpu_custom_call.1} parent=71 // pred_fallthru
          _
      $region72: #{tpu_custom_call.1} parent=5 // pred_fallthru
        _
      %p442 = scmp.le.s32.totalorder 1, %s26
      %p443 = scmp.lt.s32.totalorder %s26, 3
      %p444 = pnand %p442, %p443
      %p445 = pneg %p444
      // Predicated region
      $region77: #{tpu_custom_call.1} parent=5 // pred_check
        _
      $region78: #{tpu_custom_call.1} parent=5 // pred_check_branch
        %447 = sbr.rel (%p444) target = $region80
      $region79: #{tpu_custom_call.1} parent=5 // pred_region
        %s448 = ssub.s32 %s26, 1
        %s449 = smul.u32 2, %s31
        %p450 = scmp.lt.s32.totalorder %s449, 3
        %s451 = scalar_select %p450, %s449, 3
        %s452 = smul.addr %s451, 2
        %s453 = scalar_lea.vmem %s0, %s452
        %p454 = pneg %p52
        %p455 = pneg %p49
        %p456 = pneg %p73
        %p457 = pneg %p70
        %p458 = pneg %p94
        %p459 = pneg %p91
        %p460 = pneg %p115
        %p461 = pneg %p112
        %p462 = pneg %p136
        %p463 = pneg %p133
        %p464 = pneg %p157
        %p465 = pneg %p154
        %p466 = pneg %p178
        %p467 = pneg %p175
        %p468 = pneg %p199
        %p469 = pneg %p196
        %p470 = pneg %p220
        %p471 = pneg %p217
        %p472 = pneg %p241
        %p473 = pneg %p238
        %p474 = pneg %p262
        %p475 = pneg %p259
        %p476 = pneg %p283
        %p477 = pneg %p280
        %p478 = pneg %p304
        %p479 = pneg %p301
        %p480 = pneg %p325
        %p481 = pneg %p322
        %p482 = pneg %p346
        %p483 = pneg %p343
        %p484 = pneg %p372
        %p485 = pneg %p369
        %s486 = sand.u32 %s359, 1
        %s487 = scalar_lea.sflag [#allocation4], %s486
        %s488 = sand.u32 %s359, 1
        %s489 = smul.addr %s488, 2
        %s490 = scalar_lea.vmem [#allocation3], %s489
        %s491 = smul.u32 2, %s31
        %p492 = scmp.lt.s32.totalorder %s491, 3
        %s493 = scalar_select %p492, %s491, 3
        %s494 = smul.addr %s493, 2
        %s495 = scalar_lea.vmem %s0, %s494
        %s496 = smul.u32 2, %s31
        %s497 = smul.u32 2, %s31
        %v498 = vld [vmem:[%s495] sm:$0xf]
        %v499 = vld [vmem:[%s1] sm:$0xff]
        %v500 = vld [vmem:[%s1 + $0x8] sm:$0xff]
        %v501 = vld [vmem:[%s1 + $0x10] sm:$0xff]
        %v502 = vld [vmem:[%s1 + $0x18] sm:$0xff]
        %v503 = vld [vmem:[%s1 + $0x20] sm:$0xff]
        %v504 = vld [vmem:[%s1 + $0x28] sm:$0xff]
        %v505 = vld [vmem:[%s1 + $0x30] sm:$0xff]
        %v506 = vld [vmem:[%s1 + $0x38] sm:$0xff]
        %v507 = vld [vmem:[%s1 + $0x40] sm:$0xff]
        %v508 = vld [vmem:[%s1 + $0x48] sm:$0xff]
        %v509 = vld [vmem:[%s1 + $0x50] sm:$0xff]
        %v510 = vld [vmem:[%s1 + $0x58] sm:$0xff]
        %v511 = vld [vmem:[%s1 + $0x60] sm:$0xff]
        %v512 = vld [vmem:[%s1 + $0x68] sm:$0xff]
        %v513 = vld [vmem:[%s1 + $0x70] sm:$0xff]
        %v514 = vld [vmem:[%s1 + $0x78] sm:$0xff]
        %v516 = vperm.slane %v498, 0
        %v517 = vperm.slane %v498, 2
        %v520 = vperm.slane %v516, 0
        %v521 = vperm.slane %v517, 0
        %523 = vset.pattern.permute.xlu0 0
        %524 = vperm.xlu0 %523, %v499
        %v525 = vpop.permute.xlu0 %524
        %528 = vset.pattern.permute.xlu0 0
        %529 = vperm.xlu0 %528, %v500
        %v530 = vpop.permute.xlu0 %529
        %533 = vset.pattern.permute.xlu0 0
        %534 = vperm.xlu0 %533, %v501
        %v535 = vpop.permute.xlu0 %534
        %538 = vset.pattern.permute.xlu0 0
        %539 = vperm.xlu0 %538, %v502
        %v540 = vpop.permute.xlu0 %539
        %543 = vset.pattern.permute.xlu0 0
        %544 = vperm.xlu0 %543, %v503
        %v545 = vpop.permute.xlu0 %544
        %548 = vset.pattern.permute.xlu0 0
        %549 = vperm.xlu0 %548, %v504
        %v550 = vpop.permute.xlu0 %549
        %553 = vset.pattern.permute.xlu0 0
        %554 = vperm.xlu0 %553, %v505
        %v555 = vpop.permute.xlu0 %554
        %558 = vset.pattern.permute.xlu0 0
        %559 = vperm.xlu0 %558, %v506
        %v560 = vpop.permute.xlu0 %559
        %563 = vset.pattern.permute.xlu0 0
        %564 = vperm.xlu0 %563, %v507
        %v565 = vpop.permute.xlu0 %564
        %568 = vset.pattern.permute.xlu0 0
        %569 = vperm.xlu0 %568, %v508
        %v570 = vpop.permute.xlu0 %569
        %573 = vset.pattern.permute.xlu0 0
        %574 = vperm.xlu0 %573, %v509
        %v575 = vpop.permute.xlu0 %574
        %578 = vset.pattern.permute.xlu0 0
        %579 = vperm.xlu0 %578, %v510
        %v580 = vpop.permute.xlu0 %579
        %583 = vset.pattern.permute.xlu0 0
        %584 = vperm.xlu0 %583, %v511
        %v585 = vpop.permute.xlu0 %584
        %588 = vset.pattern.permute.xlu0 0
        %589 = vperm.xlu0 %588, %v512
        %v590 = vpop.permute.xlu0 %589
        %593 = vset.pattern.permute.xlu0 0
        %594 = vperm.xlu0 %593, %v513
        %v595 = vpop.permute.xlu0 %594
        %598 = vset.pattern.permute.xlu0 0
        %599 = vperm.xlu0 %598, %v514
        %v600 = vpop.permute.xlu0 %599
        %v602 = vmul.f32 %v520, %v525
        %v603 = vmul.f32 %v521, %v525
        %v604 = vmul.f32 %v520, %v530
        %v605 = vmul.f32 %v521, %v530
        %v606 = vmul.f32 %v520, %v535
        %v607 = vmul.f32 %v521, %v535
        %v608 = vmul.f32 %v520, %v540
        %v609 = vmul.f32 %v521, %v540
        %v610 = vmul.f32 %v520, %v545
        %v611 = vmul.f32 %v521, %v545
        %v612 = vmul.f32 %v520, %v550
        %v613 = vmul.f32 %v521, %v550
        %v614 = vmul.f32 %v520, %v555
        %v615 = vmul.f32 %v521, %v555
        %v616 = vmul.f32 %v520, %v560
        %v617 = vmul.f32 %v521, %v560
        %v618 = vmul.f32 %v520, %v565
        %v619 = vmul.f32 %v521, %v565
        %v620 = vmul.f32 %v520, %v570
        %v621 = vmul.f32 %v521, %v570
        %v622 = vmul.f32 %v520, %v575
        %v623 = vmul.f32 %v521, %v575
        %v624 = vmul.f32 %v520, %v580
        %v625 = vmul.f32 %v521, %v580
        %v626 = vmul.f32 %v520, %v585
        %v627 = vmul.f32 %v521, %v585
        %v628 = vmul.f32 %v520, %v590
        %v629 = vmul.f32 %v521, %v590
        %v630 = vmul.f32 %v520, %v595
        %v631 = vmul.f32 %v521, %v595
        %v632 = vmul.f32 %v520, %v600
        %v633 = vmul.f32 %v521, %v600
        %v634 = vperm.slane %v498, 1
        %v635 = vperm.slane %v498, 3
        %v638 = vperm.slane %v634, 1
        %v639 = vperm.slane %v635, 1
        %640 = vset.pattern.permute.xlu0 1
        %641 = vperm.xlu0 %640, %v499
        %v642 = vpop.permute.xlu0 %641
        %644 = vset.pattern.permute.xlu0 1
        %645 = vperm.xlu0 %644, %v500
        %v646 = vpop.permute.xlu0 %645
        %648 = vset.pattern.permute.xlu0 1
        %649 = vperm.xlu0 %648, %v501
        %v650 = vpop.permute.xlu0 %649
        %652 = vset.pattern.permute.xlu0 1
        %653 = vperm.xlu0 %652, %v502
        %v654 = vpop.permute.xlu0 %653
        %656 = vset.pattern.permute.xlu0 1
        %657 = vperm.xlu0 %656, %v503
        %v658 = vpop.permute.xlu0 %657
        %660 = vset.pattern.permute.xlu0 1
        %661 = vperm.xlu0 %660, %v504
        %v662 = vpop.permute.xlu0 %661
        %664 = vset.pattern.permute.xlu0 1
        %665 = vperm.xlu0 %664, %v505
        %v666 = vpop.permute.xlu0 %665
        %668 = vset.pattern.permute.xlu0 1
        %669 = vperm.xlu0 %668, %v506
        %v670 = vpop.permute.xlu0 %669
        %672 = vset.pattern.permute.xlu0 1
        %673 = vperm.xlu0 %672, %v507
        %v674 = vpop.permute.xlu0 %673
        %676 = vset.pattern.permute.xlu0 1
        %677 = vperm.xlu0 %676, %v508
        %v678 = vpop.permute.xlu0 %677
        %680 = vset.pattern.permute.xlu0 1
        %681 = vperm.xlu0 %680, %v509
        %v682 = vpop.permute.xlu0 %681
        %684 = vset.pattern.permute.xlu0 1
        %685 = vperm.xlu0 %684, %v510
        %v686 = vpop.permute.xlu0 %685
        %688 = vset.pattern.permute.xlu0 1
        %689 = vperm.xlu0 %688, %v511
        %v690 = vpop.permute.xlu0 %689
        %692 = vset.pattern.permute.xlu0 1
        %693 = vperm.xlu0 %692, %v512
        %v694 = vpop.permute.xlu0 %693
        %696 = vset.pattern.permute.xlu0 1
        %697 = vperm.xlu0 %696, %v513
        %v698 = vpop.permute.xlu0 %697
        %700 = vset.pattern.permute.xlu0 1
        %701 = vperm.xlu0 %700, %v514
        %v702 = vpop.permute.xlu0 %701
        %v704 = vmul.f32 %v638, %v642
        %v705 = vmul.f32 %v639, %v642
        %v706 = vmul.f32 %v638, %v646
        %v707 = vmul.f32 %v639, %v646
        %v708 = vmul.f32 %v638, %v650
        %v709 = vmul.f32 %v639, %v650
        %v710 = vmul.f32 %v638, %v654
        %v711 = vmul.f32 %v639, %v654
        %v712 = vmul.f32 %v638, %v658
        %v713 = vmul.f32 %v639, %v658
        %v714 = vmul.f32 %v638, %v662
        %v715 = vmul.f32 %v639, %v662
        %v716 = vmul.f32 %v638, %v666
        %v717 = vmul.f32 %v639, %v666
        %v718 = vmul.f32 %v638, %v670
        %v719 = vmul.f32 %v639, %v670
        %v720 = vmul.f32 %v638, %v674
        %v721 = vmul.f32 %v639, %v674
        %v722 = vmul.f32 %v638, %v678
        %v723 = vmul.f32 %v639, %v678
        %v724 = vmul.f32 %v638, %v682
        %v725 = vmul.f32 %v639, %v682
        %v726 = vmul.f32 %v638, %v686
        %v727 = vmul.f32 %v639, %v686
        %v728 = vmul.f32 %v638, %v690
        %v729 = vmul.f32 %v639, %v690
        %v730 = vmul.f32 %v638, %v694
        %v731 = vmul.f32 %v639, %v694
        %v732 = vmul.f32 %v638, %v698
        %v733 = vmul.f32 %v639, %v698
        %v734 = vmul.f32 %v638, %v702
        %v735 = vmul.f32 %v639, %v702
        %v736 = vadd.f32 %v602, %v704
        %v737 = vadd.f32 %v603, %v705
        %v738 = vadd.f32 %v604, %v706
        %v739 = vadd.f32 %v605, %v707
        %v740 = vadd.f32 %v606, %v708
        %v741 = vadd.f32 %v607, %v709
        %v742 = vadd.f32 %v608, %v710
        %v743 = vadd.f32 %v609, %v711
        %v744 = vadd.f32 %v610, %v712
        %v745 = vadd.f32 %v611, %v713
        %v746 = vadd.f32 %v612, %v714
        %v747 = vadd.f32 %v613, %v715
        %v748 = vadd.f32 %v614, %v716
        %v749 = vadd.f32 %v615, %v717
        %v750 = vadd.f32 %v616, %v718
        %v751 = vadd.f32 %v617, %v719
        %v752 = vadd.f32 %v618, %v720
        %v753 = vadd.f32 %v619, %v721
        %v754 = vadd.f32 %v620, %v722
        %v755 = vadd.f32 %v621, %v723
        %v756 = vadd.f32 %v622, %v724
        %v757 = vadd.f32 %v623, %v725
        %v758 = vadd.f32 %v624, %v726
        %v759 = vadd.f32 %v625, %v727
        %v760 = vadd.f32 %v626, %v728
        %v761 = vadd.f32 %v627, %v729
        %v762 = vadd.f32 %v628, %v730
        %v763 = vadd.f32 %v629, %v731
        %v764 = vadd.f32 %v630, %v732
        %v765 = vadd.f32 %v631, %v733
        %v766 = vadd.f32 %v632, %v734
        %v767 = vadd.f32 %v633, %v735
        %v768 = vld [vmem:[%s2] sm:$0xff]
        %v769 = vld [vmem:[%s2 + $0x8] sm:$0xff]
        %v770 = vld [vmem:[%s2 + $0x10] sm:$0xff]
        %v771 = vld [vmem:[%s2 + $0x18] sm:$0xff]
        %v772 = vld [vmem:[%s2 + $0x20] sm:$0xff]
        %v773 = vld [vmem:[%s2 + $0x28] sm:$0xff]
        %v774 = vld [vmem:[%s2 + $0x30] sm:$0xff]
        %v775 = vld [vmem:[%s2 + $0x38] sm:$0xff]
        %v776 = vld [vmem:[%s2 + $0x40] sm:$0xff]
        %v777 = vld [vmem:[%s2 + $0x48] sm:$0xff]
        %v778 = vld [vmem:[%s2 + $0x50] sm:$0xff]
        %v779 = vld [vmem:[%s2 + $0x58] sm:$0xff]
        %v780 = vld [vmem:[%s2 + $0x60] sm:$0xff]
        %v781 = vld [vmem:[%s2 + $0x68] sm:$0xff]
        %v782 = vld [vmem:[%s2 + $0x70] sm:$0xff]
        %v783 = vld [vmem:[%s2 + $0x78] sm:$0xff]
        %785 = vset.pattern.permute.xlu0 0
        %786 = vperm.xlu0 %785, %v768
        %v787 = vpop.permute.xlu0 %786
        %790 = vset.pattern.permute.xlu0 0
        %791 = vperm.xlu0 %790, %v769
        %v792 = vpop.permute.xlu0 %791
        %795 = vset.pattern.permute.xlu0 0
        %796 = vperm.xlu0 %795, %v770
        %v797 = vpop.permute.xlu0 %796
        %800 = vset.pattern.permute.xlu0 0
        %801 = vperm.xlu0 %800, %v771
        %v802 = vpop.permute.xlu0 %801
        %805 = vset.pattern.permute.xlu0 0
        %806 = vperm.xlu0 %805, %v772
        %v807 = vpop.permute.xlu0 %806
        %810 = vset.pattern.permute.xlu0 0
        %811 = vperm.xlu0 %810, %v773
        %v812 = vpop.permute.xlu0 %811
        %815 = vset.pattern.permute.xlu0 0
        %816 = vperm.xlu0 %815, %v774
        %v817 = vpop.permute.xlu0 %816
        %820 = vset.pattern.permute.xlu0 0
        %821 = vperm.xlu0 %820, %v775
        %v822 = vpop.permute.xlu0 %821
        %825 = vset.pattern.permute.xlu0 0
        %826 = vperm.xlu0 %825, %v776
        %v827 = vpop.permute.xlu0 %826
        %830 = vset.pattern.permute.xlu0 0
        %831 = vperm.xlu0 %830, %v777
        %v832 = vpop.permute.xlu0 %831
        %835 = vset.pattern.permute.xlu0 0
        %836 = vperm.xlu0 %835, %v778
        %v837 = vpop.permute.xlu0 %836
        %840 = vset.pattern.permute.xlu0 0
        %841 = vperm.xlu0 %840, %v779
        %v842 = vpop.permute.xlu0 %841
        %845 = vset.pattern.permute.xlu0 0
        %846 = vperm.xlu0 %845, %v780
        %v847 = vpop.permute.xlu0 %846
        %850 = vset.pattern.permute.xlu0 0
        %851 = vperm.xlu0 %850, %v781
        %v852 = vpop.permute.xlu0 %851
        %855 = vset.pattern.permute.xlu0 0
        %856 = vperm.xlu0 %855, %v782
        %v857 = vpop.permute.xlu0 %856
        %860 = vset.pattern.permute.xlu0 0
        %861 = vperm.xlu0 %860, %v783
        %v862 = vpop.permute.xlu0 %861
        %v864 = vadd.f32 %v736, %v787
        %v865 = vadd.f32 %v737, %v787
        %v866 = vadd.f32 %v738, %v792
        %v867 = vadd.f32 %v739, %v792
        %v868 = vadd.f32 %v740, %v797
        %v869 = vadd.f32 %v741, %v797
        %v870 = vadd.f32 %v742, %v802
        %v871 = vadd.f32 %v743, %v802
        %v872 = vadd.f32 %v744, %v807
        %v873 = vadd.f32 %v745, %v807
        %v874 = vadd.f32 %v746, %v812
        %v875 = vadd.f32 %v747, %v812
        %v876 = vadd.f32 %v748, %v817
        %v877 = vadd.f32 %v749, %v817
        %v878 = vadd.f32 %v750, %v822
        %v879 = vadd.f32 %v751, %v822
        %v880 = vadd.f32 %v752, %v827
        %v881 = vadd.f32 %v753, %v827
        %v882 = vadd.f32 %v754, %v832
        %v883 = vadd.f32 %v755, %v832
        %v884 = vadd.f32 %v756, %v837
        %v885 = vadd.f32 %v757, %v837
        %v886 = vadd.f32 %v758, %v842
        %v887 = vadd.f32 %v759, %v842
        %v888 = vadd.f32 %v760, %v847
        %v889 = vadd.f32 %v761, %v847
        %v890 = vadd.f32 %v762, %v852
        %v891 = vadd.f32 %v763, %v852
        %v892 = vadd.f32 %v764, %v857
        %v893 = vadd.f32 %v765, %v857
        %v894 = vadd.f32 %v766, %v862
        %v895 = vadd.f32 %v767, %v862
        %vm896 = vcmp.gt.f32.partialorder %v864, 0.0
        %vm897 = vcmp.gt.f32.partialorder %v865, 0.0
        %vm898 = vcmp.gt.f32.partialorder %v866, 0.0
        %vm899 = vcmp.gt.f32.partialorder %v867, 0.0
        %vm900 = vcmp.gt.f32.partialorder %v868, 0.0
        %vm901 = vcmp.gt.f32.partialorder %v869, 0.0
        %vm902 = vcmp.gt.f32.partialorder %v870, 0.0
        %vm903 = vcmp.gt.f32.partialorder %v871, 0.0
        %vm904 = vcmp.gt.f32.partialorder %v872, 0.0
        %vm905 = vcmp.gt.f32.partialorder %v873, 0.0
        %vm906 = vcmp.gt.f32.partialorder %v874, 0.0
        %vm907 = vcmp.gt.f32.partialorder %v875, 0.0
        %vm908 = vcmp.gt.f32.partialorder %v876, 0.0
        %vm909 = vcmp.gt.f32.partialorder %v877, 0.0
        %vm910 = vcmp.gt.f32.partialorder %v878, 0.0
        %vm911 = vcmp.gt.f32.partialorder %v879, 0.0
        %vm912 = vcmp.gt.f32.partialorder %v880, 0.0
        %vm913 = vcmp.gt.f32.partialorder %v881, 0.0
        %vm914 = vcmp.gt.f32.partialorder %v882, 0.0
        %vm915 = vcmp.gt.f32.partialorder %v883, 0.0
        %vm916 = vcmp.gt.f32.partialorder %v884, 0.0
        %vm917 = vcmp.gt.f32.partialorder %v885, 0.0
        %vm918 = vcmp.gt.f32.partialorder %v886, 0.0
        %vm919 = vcmp.gt.f32.partialorder %v887, 0.0
        %vm920 = vcmp.gt.f32.partialorder %v888, 0.0
        %vm921 = vcmp.gt.f32.partialorder %v889, 0.0
        %vm922 = vcmp.gt.f32.partialorder %v890, 0.0
        %vm923 = vcmp.gt.f32.partialorder %v891, 0.0
        %vm924 = vcmp.gt.f32.partialorder %v892, 0.0
        %vm925 = vcmp.gt.f32.partialorder %v893, 0.0
        %vm926 = vcmp.gt.f32.partialorder %v894, 0.0
        %vm927 = vcmp.gt.f32.partialorder %v895, 0.0
        %v928 = vmul.f32 %v864, 0.2
        %v929 = vmul.f32 %v865, 0.2
        %v930 = vmul.f32 %v866, 0.2
        %v931 = vmul.f32 %v867, 0.2
        %v932 = vmul.f32 %v868, 0.2
        %v933 = vmul.f32 %v869, 0.2
        %v934 = vmul.f32 %v870, 0.2
        %v935 = vmul.f32 %v871, 0.2
        %v936 = vmul.f32 %v872, 0.2
        %v937 = vmul.f32 %v873, 0.2
        %v938 = vmul.f32 %v874, 0.2
        %v939 = vmul.f32 %v875, 0.2
        %v940 = vmul.f32 %v876, 0.2
        %v941 = vmul.f32 %v877, 0.2
        %v942 = vmul.f32 %v878, 0.2
        %v943 = vmul.f32 %v879, 0.2
        %v944 = vmul.f32 %v880, 0.2
        %v945 = vmul.f32 %v881, 0.2
        %v946 = vmul.f32 %v882, 0.2
        %v947 = vmul.f32 %v883, 0.2
        %v948 = vmul.f32 %v884, 0.2
        %v949 = vmul.f32 %v885, 0.2
        %v950 = vmul.f32 %v886, 0.2
        %v951 = vmul.f32 %v887, 0.2
        %v952 = vmul.f32 %v888, 0.2
        %v953 = vmul.f32 %v889, 0.2
        %v954 = vmul.f32 %v890, 0.2
        %v955 = vmul.f32 %v891, 0.2
        %v956 = vmul.f32 %v892, 0.2
        %v957 = vmul.f32 %v893, 0.2
        %v958 = vmul.f32 %v894, 0.2
        %v959 = vmul.f32 %v895, 0.2
        %v960 = vsel %vm896, %v864, %v928
        %v961 = vsel %vm897, %v865, %v929
        %v962 = vsel %vm898, %v866, %v930
        %v963 = vsel %vm899, %v867, %v931
        %v964 = vsel %vm900, %v868, %v932
        %v965 = vsel %vm901, %v869, %v933
        %v966 = vsel %vm902, %v870, %v934
        %v967 = vsel %vm903, %v871, %v935
        %v968 = vsel %vm904, %v872, %v936
        %v969 = vsel %vm905, %v873, %v937
        %v970 = vsel %vm906, %v874, %v938
        %v971 = vsel %vm907, %v875, %v939
        %v972 = vsel %vm908, %v876, %v940
        %v973 = vsel %vm909, %v877, %v941
        %v974 = vsel %vm910, %v878, %v942
        %v975 = vsel %vm911, %v879, %v943
        %v976 = vsel %vm912, %v880, %v944
        %v977 = vsel %vm913, %v881, %v945
        %v978 = vsel %vm914, %v882, %v946
        %v979 = vsel %vm915, %v883, %v947
        %v980 = vsel %vm916, %v884, %v948
        %v981 = vsel %vm917, %v885, %v949
        %v982 = vsel %vm918, %v886, %v950
        %v983 = vsel %vm919, %v887, %v951
        %v984 = vsel %vm920, %v888, %v952
        %v985 = vsel %vm921, %v889, %v953
        %v986 = vsel %vm922, %v890, %v954
        %v987 = vsel %vm923, %v891, %v955
        %v988 = vsel %vm924, %v892, %v956
        %v989 = vsel %vm925, %v893, %v957
        %v990 = vsel %vm926, %v894, %v958
        %v991 = vsel %vm927, %v895, %v959
        %v992 = vld [vmem:[%s3] sm:$0xf]
        %v993 = vld [vmem:[%s3 + $0x4] sm:$0xf]
        %v994 = vld [vmem:[%s3 + $0x8] sm:$0xf]
        %v995 = vld [vmem:[%s3 + $0xc] sm:$0xf]
        %v996 = vld [vmem:[%s3 + $0x10] sm:$0xf]
        %v997 = vld [vmem:[%s3 + $0x14] sm:$0xf]
        %v998 = vld [vmem:[%s3 + $0x18] sm:$0xf]
        %v999 = vld [vmem:[%s3 + $0x1c] sm:$0xf]
        %v1000 = vld [vmem:[%s3 + $0x20] sm:$0xf]
        %v1001 = vld [vmem:[%s3 + $0x24] sm:$0xf]
        %v1002 = vld [vmem:[%s3 + $0x28] sm:$0xf]
        %v1003 = vld [vmem:[%s3 + $0x2c] sm:$0xf]
        %v1004 = vld [vmem:[%s3 + $0x30] sm:$0xf]
        %v1005 = vld [vmem:[%s3 + $0x34] sm:$0xf]
        %v1006 = vld [vmem:[%s3 + $0x38] sm:$0xf]
        %v1007 = vld [vmem:[%s3 + $0x3c] sm:$0xf]
        %v1008 = vld [vmem:[%s3 + $0x40] sm:$0xf]
        %v1009 = vld [vmem:[%s3 + $0x44] sm:$0xf]
        %v1010 = vld [vmem:[%s3 + $0x48] sm:$0xf]
        %v1011 = vld [vmem:[%s3 + $0x4c] sm:$0xf]
        %v1012 = vld [vmem:[%s3 + $0x50] sm:$0xf]
        %v1013 = vld [vmem:[%s3 + $0x54] sm:$0xf]
        %v1014 = vld [vmem:[%s3 + $0x58] sm:$0xf]
        %v1015 = vld [vmem:[%s3 + $0x5c] sm:$0xf]
        %v1016 = vld [vmem:[%s3 + $0x60] sm:$0xf]
        %v1017 = vld [vmem:[%s3 + $0x64] sm:$0xf]
        %v1018 = vld [vmem:[%s3 + $0x68] sm:$0xf]
        %v1019 = vld [vmem:[%s3 + $0x6c] sm:$0xf]
        %v1020 = vld [vmem:[%s3 + $0x70] sm:$0xf]
        %v1021 = vld [vmem:[%s3 + $0x74] sm:$0xf]
        %v1022 = vld [vmem:[%s3 + $0x78] sm:$0xf]
        %v1023 = vld [vmem:[%s3 + $0x7c] sm:$0xf]
        %v1024 = vpack.c.bf16 %v962, %v960
        %v1025 = vpack.c.bf16 %v963, %v961
        %v1026 = vpack.c.bf16 %v966, %v964
        %v1027 = vpack.c.bf16 %v967, %v965
        %v1028 = vpack.c.bf16 %v970, %v968
        %v1029 = vpack.c.bf16 %v971, %v969
        %v1030 = vpack.c.bf16 %v974, %v972
        %v1031 = vpack.c.bf16 %v975, %v973
        %v1032 = vpack.c.bf16 %v978, %v976
        %v1033 = vpack.c.bf16 %v979, %v977
        %v1034 = vpack.c.bf16 %v982, %v980
        %v1035 = vpack.c.bf16 %v983, %v981
        %v1036 = vpack.c.bf16 %v986, %v984
        %v1037 = vpack.c.bf16 %v987, %v985
        %v1038 = vpack.c.bf16 %v990, %v988
        %v1039 = vpack.c.bf16 %v991, %v989
        %v1040 = vld [vmem:[%s4] sm:$0xff]
        %v1041 = vld [vmem:[%s4 + $0x8] sm:$0xff]
        %v1042 = vld [vmem:[%s4 + $0x10] sm:$0xff]
        %v1043 = vld [vmem:[%s4 + $0x18] sm:$0xff]
        %v1044 = vld [vmem:[%s4 + $0x20] sm:$0xff]
        %v1045 = vld [vmem:[%s4 + $0x28] sm:$0xff]
        %v1046 = vld [vmem:[%s4 + $0x30] sm:$0xff]
        %v1047 = vld [vmem:[%s4 + $0x38] sm:$0xff]
        %v1048 = vld [vmem:[%s4 + $0x40] sm:$0xff]
        %v1049 = vld [vmem:[%s4 + $0x48] sm:$0xff]
        %v1050 = vld [vmem:[%s4 + $0x50] sm:$0xff]
        %v1051 = vld [vmem:[%s4 + $0x58] sm:$0xff]
        %v1052 = vld [vmem:[%s4 + $0x60] sm:$0xff]
        %v1053 = vld [vmem:[%s4 + $0x68] sm:$0xff]
        %v1054 = vld [vmem:[%s4 + $0x70] sm:$0xff]
        %v1055 = vld [vmem:[%s4 + $0x78] sm:$0xff]
        %v1056 = vld [vmem:[%s4 + $0x80] sm:$0xff]
        %v1057 = vld [vmem:[%s4 + $0x88] sm:$0xff]
        %v1058 = vld [vmem:[%s4 + $0x90] sm:$0xff]
        %v1059 = vld [vmem:[%s4 + $0x98] sm:$0xff]
        %v1060 = vld [vmem:[%s4 + $0xa0] sm:$0xff]
        %v1061 = vld [vmem:[%s4 + $0xa8] sm:$0xff]
        %v1062 = vld [vmem:[%s4 + $0xb0] sm:$0xff]
        %v1063 = vld [vmem:[%s4 + $0xb8] sm:$0xff]
        %v1064 = vld [vmem:[%s4 + $0xc0] sm:$0xff]
        %v1065 = vld [vmem:[%s4 + $0xc8] sm:$0xff]
        %v1066 = vld [vmem:[%s4 + $0xd0] sm:$0xff]
        %v1067 = vld [vmem:[%s4 + $0xd8] sm:$0xff]
        %v1068 = vld [vmem:[%s4 + $0xe0] sm:$0xff]
        %v1069 = vld [vmem:[%s4 + $0xe8] sm:$0xff]
        %v1070 = vld [vmem:[%s4 + $0xf0] sm:$0xff]
        %v1071 = vld [vmem:[%s4 + $0xf8] sm:$0xff]
        %1073 = vset.pattern.permute.xlu0 0
        %1074 = vperm.xlu0 %1073, %v1040
        %v1075 = vpop.permute.xlu0 %1074
        %1078 = vset.pattern.permute.xlu0 0
        %1079 = vperm.xlu0 %1078, %v1041
        %v1080 = vpop.permute.xlu0 %1079
        %1083 = vset.pattern.permute.xlu0 0
        %1084 = vperm.xlu0 %1083, %v1042
        %v1085 = vpop.permute.xlu0 %1084
        %1088 = vset.pattern.permute.xlu0 0
        %1089 = vperm.xlu0 %1088, %v1043
        %v1090 = vpop.permute.xlu0 %1089
        %1093 = vset.pattern.permute.xlu0 0
        %1094 = vperm.xlu0 %1093, %v1044
        %v1095 = vpop.permute.xlu0 %1094
        %1098 = vset.pattern.permute.xlu0 0
        %1099 = vperm.xlu0 %1098, %v1045
        %v1100 = vpop.permute.xlu0 %1099
        %1103 = vset.pattern.permute.xlu0 0
        %1104 = vperm.xlu0 %1103, %v1046
        %v1105 = vpop.permute.xlu0 %1104
        %1108 = vset.pattern.permute.xlu0 0
        %1109 = vperm.xlu0 %1108, %v1047
        %v1110 = vpop.permute.xlu0 %1109
        %1113 = vset.pattern.permute.xlu0 0
        %1114 = vperm.xlu0 %1113, %v1048
        %v1115 = vpop.permute.xlu0 %1114
        %1118 = vset.pattern.permute.xlu0 0
        %1119 = vperm.xlu0 %1118, %v1049
        %v1120 = vpop.permute.xlu0 %1119
        %1123 = vset.pattern.permute.xlu0 0
        %1124 = vperm.xlu0 %1123, %v1050
        %v1125 = vpop.permute.xlu0 %1124
        %1128 = vset.pattern.permute.xlu0 0
        %1129 = vperm.xlu0 %1128, %v1051
        %v1130 = vpop.permute.xlu0 %1129
        %1133 = vset.pattern.permute.xlu0 0
        %1134 = vperm.xlu0 %1133, %v1052
        %v1135 = vpop.permute.xlu0 %1134
        %1138 = vset.pattern.permute.xlu0 0
        %1139 = vperm.xlu0 %1138, %v1053
        %v1140 = vpop.permute.xlu0 %1139
        %1143 = vset.pattern.permute.xlu0 0
        %1144 = vperm.xlu0 %1143, %v1054
        %v1145 = vpop.permute.xlu0 %1144
        %1148 = vset.pattern.permute.xlu0 0
        %1149 = vperm.xlu0 %1148, %v1055
        %v1150 = vpop.permute.xlu0 %1149
        %1153 = vset.pattern.permute.xlu0 0
        %1154 = vperm.xlu0 %1153, %v1056
        %v1155 = vpop.permute.xlu0 %1154
        %1158 = vset.pattern.permute.xlu0 0
        %1159 = vperm.xlu0 %1158, %v1057
        %v1160 = vpop.permute.xlu0 %1159
        %1163 = vset.pattern.permute.xlu0 0
        %1164 = vperm.xlu0 %1163, %v1058
        %v1165 = vpop.permute.xlu0 %1164
        %1168 = vset.pattern.permute.xlu0 0
        %1169 = vperm.xlu0 %1168, %v1059
        %v1170 = vpop.permute.xlu0 %1169
        %1173 = vset.pattern.permute.xlu0 0
        %1174 = vperm.xlu0 %1173, %v1060
        %v1175 = vpop.permute.xlu0 %1174
        %1178 = vset.pattern.permute.xlu0 0
        %1179 = vperm.xlu0 %1178, %v1061
        %v1180 = vpop.permute.xlu0 %1179
        %1183 = vset.pattern.permute.xlu0 0
        %1184 = vperm.xlu0 %1183, %v1062
        %v1185 = vpop.permute.xlu0 %1184
        %1188 = vset.pattern.permute.xlu0 0
        %1189 = vperm.xlu0 %1188, %v1063
        %v1190 = vpop.permute.xlu0 %1189
        %1193 = vset.pattern.permute.xlu0 0
        %1194 = vperm.xlu0 %1193, %v1064
        %v1195 = vpop.permute.xlu0 %1194
        %1198 = vset.pattern.permute.xlu0 0
        %1199 = vperm.xlu0 %1198, %v1065
        %v1200 = vpop.permute.xlu0 %1199
        %1203 = vset.pattern.permute.xlu0 0
        %1204 = vperm.xlu0 %1203, %v1066
        %v1205 = vpop.permute.xlu0 %1204
        %1208 = vset.pattern.permute.xlu0 0
        %1209 = vperm.xlu0 %1208, %v1067
        %v1210 = vpop.permute.xlu0 %1209
        %1213 = vset.pattern.permute.xlu0 0
        %1214 = vperm.xlu0 %1213, %v1068
        %v1215 = vpop.permute.xlu0 %1214
        %1218 = vset.pattern.permute.xlu0 0
        %1219 = vperm.xlu0 %1218, %v1069
        %v1220 = vpop.permute.xlu0 %1219
        %1223 = vset.pattern.permute.xlu0 0
        %1224 = vperm.xlu0 %1223, %v1070
        %v1225 = vpop.permute.xlu0 %1224
        %1228 = vset.pattern.permute.xlu0 0
        %1229 = vperm.xlu0 %1228, %v1071
        %v1230 = vpop.permute.xlu0 %1229
        %v1264 = vunpack.c.l.b16 %v992
        %v1265 = vunpack.c.l.b16 %v993
        %v1266 = vunpack.c.l.b16 %v994
        %v1267 = vunpack.c.l.b16 %v995
        %v1268 = vunpack.c.l.b16 %v996
        %v1269 = vunpack.c.l.b16 %v997
        %v1270 = vunpack.c.l.b16 %v998
        %v1271 = vunpack.c.l.b16 %v999
        %v1272 = vunpack.c.l.b16 %v1000
        %v1273 = vunpack.c.l.b16 %v1001
        %v1274 = vunpack.c.l.b16 %v1002
        %v1275 = vunpack.c.l.b16 %v1003
        %v1276 = vunpack.c.l.b16 %v1004
        %v1277 = vunpack.c.l.b16 %v1005
        %v1278 = vunpack.c.l.b16 %v1006
        %v1279 = vunpack.c.l.b16 %v1007
        %v1280 = vunpack.c.l.b16 %v1008
        %v1281 = vunpack.c.l.b16 %v1009
        %v1282 = vunpack.c.l.b16 %v1010
        %v1283 = vunpack.c.l.b16 %v1011
        %v1284 = vunpack.c.l.b16 %v1012
        %v1285 = vunpack.c.l.b16 %v1013
        %v1286 = vunpack.c.l.b16 %v1014
        %v1287 = vunpack.c.l.b16 %v1015
        %v1288 = vunpack.c.l.b16 %v1016
        %v1289 = vunpack.c.l.b16 %v1017
        %v1290 = vunpack.c.l.b16 %v1018
        %v1291 = vunpack.c.l.b16 %v1019
        %v1292 = vunpack.c.l.b16 %v1020
        %v1293 = vunpack.c.l.b16 %v1021
        %v1294 = vunpack.c.l.b16 %v1022
        %v1295 = vunpack.c.l.b16 %v1023
        %v1296 = vpack.c.b16 %v1265, %v1264
        %v1297 = vpack.c.b16 %v1267, %v1266
        %v1298 = vpack.c.b16 %v1269, %v1268
        %v1299 = vpack.c.b16 %v1271, %v1270
        %v1300 = vpack.c.b16 %v1273, %v1272
        %v1301 = vpack.c.b16 %v1275, %v1274
        %v1302 = vpack.c.b16 %v1277, %v1276
        %v1303 = vpack.c.b16 %v1279, %v1278
        %v1304 = vpack.c.b16 %v1281, %v1280
        %v1305 = vpack.c.b16 %v1283, %v1282
        %v1306 = vpack.c.b16 %v1285, %v1284
        %v1307 = vpack.c.b16 %v1287, %v1286
        %v1308 = vpack.c.b16 %v1289, %v1288
        %v1309 = vpack.c.b16 %v1291, %v1290
        %v1310 = vpack.c.b16 %v1293, %v1292
        %v1311 = vpack.c.b16 %v1295, %v1294
        %1328 = vmatpush.bf16.msra.mxu0 %v1038
        %1329 = vmatpush.bf16.msra.mxu0 %v1036
        %1330 = vmatpush.bf16.msra.mxu0 %v1034
        %1331 = vmatpush.bf16.msra.mxu0 %v1032
        %1332 = vmatpush.bf16.msra.mxu0 %v1030
        %1333 = vmatpush.bf16.msra.mxu0 %v1028
        %1334 = vmatpush.bf16.msra.mxu0 %v1026
        %1335 = vmatpush.bf16.msra.mxu0 %v1024
        %1336 = vmatmul.bf16.gmra.mxu0 %v1296
        %v1337 = vpop.f32.mrf.mxu0
        %v1338 = vadd.f32 %v1075, %v1337
        %v1339 = vpop.f32.mrf.mxu0
        %v1340 = vadd.f32 %v1080, %v1339
        %1341 = vmatmul.bf16.gmra.mxu0 %v1297
        %v1342 = vpop.f32.mrf.mxu0
        %v1343 = vadd.f32 %v1085, %v1342
        %v1344 = vpop.f32.mrf.mxu0
        %v1345 = vadd.f32 %v1090, %v1344
        %1346 = vmatmul.bf16.gmra.mxu0 %v1298
        %v1347 = vpop.f32.mrf.mxu0
        %v1348 = vadd.f32 %v1095, %v1347
        %v1349 = vpop.f32.mrf.mxu0
        %v1350 = vadd.f32 %v1100, %v1349
        %1351 = vmatmul.bf16.gmra.mxu0 %v1299
        %v1352 = vpop.f32.mrf.mxu0
        %v1353 = vadd.f32 %v1105, %v1352
        %v1354 = vpop.f32.mrf.mxu0
        %v1355 = vadd.f32 %v1110, %v1354
        %1356 = vmatmul.bf16.gmra.mxu0 %v1300
        %v1357 = vpop.f32.mrf.mxu0
        %v1358 = vadd.f32 %v1115, %v1357
        %v1359 = vpop.f32.mrf.mxu0
        %v1360 = vadd.f32 %v1120, %v1359
        %1361 = vmatmul.bf16.gmra.mxu0 %v1301
        %v1362 = vpop.f32.mrf.mxu0
        %v1363 = vadd.f32 %v1125, %v1362
        %v1364 = vpop.f32.mrf.mxu0
        %v1365 = vadd.f32 %v1130, %v1364
        %1366 = vmatmul.bf16.gmra.mxu0 %v1302
        %v1367 = vpop.f32.mrf.mxu0
        %v1368 = vadd.f32 %v1135, %v1367
        %v1369 = vpop.f32.mrf.mxu0
        %v1370 = vadd.f32 %v1140, %v1369
        %1371 = vmatmul.bf16.gmra.mxu0 %v1303
        %v1372 = vpop.f32.mrf.mxu0
        %v1373 = vadd.f32 %v1145, %v1372
        %v1374 = vpop.f32.mrf.mxu0
        %v1375 = vadd.f32 %v1150, %v1374
        %1376 = vmatmul.bf16.gmra.mxu0 %v1304
        %v1377 = vpop.f32.mrf.mxu0
        %v1378 = vadd.f32 %v1155, %v1377
        %v1379 = vpop.f32.mrf.mxu0
        %v1380 = vadd.f32 %v1160, %v1379
        %1381 = vmatmul.bf16.gmra.mxu0 %v1305
        %v1382 = vpop.f32.mrf.mxu0
        %v1383 = vadd.f32 %v1165, %v1382
        %v1384 = vpop.f32.mrf.mxu0
        %v1385 = vadd.f32 %v1170, %v1384
        %1386 = vmatmul.bf16.gmra.mxu0 %v1306
        %v1387 = vpop.f32.mrf.mxu0
        %v1388 = vadd.f32 %v1175, %v1387
        %v1389 = vpop.f32.mrf.mxu0
        %v1390 = vadd.f32 %v1180, %v1389
        %1391 = vmatmul.bf16.gmra.mxu0 %v1307
        %v1392 = vpop.f32.mrf.mxu0
        %v1393 = vadd.f32 %v1185, %v1392
        %v1394 = vpop.f32.mrf.mxu0
        %v1395 = vadd.f32 %v1190, %v1394
        %1396 = vmatmul.bf16.gmra.mxu0 %v1308
        %v1397 = vpop.f32.mrf.mxu0
        %v1398 = vadd.f32 %v1195, %v1397
        %v1399 = vpop.f32.mrf.mxu0
        %v1400 = vadd.f32 %v1200, %v1399
        %1401 = vmatmul.bf16.gmra.mxu0 %v1309
        %v1402 = vpop.f32.mrf.mxu0
        %v1403 = vadd.f32 %v1205, %v1402
        %v1404 = vpop.f32.mrf.mxu0
        %v1405 = vadd.f32 %v1210, %v1404
        %1406 = vmatmul.bf16.gmra.mxu0 %v1310
        %v1407 = vpop.f32.mrf.mxu0
        %v1408 = vadd.f32 %v1215, %v1407
        %v1409 = vpop.f32.mrf.mxu0
        %v1410 = vadd.f32 %v1220, %v1409
        %1411 = vmatmul.bf16.gmra.mxu0 %v1311
        %v1412 = vpop.f32.mrf.mxu0
        %v1413 = vadd.f32 %v1225, %v1412
        %v1414 = vpop.f32.mrf.mxu0
        %v1415 = vadd.f32 %v1230, %v1414
        %1416 = vdwg.mxu0
        %1417 = vmatpush.bf16.msra.mxu0 %v1039
        %1418 = vmatpush.bf16.msra.mxu0 %v1037
        %1419 = vmatpush.bf16.msra.mxu0 %v1035
        %1420 = vmatpush.bf16.msra.mxu0 %v1033
        %1421 = vmatpush.bf16.msra.mxu0 %v1031
        %1422 = vmatpush.bf16.msra.mxu0 %v1029
        %1423 = vmatpush.bf16.msra.mxu0 %v1027
        %1424 = vmatpush.bf16.msra.mxu0 %v1025
        %1425 = vmatmul.bf16.gmra.mxu0 %v1296
        %v1426 = vpop.f32.mrf.mxu0
        %v1427 = vadd.f32 %v1075, %v1426
        %v1428 = vpop.f32.mrf.mxu0
        %v1429 = vadd.f32 %v1080, %v1428
        %1430 = vmatmul.bf16.gmra.mxu0 %v1297
        %v1431 = vpop.f32.mrf.mxu0
        %v1432 = vadd.f32 %v1085, %v1431
        %v1433 = vpop.f32.mrf.mxu0
        %v1434 = vadd.f32 %v1090, %v1433
        %1435 = vmatmul.bf16.gmra.mxu0 %v1298
        %v1436 = vpop.f32.mrf.mxu0
        %v1437 = vadd.f32 %v1095, %v1436
        %v1438 = vpop.f32.mrf.mxu0
        %v1439 = vadd.f32 %v1100, %v1438
        %1440 = vmatmul.bf16.gmra.mxu0 %v1299
        %v1441 = vpop.f32.mrf.mxu0
        %v1442 = vadd.f32 %v1105, %v1441
        %v1443 = vpop.f32.mrf.mxu0
        %v1444 = vadd.f32 %v1110, %v1443
        %1445 = vmatmul.bf16.gmra.mxu0 %v1300
        %v1446 = vpop.f32.mrf.mxu0
        %v1447 = vadd.f32 %v1115, %v1446
        %v1448 = vpop.f32.mrf.mxu0
        %v1449 = vadd.f32 %v1120, %v1448
        %1450 = vmatmul.bf16.gmra.mxu0 %v1301
        %v1451 = vpop.f32.mrf.mxu0
        %v1452 = vadd.f32 %v1125, %v1451
        %v1453 = vpop.f32.mrf.mxu0
        %v1454 = vadd.f32 %v1130, %v1453
        %1455 = vmatmul.bf16.gmra.mxu0 %v1302
        %v1456 = vpop.f32.mrf.mxu0
        %v1457 = vadd.f32 %v1135, %v1456
        %v1458 = vpop.f32.mrf.mxu0
        %v1459 = vadd.f32 %v1140, %v1458
        %1460 = vmatmul.bf16.gmra.mxu0 %v1303
        %v1461 = vpop.f32.mrf.mxu0
        %v1462 = vadd.f32 %v1145, %v1461
        %v1463 = vpop.f32.mrf.mxu0
        %v1464 = vadd.f32 %v1150, %v1463
        %1465 = vmatmul.bf16.gmra.mxu0 %v1304
        %v1466 = vpop.f32.mrf.mxu0
        %v1467 = vadd.f32 %v1155, %v1466
        %v1468 = vpop.f32.mrf.mxu0
        %v1469 = vadd.f32 %v1160, %v1468
        %1470 = vmatmul.bf16.gmra.mxu0 %v1305
        %v1471 = vpop.f32.mrf.mxu0
        %v1472 = vadd.f32 %v1165, %v1471
        %v1473 = vpop.f32.mrf.mxu0
        %v1474 = vadd.f32 %v1170, %v1473
        %1475 = vmatmul.bf16.gmra.mxu0 %v1306
        %v1476 = vpop.f32.mrf.mxu0
        %v1477 = vadd.f32 %v1175, %v1476
        %v1478 = vpop.f32.mrf.mxu0
        %v1479 = vadd.f32 %v1180, %v1478
        %1480 = vmatmul.bf16.gmra.mxu0 %v1307
        %v1481 = vpop.f32.mrf.mxu0
        %v1482 = vadd.f32 %v1185, %v1481
        %v1483 = vpop.f32.mrf.mxu0
        %v1484 = vadd.f32 %v1190, %v1483
        %1485 = vmatmul.bf16.gmra.mxu0 %v1308
        %v1486 = vpop.f32.mrf.mxu0
        %v1487 = vadd.f32 %v1195, %v1486
        %v1488 = vpop.f32.mrf.mxu0
        %v1489 = vadd.f32 %v1200, %v1488
        %1490 = vmatmul.bf16.gmra.mxu0 %v1309
        %v1491 = vpop.f32.mrf.mxu0
        %v1492 = vadd.f32 %v1205, %v1491
        %v1493 = vpop.f32.mrf.mxu0
        %v1494 = vadd.f32 %v1210, %v1493
        %1495 = vmatmul.bf16.gmra.mxu0 %v1310
        %v1496 = vpop.f32.mrf.mxu0
        %v1497 = vadd.f32 %v1215, %v1496
        %v1498 = vpop.f32.mrf.mxu0
        %v1499 = vadd.f32 %v1220, %v1498
        %1500 = vmatmul.bf16.gmra.mxu0 %v1311
        %v1501 = vpop.f32.mrf.mxu0
        %v1502 = vadd.f32 %v1225, %v1501
        %v1503 = vpop.f32.mrf.mxu0
        %v1504 = vadd.f32 %v1230, %v1503
        %1505 = vdwg.mxu0
        %vm1506 = vcmp.gt.f32.partialorder %v1338, 0.0
        %vm1507 = vcmp.gt.f32.partialorder %v1427, 0.0
        %vm1508 = vcmp.gt.f32.partialorder %v1340, 0.0
        %vm1509 = vcmp.gt.f32.partialorder %v1429, 0.0
        %vm1510 = vcmp.gt.f32.partialorder %v1343, 0.0
        %vm1511 = vcmp.gt.f32.partialorder %v1432, 0.0
        %vm1512 = vcmp.gt.f32.partialorder %v1345, 0.0
        %vm1513 = vcmp.gt.f32.partialorder %v1434, 0.0
        %vm1514 = vcmp.gt.f32.partialorder %v1348, 0.0
        %vm1515 = vcmp.gt.f32.partialorder %v1437, 0.0
        %vm1516 = vcmp.gt.f32.partialorder %v1350, 0.0
        %vm1517 = vcmp.gt.f32.partialorder %v1439, 0.0
        %vm1518 = vcmp.gt.f32.partialorder %v1353, 0.0
        %vm1519 = vcmp.gt.f32.partialorder %v1442, 0.0
        %vm1520 = vcmp.gt.f32.partialorder %v1355, 0.0
        %vm1521 = vcmp.gt.f32.partialorder %v1444, 0.0
        %vm1522 = vcmp.gt.f32.partialorder %v1358, 0.0
        %vm1523 = vcmp.gt.f32.partialorder %v1447, 0.0
        %vm1524 = vcmp.gt.f32.partialorder %v1360, 0.0
        %vm1525 = vcmp.gt.f32.partialorder %v1449, 0.0
        %vm1526 = vcmp.gt.f32.partialorder %v1363, 0.0
        %vm1527 = vcmp.gt.f32.partialorder %v1452, 0.0
        %vm1528 = vcmp.gt.f32.partialorder %v1365, 0.0
        %vm1529 = vcmp.gt.f32.partialorder %v1454, 0.0
        %vm1530 = vcmp.gt.f32.partialorder %v1368, 0.0
        %vm1531 = vcmp.gt.f32.partialorder %v1457, 0.0
        %vm1532 = vcmp.gt.f32.partialorder %v1370, 0.0
        %vm1533 = vcmp.gt.f32.partialorder %v1459, 0.0
        %vm1534 = vcmp.gt.f32.partialorder %v1373, 0.0
        %vm1535 = vcmp.gt.f32.partialorder %v1462, 0.0
        %vm1536 = vcmp.gt.f32.partialorder %v1375, 0.0
        %vm1537 = vcmp.gt.f32.partialorder %v1464, 0.0
        %vm1538 = vcmp.gt.f32.partialorder %v1378, 0.0
        %vm1539 = vcmp.gt.f32.partialorder %v1467, 0.0
        %vm1540 = vcmp.gt.f32.partialorder %v1380, 0.0
        %vm1541 = vcmp.gt.f32.partialorder %v1469, 0.0
        %vm1542 = vcmp.gt.f32.partialorder %v1383, 0.0
        %vm1543 = vcmp.gt.f32.partialorder %v1472, 0.0
        %vm1544 = vcmp.gt.f32.partialorder %v1385, 0.0
        %vm1545 = vcmp.gt.f32.partialorder %v1474, 0.0
        %vm1546 = vcmp.gt.f32.partialorder %v1388, 0.0
        %vm1547 = vcmp.gt.f32.partialorder %v1477, 0.0
        %vm1548 = vcmp.gt.f32.partialorder %v1390, 0.0
        %vm1549 = vcmp.gt.f32.partialorder %v1479, 0.0
        %vm1550 = vcmp.gt.f32.partialorder %v1393, 0.0
        %vm1551 = vcmp.gt.f32.partialorder %v1482, 0.0
        %vm1552 = vcmp.gt.f32.partialorder %v1395, 0.0
        %vm1553 = vcmp.gt.f32.partialorder %v1484, 0.0
        %vm1554 = vcmp.gt.f32.partialorder %v1398, 0.0
        %vm1555 = vcmp.gt.f32.partialorder %v1487, 0.0
        %vm1556 = vcmp.gt.f32.partialorder %v1400, 0.0
        %vm1557 = vcmp.gt.f32.partialorder %v1489, 0.0
        %vm1558 = vcmp.gt.f32.partialorder %v1403, 0.0
        %vm1559 = vcmp.gt.f32.partialorder %v1492, 0.0
        %vm1560 = vcmp.gt.f32.partialorder %v1405, 0.0
        %vm1561 = vcmp.gt.f32.partialorder %v1494, 0.0
        %vm1562 = vcmp.gt.f32.partialorder %v1408, 0.0
        %vm1563 = vcmp.gt.f32.partialorder %v1497, 0.0
        %vm1564 = vcmp.gt.f32.partialorder %v1410, 0.0
        %vm1565 = vcmp.gt.f32.partialorder %v1499, 0.0
        %vm1566 = vcmp.gt.f32.partialorder %v1413, 0.0
        %vm1567 = vcmp.gt.f32.partialorder %v1502, 0.0
        %vm1568 = vcmp.gt.f32.partialorder %v1415, 0.0
        %vm1569 = vcmp.gt.f32.partialorder %v1504, 0.0
        %v1570 = vmul.f32 %v1338, 0.2
        %v1571 = vmul.f32 %v1427, 0.2
        %v1572 = vmul.f32 %v1340, 0.2
        %v1573 = vmul.f32 %v1429, 0.2
        %v1574 = vmul.f32 %v1343, 0.2
        %v1575 = vmul.f32 %v1432, 0.2
        %v1576 = vmul.f32 %v1345, 0.2
        %v1577 = vmul.f32 %v1434, 0.2
        %v1578 = vmul.f32 %v1348, 0.2
        %v1579 = vmul.f32 %v1437, 0.2
        %v1580 = vmul.f32 %v1350, 0.2
        %v1581 = vmul.f32 %v1439, 0.2
        %v1582 = vmul.f32 %v1353, 0.2
        %v1583 = vmul.f32 %v1442, 0.2
        %v1584 = vmul.f32 %v1355, 0.2
        %v1585 = vmul.f32 %v1444, 0.2
        %v1586 = vmul.f32 %v1358, 0.2
        %v1587 = vmul.f32 %v1447, 0.2
        %v1588 = vmul.f32 %v1360, 0.2
        %v1589 = vmul.f32 %v1449, 0.2
        %v1590 = vmul.f32 %v1363, 0.2
        %v1591 = vmul.f32 %v1452, 0.2
        %v1592 = vmul.f32 %v1365, 0.2
        %v1593 = vmul.f32 %v1454, 0.2
        %v1594 = vmul.f32 %v1368, 0.2
        %v1595 = vmul.f32 %v1457, 0.2
        %v1596 = vmul.f32 %v1370, 0.2
        %v1597 = vmul.f32 %v1459, 0.2
        %v1598 = vmul.f32 %v1373, 0.2
        %v1599 = vmul.f32 %v1462, 0.2
        %v1600 = vmul.f32 %v1375, 0.2
        %v1601 = vmul.f32 %v1464, 0.2
        %v1602 = vmul.f32 %v1378, 0.2
        %v1603 = vmul.f32 %v1467, 0.2
        %v1604 = vmul.f32 %v1380, 0.2
        %v1605 = vmul.f32 %v1469, 0.2
        %v1606 = vmul.f32 %v1383, 0.2
        %v1607 = vmul.f32 %v1472, 0.2
        %v1608 = vmul.f32 %v1385, 0.2
        %v1609 = vmul.f32 %v1474, 0.2
        %v1610 = vmul.f32 %v1388, 0.2
        %v1611 = vmul.f32 %v1477, 0.2
        %v1612 = vmul.f32 %v1390, 0.2
        %v1613 = vmul.f32 %v1479, 0.2
        %v1614 = vmul.f32 %v1393, 0.2
        %v1615 = vmul.f32 %v1482, 0.2
        %v1616 = vmul.f32 %v1395, 0.2
        %v1617 = vmul.f32 %v1484, 0.2
        %v1618 = vmul.f32 %v1398, 0.2
        %v1619 = vmul.f32 %v1487, 0.2
        %v1620 = vmul.f32 %v1400, 0.2
        %v1621 = vmul.f32 %v1489, 0.2
        %v1622 = vmul.f32 %v1403, 0.2
        %v1623 = vmul.f32 %v1492, 0.2
        %v1624 = vmul.f32 %v1405, 0.2
        %v1625 = vmul.f32 %v1494, 0.2
        %v1626 = vmul.f32 %v1408, 0.2
        %v1627 = vmul.f32 %v1497, 0.2
        %v1628 = vmul.f32 %v1410, 0.2
        %v1629 = vmul.f32 %v1499, 0.2
        %v1630 = vmul.f32 %v1413, 0.2
        %v1631 = vmul.f32 %v1502, 0.2
        %v1632 = vmul.f32 %v1415, 0.2
        %v1633 = vmul.f32 %v1504, 0.2
        %v1634 = vsel %vm1506, %v1338, %v1570
        %v1635 = vsel %vm1507, %v1427, %v1571
        %v1636 = vsel %vm1508, %v1340, %v1572
        %v1637 = vsel %vm1509, %v1429, %v1573
        %v1638 = vsel %vm1510, %v1343, %v1574
        %v1639 = vsel %vm1511, %v1432, %v1575
        %v1640 = vsel %vm1512, %v1345, %v1576
        %v1641 = vsel %vm1513, %v1434, %v1577
        %v1642 = vsel %vm1514, %v1348, %v1578
        %v1643 = vsel %vm1515, %v1437, %v1579
        %v1644 = vsel %vm1516, %v1350, %v1580
        %v1645 = vsel %vm1517, %v1439, %v1581
        %v1646 = vsel %vm1518, %v1353, %v1582
        %v1647 = vsel %vm1519, %v1442, %v1583
        %v1648 = vsel %vm1520, %v1355, %v1584
        %v1649 = vsel %vm1521, %v1444, %v1585
        %v1650 = vsel %vm1522, %v1358, %v1586
        %v1651 = vsel %vm1523, %v1447, %v1587
        %v1652 = vsel %vm1524, %v1360, %v1588
        %v1653 = vsel %vm1525, %v1449, %v1589
        %v1654 = vsel %vm1526, %v1363, %v1590
        %v1655 = vsel %vm1527, %v1452, %v1591
        %v1656 = vsel %vm1528, %v1365, %v1592
        %v1657 = vsel %vm1529, %v1454, %v1593
        %v1658 = vsel %vm1530, %v1368, %v1594
        %v1659 = vsel %vm1531, %v1457, %v1595
        %v1660 = vsel %vm1532, %v1370, %v1596
        %v1661 = vsel %vm1533, %v1459, %v1597
        %v1662 = vsel %vm1534, %v1373, %v1598
        %v1663 = vsel %vm1535, %v1462, %v1599
        %v1664 = vsel %vm1536, %v1375, %v1600
        %v1665 = vsel %vm1537, %v1464, %v1601
        %v1666 = vsel %vm1538, %v1378, %v1602
        %v1667 = vsel %vm1539, %v1467, %v1603
        %v1668 = vsel %vm1540, %v1380, %v1604
        %v1669 = vsel %vm1541, %v1469, %v1605
        %v1670 = vsel %vm1542, %v1383, %v1606
        %v1671 = vsel %vm1543, %v1472, %v1607
        %v1672 = vsel %vm1544, %v1385, %v1608
        %v1673 = vsel %vm1545, %v1474, %v1609
        %v1674 = vsel %vm1546, %v1388, %v1610
        %v1675 = vsel %vm1547, %v1477, %v1611
        %v1676 = vsel %vm1548, %v1390, %v1612
        %v1677 = vsel %vm1549, %v1479, %v1613
        %v1678 = vsel %vm1550, %v1393, %v1614
        %v1679 = vsel %vm1551, %v1482, %v1615
        %v1680 = vsel %vm1552, %v1395, %v1616
        %v1681 = vsel %vm1553, %v1484, %v1617
        %v1682 = vsel %vm1554, %v1398, %v1618
        %v1683 = vsel %vm1555, %v1487, %v1619
        %v1684 = vsel %vm1556, %v1400, %v1620
        %v1685 = vsel %vm1557, %v1489, %v1621
        %v1686 = vsel %vm1558, %v1403, %v1622
        %v1687 = vsel %vm1559, %v1492, %v1623
        %v1688 = vsel %vm1560, %v1405, %v1624
        %v1689 = vsel %vm1561, %v1494, %v1625
        %v1690 = vsel %vm1562, %v1408, %v1626
        %v1691 = vsel %vm1563, %v1497, %v1627
        %v1692 = vsel %vm1564, %v1410, %v1628
        %v1693 = vsel %vm1565, %v1499, %v1629
        %v1694 = vsel %vm1566, %v1413, %v1630
        %v1695 = vsel %vm1567, %v1502, %v1631
        %v1696 = vsel %vm1568, %v1415, %v1632
        %v1697 = vsel %vm1569, %v1504, %v1633
        %v1698 = vld [vmem:[%s5] sm:$0xff]
        %v1699 = vld [vmem:[%s5 + $0x8] sm:$0xff]
        %v1700 = vld [vmem:[%s5 + $0x10] sm:$0xff]
        %v1701 = vld [vmem:[%s5 + $0x18] sm:$0xff]
        %v1702 = vld [vmem:[%s5 + $0x20] sm:$0xff]
        %v1703 = vld [vmem:[%s5 + $0x28] sm:$0xff]
        %v1704 = vld [vmem:[%s5 + $0x30] sm:$0xff]
        %v1705 = vld [vmem:[%s5 + $0x38] sm:$0xff]
        %v1706 = vld [vmem:[%s5 + $0x40] sm:$0xff]
        %v1707 = vld [vmem:[%s5 + $0x48] sm:$0xff]
        %v1708 = vld [vmem:[%s5 + $0x50] sm:$0xff]
        %v1709 = vld [vmem:[%s5 + $0x58] sm:$0xff]
        %v1710 = vld [vmem:[%s5 + $0x60] sm:$0xff]
        %v1711 = vld [vmem:[%s5 + $0x68] sm:$0xff]
        %v1712 = vld [vmem:[%s5 + $0x70] sm:$0xff]
        %v1713 = vld [vmem:[%s5 + $0x78] sm:$0xff]
        %v1714 = vld [vmem:[%s5 + $0x80] sm:$0xff]
        %v1715 = vld [vmem:[%s5 + $0x88] sm:$0xff]
        %v1716 = vld [vmem:[%s5 + $0x90] sm:$0xff]
        %v1717 = vld [vmem:[%s5 + $0x98] sm:$0xff]
        %v1718 = vld [vmem:[%s5 + $0xa0] sm:$0xff]
        %v1719 = vld [vmem:[%s5 + $0xa8] sm:$0xff]
        %v1720 = vld [vmem:[%s5 + $0xb0] sm:$0xff]
        %v1721 = vld [vmem:[%s5 + $0xb8] sm:$0xff]
        %v1722 = vld [vmem:[%s5 + $0xc0] sm:$0xff]
        %v1723 = vld [vmem:[%s5 + $0xc8] sm:$0xff]
        %v1724 = vld [vmem:[%s5 + $0xd0] sm:$0xff]
        %v1725 = vld [vmem:[%s5 + $0xd8] sm:$0xff]
        %v1726 = vld [vmem:[%s5 + $0xe0] sm:$0xff]
        %v1727 = vld [vmem:[%s5 + $0xe8] sm:$0xff]
        %v1728 = vld [vmem:[%s5 + $0xf0] sm:$0xff]
        %v1729 = vld [vmem:[%s5 + $0xf8] sm:$0xff]
        %v1730 = vpack.c.bf16 %v1636, %v1634
        %v1731 = vpack.c.bf16 %v1637, %v1635
        %v1732 = vpack.c.bf16 %v1640, %v1638
        %v1733 = vpack.c.bf16 %v1641, %v1639
        %v1734 = vpack.c.bf16 %v1644, %v1642
        %v1735 = vpack.c.bf16 %v1645, %v1643
        %v1736 = vpack.c.bf16 %v1648, %v1646
        %v1737 = vpack.c.bf16 %v1649, %v1647
        %v1738 = vpack.c.bf16 %v1652, %v1650
        %v1739 = vpack.c.bf16 %v1653, %v1651
        %v1740 = vpack.c.bf16 %v1656, %v1654
        %v1741 = vpack.c.bf16 %v1657, %v1655
        %v1742 = vpack.c.bf16 %v1660, %v1658
        %v1743 = vpack.c.bf16 %v1661, %v1659
        %v1744 = vpack.c.bf16 %v1664, %v1662
        %v1745 = vpack.c.bf16 %v1665, %v1663
        %v1746 = vpack.c.bf16 %v1668, %v1666
        %v1747 = vpack.c.bf16 %v1669, %v1667
        %v1748 = vpack.c.bf16 %v1672, %v1670
        %v1749 = vpack.c.bf16 %v1673, %v1671
        %v1750 = vpack.c.bf16 %v1676, %v1674
        %v1751 = vpack.c.bf16 %v1677, %v1675
        %v1752 = vpack.c.bf16 %v1680, %v1678
        %v1753 = vpack.c.bf16 %v1681, %v1679
        %v1754 = vpack.c.bf16 %v1684, %v1682
        %v1755 = vpack.c.bf16 %v1685, %v1683
        %v1756 = vpack.c.bf16 %v1688, %v1686
        %v1757 = vpack.c.bf16 %v1689, %v1687
        %v1758 = vpack.c.bf16 %v1692, %v1690
        %v1759 = vpack.c.bf16 %v1693, %v1691
        %v1760 = vpack.c.bf16 %v1696, %v1694
        %v1761 = vpack.c.bf16 %v1697, %v1695
        %v1762 = vld [vmem:[%s6] sm:$0xff]
        %v1763 = vld [vmem:[%s6 + $0x8] sm:$0xff]
        %v1764 = vld [vmem:[%s6 + $0x10] sm:$0xff]
        %v1765 = vld [vmem:[%s6 + $0x18] sm:$0xff]
        %v1766 = vld [vmem:[%s6 + $0x20] sm:$0xff]
        %v1767 = vld [vmem:[%s6 + $0x28] sm:$0xff]
        %v1768 = vld [vmem:[%s6 + $0x30] sm:$0xff]
        %v1769 = vld [vmem:[%s6 + $0x38] sm:$0xff]
        %v1770 = vld [vmem:[%s6 + $0x40] sm:$0xff]
        %v1771 = vld [vmem:[%s6 + $0x48] sm:$0xff]
        %v1772 = vld [vmem:[%s6 + $0x50] sm:$0xff]
        %v1773 = vld [vmem:[%s6 + $0x58] sm:$0xff]
        %v1774 = vld [vmem:[%s6 + $0x60] sm:$0xff]
        %v1775 = vld [vmem:[%s6 + $0x68] sm:$0xff]
        %v1776 = vld [vmem:[%s6 + $0x70] sm:$0xff]
        %v1777 = vld [vmem:[%s6 + $0x78] sm:$0xff]
        %v1778 = vld [vmem:[%s6 + $0x80] sm:$0xff]
        %v1779 = vld [vmem:[%s6 + $0x88] sm:$0xff]
        %v1780 = vld [vmem:[%s6 + $0x90] sm:$0xff]
        %v1781 = vld [vmem:[%s6 + $0x98] sm:$0xff]
        %v1782 = vld [vmem:[%s6 + $0xa0] sm:$0xff]
        %v1783 = vld [vmem:[%s6 + $0xa8] sm:$0xff]
        %v1784 = vld [vmem:[%s6 + $0xb0] sm:$0xff]
        %v1785 = vld [vmem:[%s6 + $0xb8] sm:$0xff]
        %v1786 = vld [vmem:[%s6 + $0xc0] sm:$0xff]
        %v1787 = vld [vmem:[%s6 + $0xc8] sm:$0xff]
        %v1788 = vld [vmem:[%s6 + $0xd0] sm:$0xff]
        %v1789 = vld [vmem:[%s6 + $0xd8] sm:$0xff]
        %v1790 = vld [vmem:[%s6 + $0xe0] sm:$0xff]
        %v1791 = vld [vmem:[%s6 + $0xe8] sm:$0xff]
        %v1792 = vld [vmem:[%s6 + $0xf0] sm:$0xff]
        %v1793 = vld [vmem:[%s6 + $0xf8] sm:$0xff]
        %1795 = vset.pattern.permute.xlu0 0
        %1796 = vperm.xlu0 %1795, %v1762
        %v1797 = vpop.permute.xlu0 %1796
        %1800 = vset.pattern.permute.xlu0 0
        %1801 = vperm.xlu0 %1800, %v1763
        %v1802 = vpop.permute.xlu0 %1801
        %1805 = vset.pattern.permute.xlu0 0
        %1806 = vperm.xlu0 %1805, %v1764
        %v1807 = vpop.permute.xlu0 %1806
        %1810 = vset.pattern.permute.xlu0 0
        %1811 = vperm.xlu0 %1810, %v1765
        %v1812 = vpop.permute.xlu0 %1811
        %1815 = vset.pattern.permute.xlu0 0
        %1816 = vperm.xlu0 %1815, %v1766
        %v1817 = vpop.permute.xlu0 %1816
        %1820 = vset.pattern.permute.xlu0 0
        %1821 = vperm.xlu0 %1820, %v1767
        %v1822 = vpop.permute.xlu0 %1821
        %1825 = vset.pattern.permute.xlu0 0
        %1826 = vperm.xlu0 %1825, %v1768
        %v1827 = vpop.permute.xlu0 %1826
        %1830 = vset.pattern.permute.xlu0 0
        %1831 = vperm.xlu0 %1830, %v1769
        %v1832 = vpop.permute.xlu0 %1831
        %1835 = vset.pattern.permute.xlu0 0
        %1836 = vperm.xlu0 %1835, %v1770
        %v1837 = vpop.permute.xlu0 %1836
        %1840 = vset.pattern.permute.xlu0 0
        %1841 = vperm.xlu0 %1840, %v1771
        %v1842 = vpop.permute.xlu0 %1841
        %1845 = vset.pattern.permute.xlu0 0
        %1846 = vperm.xlu0 %1845, %v1772
        %v1847 = vpop.permute.xlu0 %1846
        %1850 = vset.pattern.permute.xlu0 0
        %1851 = vperm.xlu0 %1850, %v1773
        %v1852 = vpop.permute.xlu0 %1851
        %1855 = vset.pattern.permute.xlu0 0
        %1856 = vperm.xlu0 %1855, %v1774
        %v1857 = vpop.permute.xlu0 %1856
        %1860 = vset.pattern.permute.xlu0 0
        %1861 = vperm.xlu0 %1860, %v1775
        %v1862 = vpop.permute.xlu0 %1861
        %1865 = vset.pattern.permute.xlu0 0
        %1866 = vperm.xlu0 %1865, %v1776
        %v1867 = vpop.permute.xlu0 %1866
        %1870 = vset.pattern.permute.xlu0 0
        %1871 = vperm.xlu0 %1870, %v1777
        %v1872 = vpop.permute.xlu0 %1871
        %1875 = vset.pattern.permute.xlu0 0
        %1876 = vperm.xlu0 %1875, %v1778
        %v1877 = vpop.permute.xlu0 %1876
        %1880 = vset.pattern.permute.xlu0 0
        %1881 = vperm.xlu0 %1880, %v1779
        %v1882 = vpop.permute.xlu0 %1881
        %1885 = vset.pattern.permute.xlu0 0
        %1886 = vperm.xlu0 %1885, %v1780
        %v1887 = vpop.permute.xlu0 %1886
        %1890 = vset.pattern.permute.xlu0 0
        %1891 = vperm.xlu0 %1890, %v1781
        %v1892 = vpop.permute.xlu0 %1891
        %1895 = vset.pattern.permute.xlu0 0
        %1896 = vperm.xlu0 %1895, %v1782
        %v1897 = vpop.permute.xlu0 %1896
        %1900 = vset.pattern.permute.xlu0 0
        %1901 = vperm.xlu0 %1900, %v1783
        %v1902 = vpop.permute.xlu0 %1901
        %1905 = vset.pattern.permute.xlu0 0
        %1906 = vperm.xlu0 %1905, %v1784
        %v1907 = vpop.permute.xlu0 %1906
        %1910 = vset.pattern.permute.xlu0 0
        %1911 = vperm.xlu0 %1910, %v1785
        %v1912 = vpop.permute.xlu0 %1911
        %1915 = vset.pattern.permute.xlu0 0
        %1916 = vperm.xlu0 %1915, %v1786
        %v1917 = vpop.permute.xlu0 %1916
        %1920 = vset.pattern.permute.xlu0 0
        %1921 = vperm.xlu0 %1920, %v1787
        %v1922 = vpop.permute.xlu0 %1921
        %1925 = vset.pattern.permute.xlu0 0
        %1926 = vperm.xlu0 %1925, %v1788
        %v1927 = vpop.permute.xlu0 %1926
        %1930 = vset.pattern.permute.xlu0 0
        %1931 = vperm.xlu0 %1930, %v1789
        %v1932 = vpop.permute.xlu0 %1931
        %1935 = vset.pattern.permute.xlu0 0
        %1936 = vperm.xlu0 %1935, %v1790
        %v1937 = vpop.permute.xlu0 %1936
        %1940 = vset.pattern.permute.xlu0 0
        %1941 = vperm.xlu0 %1940, %v1791
        %v1942 = vpop.permute.xlu0 %1941
        %1945 = vset.pattern.permute.xlu0 0
        %1946 = vperm.xlu0 %1945, %v1792
        %v1947 = vpop.permute.xlu0 %1946
        %1950 = vset.pattern.permute.xlu0 0
        %1951 = vperm.xlu0 %1950, %v1793
        %v1952 = vpop.permute.xlu0 %1951
        %v1986 = vunpack.c.l.b16 %v1698
        %v1987 = vunpack.c.h.b16 %v1698
        %v1988 = vunpack.c.l.b16 %v1699
        %v1989 = vunpack.c.h.b16 %v1699
        %v1990 = vunpack.c.l.b16 %v1700
        %v1991 = vunpack.c.h.b16 %v1700
        %v1992 = vunpack.c.l.b16 %v1701
        %v1993 = vunpack.c.h.b16 %v1701
        %v1994 = vunpack.c.l.b16 %v1702
        %v1995 = vunpack.c.h.b16 %v1702
        %v1996 = vunpack.c.l.b16 %v1703
        %v1997 = vunpack.c.h.b16 %v1703
        %v1998 = vunpack.c.l.b16 %v1704
        %v1999 = vunpack.c.h.b16 %v1704
        %v2000 = vunpack.c.l.b16 %v1705
        %v2001 = vunpack.c.h.b16 %v1705
        %v2002 = vunpack.c.l.b16 %v1706
        %v2003 = vunpack.c.h.b16 %v1706
        %v2004 = vunpack.c.l.b16 %v1707
        %v2005 = vunpack.c.h.b16 %v1707
        %v2006 = vunpack.c.l.b16 %v1708
        %v2007 = vunpack.c.h.b16 %v1708
        %v2008 = vunpack.c.l.b16 %v1709
        %v2009 = vunpack.c.h.b16 %v1709
        %v2010 = vunpack.c.l.b16 %v1710
        %v2011 = vunpack.c.h.b16 %v1710
        %v2012 = vunpack.c.l.b16 %v1711
        %v2013 = vunpack.c.h.b16 %v1711
        %v2014 = vunpack.c.l.b16 %v1712
        %v2015 = vunpack.c.h.b16 %v1712
        %v2016 = vunpack.c.l.b16 %v1713
        %v2017 = vunpack.c.h.b16 %v1713
        %v2018 = vunpack.c.l.b16 %v1714
        %v2019 = vunpack.c.h.b16 %v1714
        %v2020 = vunpack.c.l.b16 %v1715
        %v2021 = vunpack.c.h.b16 %v1715
        %v2022 = vunpack.c.l.b16 %v1716
        %v2023 = vunpack.c.h.b16 %v1716
        %v2024 = vunpack.c.l.b16 %v1717
        %v2025 = vunpack.c.h.b16 %v1717
        %v2026 = vunpack.c.l.b16 %v1718
        %v2027 = vunpack.c.h.b16 %v1718
        %v2028 = vunpack.c.l.b16 %v1719
        %v2029 = vunpack.c.h.b16 %v1719
        %v2030 = vunpack.c.l.b16 %v1720
        %v2031 = vunpack.c.h.b16 %v1720
        %v2032 = vunpack.c.l.b16 %v1721
        %v2033 = vunpack.c.h.b16 %v1721
        %v2034 = vunpack.c.l.b16 %v1722
        %v2035 = vunpack.c.h.b16 %v1722
        %v2036 = vunpack.c.l.b16 %v1723
        %v2037 = vunpack.c.h.b16 %v1723
        %v2038 = vunpack.c.l.b16 %v1724
        %v2039 = vunpack.c.h.b16 %v1724
        %v2040 = vunpack.c.l.b16 %v1725
        %v2041 = vunpack.c.h.b16 %v1725
        %v2042 = vunpack.c.l.b16 %v1726
        %v2043 = vunpack.c.h.b16 %v1726
        %v2044 = vunpack.c.l.b16 %v1727
        %v2045 = vunpack.c.h.b16 %v1727
        %v2046 = vunpack.c.l.b16 %v1728
        %v2047 = vunpack.c.h.b16 %v1728
        %v2048 = vunpack.c.l.b16 %v1729
        %v2049 = vunpack.c.h.b16 %v1729
        %v2050 = vpack.c.b16 %v1988, %v1986
        %v2051 = vpack.c.b16 %v1989, %v1987
        %v2052 = vpack.c.b16 %v1992, %v1990
        %v2053 = vpack.c.b16 %v1993, %v1991
        %v2054 = vpack.c.b16 %v1996, %v1994
        %v2055 = vpack.c.b16 %v1997, %v1995
        %v2056 = vpack.c.b16 %v2000, %v1998
        %v2057 = vpack.c.b16 %v2001, %v1999
        %v2058 = vpack.c.b16 %v2004, %v2002
        %v2059 = vpack.c.b16 %v2005, %v2003
        %v2060 = vpack.c.b16 %v2008, %v2006
        %v2061 = vpack.c.b16 %v2009, %v2007
        %v2062 = vpack.c.b16 %v2012, %v2010
        %v2063 = vpack.c.b16 %v2013, %v2011
        %v2064 = vpack.c.b16 %v2016, %v2014
        %v2065 = vpack.c.b16 %v2017, %v2015
        %v2066 = vpack.c.b16 %v2020, %v2018
        %v2067 = vpack.c.b16 %v2021, %v2019
        %v2068 = vpack.c.b16 %v2024, %v2022
        %v2069 = vpack.c.b16 %v2025, %v2023
        %v2070 = vpack.c.b16 %v2028, %v2026
        %v2071 = vpack.c.b16 %v2029, %v2027
        %v2072 = vpack.c.b16 %v2032, %v2030
        %v2073 = vpack.c.b16 %v2033, %v2031
        %v2074 = vpack.c.b16 %v2036, %v2034
        %v2075 = vpack.c.b16 %v2037, %v2035
        %v2076 = vpack.c.b16 %v2040, %v2038
        %v2077 = vpack.c.b16 %v2041, %v2039
        %v2078 = vpack.c.b16 %v2044, %v2042
        %v2079 = vpack.c.b16 %v2045, %v2043
        %v2080 = vpack.c.b16 %v2048, %v2046
        %v2081 = vpack.c.b16 %v2049, %v2047
        %2114 = vmatpush.bf16.msra.mxu0 %v1744
        %2115 = vmatpush.bf16.msra.mxu0 %v1742
        %2116 = vmatpush.bf16.msra.mxu0 %v1740
        %2117 = vmatpush.bf16.msra.mxu0 %v1738
        %2118 = vmatpush.bf16.msra.mxu0 %v1736
        %2119 = vmatpush.bf16.msra.mxu0 %v1734
        %2120 = vmatpush.bf16.msra.mxu0 %v1732
        %2121 = vmatpush.bf16.msra.mxu0 %v1730
        %2122 = vmatmul.bf16.gmra.mxu0 %v2050
        %v2123 = vpop.f32.mrf.mxu0
        %v2124 = vadd.f32 %v1797, %v2123
        %v2125 = vpop.f32.mrf.mxu0
        %v2126 = vadd.f32 %v1802, %v2125
        %2127 = vmatmul.bf16.gmra.mxu0 %v2052
        %v2128 = vpop.f32.mrf.mxu0
        %v2129 = vadd.f32 %v1807, %v2128
        %v2130 = vpop.f32.mrf.mxu0
        %v2131 = vadd.f32 %v1812, %v2130
        %2132 = vmatmul.bf16.gmra.mxu0 %v2054
        %v2133 = vpop.f32.mrf.mxu0
        %v2134 = vadd.f32 %v1817, %v2133
        %v2135 = vpop.f32.mrf.mxu0
        %v2136 = vadd.f32 %v1822, %v2135
        %2137 = vmatmul.bf16.gmra.mxu0 %v2056
        %v2138 = vpop.f32.mrf.mxu0
        %v2139 = vadd.f32 %v1827, %v2138
        %v2140 = vpop.f32.mrf.mxu0
        %v2141 = vadd.f32 %v1832, %v2140
        %2142 = vmatmul.bf16.gmra.mxu0 %v2058
        %v2143 = vpop.f32.mrf.mxu0
        %v2144 = vadd.f32 %v1837, %v2143
        %v2145 = vpop.f32.mrf.mxu0
        %v2146 = vadd.f32 %v1842, %v2145
        %2147 = vmatmul.bf16.gmra.mxu0 %v2060
        %v2148 = vpop.f32.mrf.mxu0
        %v2149 = vadd.f32 %v1847, %v2148
        %v2150 = vpop.f32.mrf.mxu0
        %v2151 = vadd.f32 %v1852, %v2150
        %2152 = vmatmul.bf16.gmra.mxu0 %v2062
        %v2153 = vpop.f32.mrf.mxu0
        %v2154 = vadd.f32 %v1857, %v2153
        %v2155 = vpop.f32.mrf.mxu0
        %v2156 = vadd.f32 %v1862, %v2155
        %2157 = vmatmul.bf16.gmra.mxu0 %v2064
        %v2158 = vpop.f32.mrf.mxu0
        %v2159 = vadd.f32 %v1867, %v2158
        %v2160 = vpop.f32.mrf.mxu0
        %v2161 = vadd.f32 %v1872, %v2160
        %2162 = vmatmul.bf16.gmra.mxu0 %v2066
        %v2163 = vpop.f32.mrf.mxu0
        %v2164 = vadd.f32 %v1877, %v2163
        %v2165 = vpop.f32.mrf.mxu0
        %v2166 = vadd.f32 %v1882, %v2165
        %2167 = vmatmul.bf16.gmra.mxu0 %v2068
        %v2168 = vpop.f32.mrf.mxu0
        %v2169 = vadd.f32 %v1887, %v2168
        %v2170 = vpop.f32.mrf.mxu0
        %v2171 = vadd.f32 %v1892, %v2170
        %2172 = vmatmul.bf16.gmra.mxu0 %v2070
        %v2173 = vpop.f32.mrf.mxu0
        %v2174 = vadd.f32 %v1897, %v2173
        %v2175 = vpop.f32.mrf.mxu0
        %v2176 = vadd.f32 %v1902, %v2175
        %2177 = vmatmul.bf16.gmra.mxu0 %v2072
        %v2178 = vpop.f32.mrf.mxu0
        %v2179 = vadd.f32 %v1907, %v2178
        %v2180 = vpop.f32.mrf.mxu0
        %v2181 = vadd.f32 %v1912, %v2180
        %2182 = vmatmul.bf16.gmra.mxu0 %v2074
        %v2183 = vpop.f32.mrf.mxu0
        %v2184 = vadd.f32 %v1917, %v2183
        %v2185 = vpop.f32.mrf.mxu0
        %v2186 = vadd.f32 %v1922, %v2185
        %2187 = vmatmul.bf16.gmra.mxu0 %v2076
        %v2188 = vpop.f32.mrf.mxu0
        %v2189 = vadd.f32 %v1927, %v2188
        %v2190 = vpop.f32.mrf.mxu0
        %v2191 = vadd.f32 %v1932, %v2190
        %2192 = vmatmul.bf16.gmra.mxu0 %v2078
        %v2193 = vpop.f32.mrf.mxu0
        %v2194 = vadd.f32 %v1937, %v2193
        %v2195 = vpop.f32.mrf.mxu0
        %v2196 = vadd.f32 %v1942, %v2195
        %2197 = vmatmul.bf16.gmra.mxu0 %v2080
        %v2198 = vpop.f32.mrf.mxu0
        %v2199 = vadd.f32 %v1947, %v2198
        %v2200 = vpop.f32.mrf.mxu0
        %v2201 = vadd.f32 %v1952, %v2200
        %2202 = vdwg.mxu0
        %2203 = vmatpush.bf16.msra.mxu0 %v1760
        %2204 = vmatpush.bf16.msra.mxu0 %v1758
        %2205 = vmatpush.bf16.msra.mxu0 %v1756
        %2206 = vmatpush.bf16.msra.mxu0 %v1754
        %2207 = vmatpush.bf16.msra.mxu0 %v1752
        %2208 = vmatpush.bf16.msra.mxu0 %v1750
        %2209 = vmatpush.bf16.msra.mxu0 %v1748
        %2210 = vmatpush.bf16.msra.mxu0 %v1746
        %2211 = vmatmul.bf16.gmra.mxu0 %v2051
        %v2212 = vpop.f32.mrf.mxu0
        %v2213 = vadd.f32 %v2124, %v2212
        %v2214 = vpop.f32.mrf.mxu0
        %v2215 = vadd.f32 %v2126, %v2214
        %2216 = vmatmul.bf16.gmra.mxu0 %v2053
        %v2217 = vpop.f32.mrf.mxu0
        %v2218 = vadd.f32 %v2129, %v2217
        %v2219 = vpop.f32.mrf.mxu0
        %v2220 = vadd.f32 %v2131, %v2219
        %2221 = vmatmul.bf16.gmra.mxu0 %v2055
        %v2222 = vpop.f32.mrf.mxu0
        %v2223 = vadd.f32 %v2134, %v2222
        %v2224 = vpop.f32.mrf.mxu0
        %v2225 = vadd.f32 %v2136, %v2224
        %2226 = vmatmul.bf16.gmra.mxu0 %v2057
        %v2227 = vpop.f32.mrf.mxu0
        %v2228 = vadd.f32 %v2139, %v2227
        %v2229 = vpop.f32.mrf.mxu0
        %v2230 = vadd.f32 %v2141, %v2229
        %2231 = vmatmul.bf16.gmra.mxu0 %v2059
        %v2232 = vpop.f32.mrf.mxu0
        %v2233 = vadd.f32 %v2144, %v2232
        %v2234 = vpop.f32.mrf.mxu0
        %v2235 = vadd.f32 %v2146, %v2234
        %2236 = vmatmul.bf16.gmra.mxu0 %v2061
        %v2237 = vpop.f32.mrf.mxu0
        %v2238 = vadd.f32 %v2149, %v2237
        %v2239 = vpop.f32.mrf.mxu0
        %v2240 = vadd.f32 %v2151, %v2239
        %2241 = vmatmul.bf16.gmra.mxu0 %v2063
        %v2242 = vpop.f32.mrf.mxu0
        %v2243 = vadd.f32 %v2154, %v2242
        %v2244 = vpop.f32.mrf.mxu0
        %v2245 = vadd.f32 %v2156, %v2244
        %2246 = vmatmul.bf16.gmra.mxu0 %v2065
        %v2247 = vpop.f32.mrf.mxu0
        %v2248 = vadd.f32 %v2159, %v2247
        %v2249 = vpop.f32.mrf.mxu0
        %v2250 = vadd.f32 %v2161, %v2249
        %2251 = vmatmul.bf16.gmra.mxu0 %v2067
        %v2252 = vpop.f32.mrf.mxu0
        %v2253 = vadd.f32 %v2164, %v2252
        %v2254 = vpop.f32.mrf.mxu0
        %v2255 = vadd.f32 %v2166, %v2254
        %2256 = vmatmul.bf16.gmra.mxu0 %v2069
        %v2257 = vpop.f32.mrf.mxu0
        %v2258 = vadd.f32 %v2169, %v2257
        %v2259 = vpop.f32.mrf.mxu0
        %v2260 = vadd.f32 %v2171, %v2259
        %2261 = vmatmul.bf16.gmra.mxu0 %v2071
        %v2262 = vpop.f32.mrf.mxu0
        %v2263 = vadd.f32 %v2174, %v2262
        %v2264 = vpop.f32.mrf.mxu0
        %v2265 = vadd.f32 %v2176, %v2264
        %2266 = vmatmul.bf16.gmra.mxu0 %v2073
        %v2267 = vpop.f32.mrf.mxu0
        %v2268 = vadd.f32 %v2179, %v2267
        %v2269 = vpop.f32.mrf.mxu0
        %v2270 = vadd.f32 %v2181, %v2269
        %2271 = vmatmul.bf16.gmra.mxu0 %v2075
        %v2272 = vpop.f32.mrf.mxu0
        %v2273 = vadd.f32 %v2184, %v2272
        %v2274 = vpop.f32.mrf.mxu0
        %v2275 = vadd.f32 %v2186, %v2274
        %2276 = vmatmul.bf16.gmra.mxu0 %v2077
        %v2277 = vpop.f32.mrf.mxu0
        %v2278 = vadd.f32 %v2189, %v2277
        %v2279 = vpop.f32.mrf.mxu0
        %v2280 = vadd.f32 %v2191, %v2279
        %2281 = vmatmul.bf16.gmra.mxu0 %v2079
        %v2282 = vpop.f32.mrf.mxu0
        %v2283 = vadd.f32 %v2194, %v2282
        %v2284 = vpop.f32.mrf.mxu0
        %v2285 = vadd.f32 %v2196, %v2284
        %2286 = vmatmul.bf16.gmra.mxu0 %v2081
        %v2287 = vpop.f32.mrf.mxu0
        %v2288 = vadd.f32 %v2199, %v2287
        %v2289 = vpop.f32.mrf.mxu0
        %v2290 = vadd.f32 %v2201, %v2289
        %2291 = vdwg.mxu0
        %2292 = vmatpush.bf16.msra.mxu0 %v1745
        %2293 = vmatpush.bf16.msra.mxu0 %v1743
        %2294 = vmatpush.bf16.msra.mxu0 %v1741
        %2295 = vmatpush.bf16.msra.mxu0 %v1739
        %2296 = vmatpush.bf16.msra.mxu0 %v1737
        %2297 = vmatpush.bf16.msra.mxu0 %v1735
        %2298 = vmatpush.bf16.msra.mxu0 %v1733
        %2299 = vmatpush.bf16.msra.mxu0 %v1731
        %2300 = vmatmul.bf16.gmra.mxu0 %v2050
        %v2301 = vpop.f32.mrf.mxu0
        %v2302 = vadd.f32 %v1797, %v2301
        %v2303 = vpop.f32.mrf.mxu0
        %v2304 = vadd.f32 %v1802, %v2303
        %2305 = vmatmul.bf16.gmra.mxu0 %v2052
        %v2306 = vpop.f32.mrf.mxu0
        %v2307 = vadd.f32 %v1807, %v2306
        %v2308 = vpop.f32.mrf.mxu0
        %v2309 = vadd.f32 %v1812, %v2308
        %2310 = vmatmul.bf16.gmra.mxu0 %v2054
        %v2311 = vpop.f32.mrf.mxu0
        %v2312 = vadd.f32 %v1817, %v2311
        %v2313 = vpop.f32.mrf.mxu0
        %v2314 = vadd.f32 %v1822, %v2313
        %2315 = vmatmul.bf16.gmra.mxu0 %v2056
        %v2316 = vpop.f32.mrf.mxu0
        %v2317 = vadd.f32 %v1827, %v2316
        %v2318 = vpop.f32.mrf.mxu0
        %v2319 = vadd.f32 %v1832, %v2318
        %2320 = vmatmul.bf16.gmra.mxu0 %v2058
        %v2321 = vpop.f32.mrf.mxu0
        %v2322 = vadd.f32 %v1837, %v2321
        %v2323 = vpop.f32.mrf.mxu0
        %v2324 = vadd.f32 %v1842, %v2323
        %2325 = vmatmul.bf16.gmra.mxu0 %v2060
        %v2326 = vpop.f32.mrf.mxu0
        %v2327 = vadd.f32 %v1847, %v2326
        %v2328 = vpop.f32.mrf.mxu0
        %v2329 = vadd.f32 %v1852, %v2328
        %2330 = vmatmul.bf16.gmra.mxu0 %v2062
        %v2331 = vpop.f32.mrf.mxu0
        %v2332 = vadd.f32 %v1857, %v2331
        %v2333 = vpop.f32.mrf.mxu0
        %v2334 = vadd.f32 %v1862, %v2333
        %2335 = vmatmul.bf16.gmra.mxu0 %v2064
        %v2336 = vpop.f32.mrf.mxu0
        %v2337 = vadd.f32 %v1867, %v2336
        %v2338 = vpop.f32.mrf.mxu0
        %v2339 = vadd.f32 %v1872, %v2338
        %2340 = vmatmul.bf16.gmra.mxu0 %v2066
        %v2341 = vpop.f32.mrf.mxu0
        %v2342 = vadd.f32 %v1877, %v2341
        %v2343 = vpop.f32.mrf.mxu0
        %v2344 = vadd.f32 %v1882, %v2343
        %2345 = vmatmul.bf16.gmra.mxu0 %v2068
        %v2346 = vpop.f32.mrf.mxu0
        %v2347 = vadd.f32 %v1887, %v2346
        %v2348 = vpop.f32.mrf.mxu0
        %v2349 = vadd.f32 %v1892, %v2348
        %2350 = vmatmul.bf16.gmra.mxu0 %v2070
        %v2351 = vpop.f32.mrf.mxu0
        %v2352 = vadd.f32 %v1897, %v2351
        %v2353 = vpop.f32.mrf.mxu0
        %v2354 = vadd.f32 %v1902, %v2353
        %2355 = vmatmul.bf16.gmra.mxu0 %v2072
        %v2356 = vpop.f32.mrf.mxu0
        %v2357 = vadd.f32 %v1907, %v2356
        %v2358 = vpop.f32.mrf.mxu0
        %v2359 = vadd.f32 %v1912, %v2358
        %2360 = vmatmul.bf16.gmra.mxu0 %v2074
        %v2361 = vpop.f32.mrf.mxu0
        %v2362 = vadd.f32 %v1917, %v2361
        %v2363 = vpop.f32.mrf.mxu0
        %v2364 = vadd.f32 %v1922, %v2363
        %2365 = vmatmul.bf16.gmra.mxu0 %v2076
        %v2366 = vpop.f32.mrf.mxu0
        %v2367 = vadd.f32 %v1927, %v2366
        %v2368 = vpop.f32.mrf.mxu0
        %v2369 = vadd.f32 %v1932, %v2368
        %2370 = vmatmul.bf16.gmra.mxu0 %v2078
        %v2371 = vpop.f32.mrf.mxu0
        %v2372 = vadd.f32 %v1937, %v2371
        %v2373 = vpop.f32.mrf.mxu0
        %v2374 = vadd.f32 %v1942, %v2373
        %2375 = vmatmul.bf16.gmra.mxu0 %v2080
        %v2376 = vpop.f32.mrf.mxu0
        %v2377 = vadd.f32 %v1947, %v2376
        %v2378 = vpop.f32.mrf.mxu0
        %v2379 = vadd.f32 %v1952, %v2378
        %2380 = vdwg.mxu0
        %2381 = vmatpush.bf16.msra.mxu0 %v1761
        %2382 = vmatpush.bf16.msra.mxu0 %v1759
        %2383 = vmatpush.bf16.msra.mxu0 %v1757
        %2384 = vmatpush.bf16.msra.mxu0 %v1755
        %2385 = vmatpush.bf16.msra.mxu0 %v1753
        %2386 = vmatpush.bf16.msra.mxu0 %v1751
        %2387 = vmatpush.bf16.msra.mxu0 %v1749
        %2388 = vmatpush.bf16.msra.mxu0 %v1747
        %2389 = vmatmul.bf16.gmra.mxu0 %v2051
        %v2390 = vpop.f32.mrf.mxu0
        %v2391 = vadd.f32 %v2302, %v2390
        %v2392 = vpop.f32.mrf.mxu0
        %v2393 = vadd.f32 %v2304, %v2392
        %2394 = vmatmul.bf16.gmra.mxu0 %v2053
        %v2395 = vpop.f32.mrf.mxu0
        %v2396 = vadd.f32 %v2307, %v2395
        %v2397 = vpop.f32.mrf.mxu0
        %v2398 = vadd.f32 %v2309, %v2397
        %2399 = vmatmul.bf16.gmra.mxu0 %v2055
        %v2400 = vpop.f32.mrf.mxu0
        %v2401 = vadd.f32 %v2312, %v2400
        %v2402 = vpop.f32.mrf.mxu0
        %v2403 = vadd.f32 %v2314, %v2402
        %2404 = vmatmul.bf16.gmra.mxu0 %v2057
        %v2405 = vpop.f32.mrf.mxu0
        %v2406 = vadd.f32 %v2317, %v2405
        %v2407 = vpop.f32.mrf.mxu0
        %v2408 = vadd.f32 %v2319, %v2407
        %2409 = vmatmul.bf16.gmra.mxu0 %v2059
        %v2410 = vpop.f32.mrf.mxu0
        %v2411 = vadd.f32 %v2322, %v2410
        %v2412 = vpop.f32.mrf.mxu0
        %v2413 = vadd.f32 %v2324, %v2412
        %2414 = vmatmul.bf16.gmra.mxu0 %v2061
        %v2415 = vpop.f32.mrf.mxu0
        %v2416 = vadd.f32 %v2327, %v2415
        %v2417 = vpop.f32.mrf.mxu0
        %v2418 = vadd.f32 %v2329, %v2417
        %2419 = vmatmul.bf16.gmra.mxu0 %v2063
        %v2420 = vpop.f32.mrf.mxu0
        %v2421 = vadd.f32 %v2332, %v2420
        %v2422 = vpop.f32.mrf.mxu0
        %v2423 = vadd.f32 %v2334, %v2422
        %2424 = vmatmul.bf16.gmra.mxu0 %v2065
        %v2425 = vpop.f32.mrf.mxu0
        %v2426 = vadd.f32 %v2337, %v2425
        %v2427 = vpop.f32.mrf.mxu0
        %v2428 = vadd.f32 %v2339, %v2427
        %2429 = vmatmul.bf16.gmra.mxu0 %v2067
        %v2430 = vpop.f32.mrf.mxu0
        %v2431 = vadd.f32 %v2342, %v2430
        %v2432 = vpop.f32.mrf.mxu0
        %v2433 = vadd.f32 %v2344, %v2432
        %2434 = vmatmul.bf16.gmra.mxu0 %v2069
        %v2435 = vpop.f32.mrf.mxu0
        %v2436 = vadd.f32 %v2347, %v2435
        %v2437 = vpop.f32.mrf.mxu0
        %v2438 = vadd.f32 %v2349, %v2437
        %2439 = vmatmul.bf16.gmra.mxu0 %v2071
        %v2440 = vpop.f32.mrf.mxu0
        %v2441 = vadd.f32 %v2352, %v2440
        %v2442 = vpop.f32.mrf.mxu0
        %v2443 = vadd.f32 %v2354, %v2442
        %2444 = vmatmul.bf16.gmra.mxu0 %v2073
        %v2445 = vpop.f32.mrf.mxu0
        %v2446 = vadd.f32 %v2357, %v2445
        %v2447 = vpop.f32.mrf.mxu0
        %v2448 = vadd.f32 %v2359, %v2447
        %2449 = vmatmul.bf16.gmra.mxu0 %v2075
        %v2450 = vpop.f32.mrf.mxu0
        %v2451 = vadd.f32 %v2362, %v2450
        %v2452 = vpop.f32.mrf.mxu0
        %v2453 = vadd.f32 %v2364, %v2452
        %2454 = vmatmul.bf16.gmra.mxu0 %v2077
        %v2455 = vpop.f32.mrf.mxu0
        %v2456 = vadd.f32 %v2367, %v2455
        %v2457 = vpop.f32.mrf.mxu0
        %v2458 = vadd.f32 %v2369, %v2457
        %2459 = vmatmul.bf16.gmra.mxu0 %v2079
        %v2460 = vpop.f32.mrf.mxu0
        %v2461 = vadd.f32 %v2372, %v2460
        %v2462 = vpop.f32.mrf.mxu0
        %v2463 = vadd.f32 %v2374, %v2462
        %2464 = vmatmul.bf16.gmra.mxu0 %v2081
        %v2465 = vpop.f32.mrf.mxu0
        %v2466 = vadd.f32 %v2377, %v2465
        %v2467 = vpop.f32.mrf.mxu0
        %v2468 = vadd.f32 %v2379, %v2467
        %2469 = vdwg.mxu0
        %vm2470 = vcmp.gt.f32.partialorder %v2213, 0.0
        %vm2471 = vcmp.gt.f32.partialorder %v2391, 0.0
        %vm2472 = vcmp.gt.f32.partialorder %v2215, 0.0
        %vm2473 = vcmp.gt.f32.partialorder %v2393, 0.0
        %vm2474 = vcmp.gt.f32.partialorder %v2218, 0.0
        %vm2475 = vcmp.gt.f32.partialorder %v2396, 0.0
        %vm2476 = vcmp.gt.f32.partialorder %v2220, 0.0
        %vm2477 = vcmp.gt.f32.partialorder %v2398, 0.0
        %vm2478 = vcmp.gt.f32.partialorder %v2223, 0.0
        %vm2479 = vcmp.gt.f32.partialorder %v2401, 0.0
        %vm2480 = vcmp.gt.f32.partialorder %v2225, 0.0
        %vm2481 = vcmp.gt.f32.partialorder %v2403, 0.0
        %vm2482 = vcmp.gt.f32.partialorder %v2228, 0.0
        %vm2483 = vcmp.gt.f32.partialorder %v2406, 0.0
        %vm2484 = vcmp.gt.f32.partialorder %v2230, 0.0
        %vm2485 = vcmp.gt.f32.partialorder %v2408, 0.0
        %vm2486 = vcmp.gt.f32.partialorder %v2233, 0.0
        %vm2487 = vcmp.gt.f32.partialorder %v2411, 0.0
        %vm2488 = vcmp.gt.f32.partialorder %v2235, 0.0
        %vm2489 = vcmp.gt.f32.partialorder %v2413, 0.0
        %vm2490 = vcmp.gt.f32.partialorder %v2238, 0.0
        %vm2491 = vcmp.gt.f32.partialorder %v2416, 0.0
        %vm2492 = vcmp.gt.f32.partialorder %v2240, 0.0
        %vm2493 = vcmp.gt.f32.partialorder %v2418, 0.0
        %vm2494 = vcmp.gt.f32.partialorder %v2243, 0.0
        %vm2495 = vcmp.gt.f32.partialorder %v2421, 0.0
        %vm2496 = vcmp.gt.f32.partialorder %v2245, 0.0
        %vm2497 = vcmp.gt.f32.partialorder %v2423, 0.0
        %vm2498 = vcmp.gt.f32.partialorder %v2248, 0.0
        %vm2499 = vcmp.gt.f32.partialorder %v2426, 0.0
        %vm2500 = vcmp.gt.f32.partialorder %v2250, 0.0
        %vm2501 = vcmp.gt.f32.partialorder %v2428, 0.0
        %vm2502 = vcmp.gt.f32.partialorder %v2253, 0.0
        %vm2503 = vcmp.gt.f32.partialorder %v2431, 0.0
        %vm2504 = vcmp.gt.f32.partialorder %v2255, 0.0
        %vm2505 = vcmp.gt.f32.partialorder %v2433, 0.0
        %vm2506 = vcmp.gt.f32.partialorder %v2258, 0.0
        %vm2507 = vcmp.gt.f32.partialorder %v2436, 0.0
        %vm2508 = vcmp.gt.f32.partialorder %v2260, 0.0
        %vm2509 = vcmp.gt.f32.partialorder %v2438, 0.0
        %vm2510 = vcmp.gt.f32.partialorder %v2263, 0.0
        %vm2511 = vcmp.gt.f32.partialorder %v2441, 0.0
        %vm2512 = vcmp.gt.f32.partialorder %v2265, 0.0
        %vm2513 = vcmp.gt.f32.partialorder %v2443, 0.0
        %vm2514 = vcmp.gt.f32.partialorder %v2268, 0.0
        %vm2515 = vcmp.gt.f32.partialorder %v2446, 0.0
        %vm2516 = vcmp.gt.f32.partialorder %v2270, 0.0
        %vm2517 = vcmp.gt.f32.partialorder %v2448, 0.0
        %vm2518 = vcmp.gt.f32.partialorder %v2273, 0.0
        %vm2519 = vcmp.gt.f32.partialorder %v2451, 0.0
        %vm2520 = vcmp.gt.f32.partialorder %v2275, 0.0
        %vm2521 = vcmp.gt.f32.partialorder %v2453, 0.0
        %vm2522 = vcmp.gt.f32.partialorder %v2278, 0.0
        %vm2523 = vcmp.gt.f32.partialorder %v2456, 0.0
        %vm2524 = vcmp.gt.f32.partialorder %v2280, 0.0
        %vm2525 = vcmp.gt.f32.partialorder %v2458, 0.0
        %vm2526 = vcmp.gt.f32.partialorder %v2283, 0.0
        %vm2527 = vcmp.gt.f32.partialorder %v2461, 0.0
        %vm2528 = vcmp.gt.f32.partialorder %v2285, 0.0
        %vm2529 = vcmp.gt.f32.partialorder %v2463, 0.0
        %vm2530 = vcmp.gt.f32.partialorder %v2288, 0.0
        %vm2531 = vcmp.gt.f32.partialorder %v2466, 0.0
        %vm2532 = vcmp.gt.f32.partialorder %v2290, 0.0
        %vm2533 = vcmp.gt.f32.partialorder %v2468, 0.0
        %v2534 = vmul.f32 %v2213, 0.2
        %v2535 = vmul.f32 %v2391, 0.2
        %v2536 = vmul.f32 %v2215, 0.2
        %v2537 = vmul.f32 %v2393, 0.2
        %v2538 = vmul.f32 %v2218, 0.2
        %v2539 = vmul.f32 %v2396, 0.2
        %v2540 = vmul.f32 %v2220, 0.2
        %v2541 = vmul.f32 %v2398, 0.2
        %v2542 = vmul.f32 %v2223, 0.2
        %v2543 = vmul.f32 %v2401, 0.2
        %v2544 = vmul.f32 %v2225, 0.2
        %v2545 = vmul.f32 %v2403, 0.2
        %v2546 = vmul.f32 %v2228, 0.2
        %v2547 = vmul.f32 %v2406, 0.2
        %v2548 = vmul.f32 %v2230, 0.2
        %v2549 = vmul.f32 %v2408, 0.2
        %v2550 = vmul.f32 %v2233, 0.2
        %v2551 = vmul.f32 %v2411, 0.2
        %v2552 = vmul.f32 %v2235, 0.2
        %v2553 = vmul.f32 %v2413, 0.2
        %v2554 = vmul.f32 %v2238, 0.2
        %v2555 = vmul.f32 %v2416, 0.2
        %v2556 = vmul.f32 %v2240, 0.2
        %v2557 = vmul.f32 %v2418, 0.2
        %v2558 = vmul.f32 %v2243, 0.2
        %v2559 = vmul.f32 %v2421, 0.2
        %v2560 = vmul.f32 %v2245, 0.2
        %v2561 = vmul.f32 %v2423, 0.2
        %v2562 = vmul.f32 %v2248, 0.2
        %v2563 = vmul.f32 %v2426, 0.2
        %v2564 = vmul.f32 %v2250, 0.2
        %v2565 = vmul.f32 %v2428, 0.2
        %v2566 = vmul.f32 %v2253, 0.2
        %v2567 = vmul.f32 %v2431, 0.2
        %v2568 = vmul.f32 %v2255, 0.2
        %v2569 = vmul.f32 %v2433, 0.2
        %v2570 = vmul.f32 %v2258, 0.2
        %v2571 = vmul.f32 %v2436, 0.2
        %v2572 = vmul.f32 %v2260, 0.2
        %v2573 = vmul.f32 %v2438, 0.2
        %v2574 = vmul.f32 %v2263, 0.2
        %v2575 = vmul.f32 %v2441, 0.2
        %v2576 = vmul.f32 %v2265, 0.2
        %v2577 = vmul.f32 %v2443, 0.2
        %v2578 = vmul.f32 %v2268, 0.2
        %v2579 = vmul.f32 %v2446, 0.2
        %v2580 = vmul.f32 %v2270, 0.2
        %v2581 = vmul.f32 %v2448, 0.2
        %v2582 = vmul.f32 %v2273, 0.2
        %v2583 = vmul.f32 %v2451, 0.2
        %v2584 = vmul.f32 %v2275, 0.2
        %v2585 = vmul.f32 %v2453, 0.2
        %v2586 = vmul.f32 %v2278, 0.2
        %v2587 = vmul.f32 %v2456, 0.2
        %v2588 = vmul.f32 %v2280, 0.2
        %v2589 = vmul.f32 %v2458, 0.2
        %v2590 = vmul.f32 %v2283, 0.2
        %v2591 = vmul.f32 %v2461, 0.2
        %v2592 = vmul.f32 %v2285, 0.2
        %v2593 = vmul.f32 %v2463, 0.2
        %v2594 = vmul.f32 %v2288, 0.2
        %v2595 = vmul.f32 %v2466, 0.2
        %v2596 = vmul.f32 %v2290, 0.2
        %v2597 = vmul.f32 %v2468, 0.2
        %v2598 = vsel %vm2470, %v2213, %v2534
        %v2599 = vsel %vm2471, %v2391, %v2535
        %v2600 = vsel %vm2472, %v2215, %v2536
        %v2601 = vsel %vm2473, %v2393, %v2537
        %v2602 = vsel %vm2474, %v2218, %v2538
        %v2603 = vsel %vm2475, %v2396, %v2539
        %v2604 = vsel %vm2476, %v2220, %v2540
        %v2605 = vsel %vm2477, %v2398, %v2541
        %v2606 = vsel %vm2478, %v2223, %v2542
        %v2607 = vsel %vm2479, %v2401, %v2543
        %v2608 = vsel %vm2480, %v2225, %v2544
        %v2609 = vsel %vm2481, %v2403, %v2545
        %v2610 = vsel %vm2482, %v2228, %v2546
        %v2611 = vsel %vm2483, %v2406, %v2547
        %v2612 = vsel %vm2484, %v2230, %v2548
        %v2613 = vsel %vm2485, %v2408, %v2549
        %v2614 = vsel %vm2486, %v2233, %v2550
        %v2615 = vsel %vm2487, %v2411, %v2551
        %v2616 = vsel %vm2488, %v2235, %v2552
        %v2617 = vsel %vm2489, %v2413, %v2553
        %v2618 = vsel %vm2490, %v2238, %v2554
        %v2619 = vsel %vm2491, %v2416, %v2555
        %v2620 = vsel %vm2492, %v2240, %v2556
        %v2621 = vsel %vm2493, %v2418, %v2557
        %v2622 = vsel %vm2494, %v2243, %v2558
        %v2623 = vsel %vm2495, %v2421, %v2559
        %v2624 = vsel %vm2496, %v2245, %v2560
        %v2625 = vsel %vm2497, %v2423, %v2561
        %v2626 = vsel %vm2498, %v2248, %v2562
        %v2627 = vsel %vm2499, %v2426, %v2563
        %v2628 = vsel %vm2500, %v2250, %v2564
        %v2629 = vsel %vm2501, %v2428, %v2565
        %v2630 = vsel %vm2502, %v2253, %v2566
        %v2631 = vsel %vm2503, %v2431, %v2567
        %v2632 = vsel %vm2504, %v2255, %v2568
        %v2633 = vsel %vm2505, %v2433, %v2569
        %v2634 = vsel %vm2506, %v2258, %v2570
        %v2635 = vsel %vm2507, %v2436, %v2571
        %v2636 = vsel %vm2508, %v2260, %v2572
        %v2637 = vsel %vm2509, %v2438, %v2573
        %v2638 = vsel %vm2510, %v2263, %v2574
        %v2639 = vsel %vm2511, %v2441, %v2575
        %v2640 = vsel %vm2512, %v2265, %v2576
        %v2641 = vsel %vm2513, %v2443, %v2577
        %v2642 = vsel %vm2514, %v2268, %v2578
        %v2643 = vsel %vm2515, %v2446, %v2579
        %v2644 = vsel %vm2516, %v2270, %v2580
        %v2645 = vsel %vm2517, %v2448, %v2581
        %v2646 = vsel %vm2518, %v2273, %v2582
        %v2647 = vsel %vm2519, %v2451, %v2583
        %v2648 = vsel %vm2520, %v2275, %v2584
        %v2649 = vsel %vm2521, %v2453, %v2585
        %v2650 = vsel %vm2522, %v2278, %v2586
        %v2651 = vsel %vm2523, %v2456, %v2587
        %v2652 = vsel %vm2524, %v2280, %v2588
        %v2653 = vsel %vm2525, %v2458, %v2589
        %v2654 = vsel %vm2526, %v2283, %v2590
        %v2655 = vsel %vm2527, %v2461, %v2591
        %v2656 = vsel %vm2528, %v2285, %v2592
        %v2657 = vsel %vm2529, %v2463, %v2593
        %v2658 = vsel %vm2530, %v2288, %v2594
        %v2659 = vsel %vm2531, %v2466, %v2595
        %v2660 = vsel %vm2532, %v2290, %v2596
        %v2661 = vsel %vm2533, %v2468, %v2597
        %v2662 = vld [vmem:[%s7] sm:$0xff]
        %v2663 = vld [vmem:[%s7 + $0x8] sm:$0xff]
        %v2664 = vld [vmem:[%s7 + $0x10] sm:$0xff]
        %v2665 = vld [vmem:[%s7 + $0x18] sm:$0xff]
        %v2666 = vld [vmem:[%s7 + $0x20] sm:$0xff]
        %v2667 = vld [vmem:[%s7 + $0x28] sm:$0xff]
        %v2668 = vld [vmem:[%s7 + $0x30] sm:$0xff]
        %v2669 = vld [vmem:[%s7 + $0x38] sm:$0xff]
        %v2670 = vld [vmem:[%s7 + $0x40] sm:$0xff]
        %v2671 = vld [vmem:[%s7 + $0x48] sm:$0xff]
        %v2672 = vld [vmem:[%s7 + $0x50] sm:$0xff]
        %v2673 = vld [vmem:[%s7 + $0x58] sm:$0xff]
        %v2674 = vld [vmem:[%s7 + $0x60] sm:$0xff]
        %v2675 = vld [vmem:[%s7 + $0x68] sm:$0xff]
        %v2676 = vld [vmem:[%s7 + $0x70] sm:$0xff]
        %v2677 = vld [vmem:[%s7 + $0x78] sm:$0xff]
        %v2678 = vld [vmem:[%s7 + $0x80] sm:$0xff]
        %v2679 = vld [vmem:[%s7 + $0x88] sm:$0xff]
        %v2680 = vld [vmem:[%s7 + $0x90] sm:$0xff]
        %v2681 = vld [vmem:[%s7 + $0x98] sm:$0xff]
        %v2682 = vld [vmem:[%s7 + $0xa0] sm:$0xff]
        %v2683 = vld [vmem:[%s7 + $0xa8] sm:$0xff]
        %v2684 = vld [vmem:[%s7 + $0xb0] sm:$0xff]
        %v2685 = vld [vmem:[%s7 + $0xb8] sm:$0xff]
        %v2686 = vld [vmem:[%s7 + $0xc0] sm:$0xff]
        %v2687 = vld [vmem:[%s7 + $0xc8] sm:$0xff]
        %v2688 = vld [vmem:[%s7 + $0xd0] sm:$0xff]
        %v2689 = vld [vmem:[%s7 + $0xd8] sm:$0xff]
        %v2690 = vld [vmem:[%s7 + $0xe0] sm:$0xff]
        %v2691 = vld [vmem:[%s7 + $0xe8] sm:$0xff]
        %v2692 = vld [vmem:[%s7 + $0xf0] sm:$0xff]
        %v2693 = vld [vmem:[%s7 + $0xf8] sm:$0xff]
        %v2694 = vpack.c.bf16 %v2600, %v2598
        %v2695 = vpack.c.bf16 %v2601, %v2599
        %v2696 = vpack.c.bf16 %v2604, %v2602
        %v2697 = vpack.c.bf16 %v2605, %v2603
        %v2698 = vpack.c.bf16 %v2608, %v2606
        %v2699 = vpack.c.bf16 %v2609, %v2607
        %v2700 = vpack.c.bf16 %v2612, %v2610
        %v2701 = vpack.c.bf16 %v2613, %v2611
        %v2702 = vpack.c.bf16 %v2616, %v2614
        %v2703 = vpack.c.bf16 %v2617, %v2615
        %v2704 = vpack.c.bf16 %v2620, %v2618
        %v2705 = vpack.c.bf16 %v2621, %v2619
        %v2706 = vpack.c.bf16 %v2624, %v2622
        %v2707 = vpack.c.bf16 %v2625, %v2623
        %v2708 = vpack.c.bf16 %v2628, %v2626
        %v2709 = vpack.c.bf16 %v2629, %v2627
        %v2710 = vpack.c.bf16 %v2632, %v2630
        %v2711 = vpack.c.bf16 %v2633, %v2631
        %v2712 = vpack.c.bf16 %v2636, %v2634
        %v2713 = vpack.c.bf16 %v2637, %v2635
        %v2714 = vpack.c.bf16 %v2640, %v2638
        %v2715 = vpack.c.bf16 %v2641, %v2639
        %v2716 = vpack.c.bf16 %v2644, %v2642
        %v2717 = vpack.c.bf16 %v2645, %v2643
        %v2718 = vpack.c.bf16 %v2648, %v2646
        %v2719 = vpack.c.bf16 %v2649, %v2647
        %v2720 = vpack.c.bf16 %v2652, %v2650
        %v2721 = vpack.c.bf16 %v2653, %v2651
        %v2722 = vpack.c.bf16 %v2656, %v2654
        %v2723 = vpack.c.bf16 %v2657, %v2655
        %v2724 = vpack.c.bf16 %v2660, %v2658
        %v2725 = vpack.c.bf16 %v2661, %v2659
        %v2726 = vld [vmem:[%s8] sm:$0xff]
        %v2727 = vld [vmem:[%s8 + $0x8] sm:$0xff]
        %v2728 = vld [vmem:[%s8 + $0x10] sm:$0xff]
        %v2729 = vld [vmem:[%s8 + $0x18] sm:$0xff]
        %v2730 = vld [vmem:[%s8 + $0x20] sm:$0xff]
        %v2731 = vld [vmem:[%s8 + $0x28] sm:$0xff]
        %v2732 = vld [vmem:[%s8 + $0x30] sm:$0xff]
        %v2733 = vld [vmem:[%s8 + $0x38] sm:$0xff]
        %v2734 = vld [vmem:[%s8 + $0x40] sm:$0xff]
        %v2735 = vld [vmem:[%s8 + $0x48] sm:$0xff]
        %v2736 = vld [vmem:[%s8 + $0x50] sm:$0xff]
        %v2737 = vld [vmem:[%s8 + $0x58] sm:$0xff]
        %v2738 = vld [vmem:[%s8 + $0x60] sm:$0xff]
        %v2739 = vld [vmem:[%s8 + $0x68] sm:$0xff]
        %v2740 = vld [vmem:[%s8 + $0x70] sm:$0xff]
        %v2741 = vld [vmem:[%s8 + $0x78] sm:$0xff]
        %v2742 = vld [vmem:[%s8 + $0x80] sm:$0xff]
        %v2743 = vld [vmem:[%s8 + $0x88] sm:$0xff]
        %v2744 = vld [vmem:[%s8 + $0x90] sm:$0xff]
        %v2745 = vld [vmem:[%s8 + $0x98] sm:$0xff]
        %v2746 = vld [vmem:[%s8 + $0xa0] sm:$0xff]
        %v2747 = vld [vmem:[%s8 + $0xa8] sm:$0xff]
        %v2748 = vld [vmem:[%s8 + $0xb0] sm:$0xff]
        %v2749 = vld [vmem:[%s8 + $0xb8] sm:$0xff]
        %v2750 = vld [vmem:[%s8 + $0xc0] sm:$0xff]
        %v2751 = vld [vmem:[%s8 + $0xc8] sm:$0xff]
        %v2752 = vld [vmem:[%s8 + $0xd0] sm:$0xff]
        %v2753 = vld [vmem:[%s8 + $0xd8] sm:$0xff]
        %v2754 = vld [vmem:[%s8 + $0xe0] sm:$0xff]
        %v2755 = vld [vmem:[%s8 + $0xe8] sm:$0xff]
        %v2756 = vld [vmem:[%s8 + $0xf0] sm:$0xff]
        %v2757 = vld [vmem:[%s8 + $0xf8] sm:$0xff]
        %2759 = vset.pattern.permute.xlu0 0
        %2760 = vperm.xlu0 %2759, %v2726
        %v2761 = vpop.permute.xlu0 %2760
        %2764 = vset.pattern.permute.xlu0 0
        %2765 = vperm.xlu0 %2764, %v2727
        %v2766 = vpop.permute.xlu0 %2765
        %2769 = vset.pattern.permute.xlu0 0
        %2770 = vperm.xlu0 %2769, %v2728
        %v2771 = vpop.permute.xlu0 %2770
        %2774 = vset.pattern.permute.xlu0 0
        %2775 = vperm.xlu0 %2774, %v2729
        %v2776 = vpop.permute.xlu0 %2775
        %2779 = vset.pattern.permute.xlu0 0
        %2780 = vperm.xlu0 %2779, %v2730
        %v2781 = vpop.permute.xlu0 %2780
        %2784 = vset.pattern.permute.xlu0 0
        %2785 = vperm.xlu0 %2784, %v2731
        %v2786 = vpop.permute.xlu0 %2785
        %2789 = vset.pattern.permute.xlu0 0
        %2790 = vperm.xlu0 %2789, %v2732
        %v2791 = vpop.permute.xlu0 %2790
        %2794 = vset.pattern.permute.xlu0 0
        %2795 = vperm.xlu0 %2794, %v2733
        %v2796 = vpop.permute.xlu0 %2795
        %2799 = vset.pattern.permute.xlu0 0
        %2800 = vperm.xlu0 %2799, %v2734
        %v2801 = vpop.permute.xlu0 %2800
        %2804 = vset.pattern.permute.xlu0 0
        %2805 = vperm.xlu0 %2804, %v2735
        %v2806 = vpop.permute.xlu0 %2805
        %2809 = vset.pattern.permute.xlu0 0
        %2810 = vperm.xlu0 %2809, %v2736
        %v2811 = vpop.permute.xlu0 %2810
        %2814 = vset.pattern.permute.xlu0 0
        %2815 = vperm.xlu0 %2814, %v2737
        %v2816 = vpop.permute.xlu0 %2815
        %2819 = vset.pattern.permute.xlu0 0
        %2820 = vperm.xlu0 %2819, %v2738
        %v2821 = vpop.permute.xlu0 %2820
        %2824 = vset.pattern.permute.xlu0 0
        %2825 = vperm.xlu0 %2824, %v2739
        %v2826 = vpop.permute.xlu0 %2825
        %2829 = vset.pattern.permute.xlu0 0
        %2830 = vperm.xlu0 %2829, %v2740
        %v2831 = vpop.permute.xlu0 %2830
        %2834 = vset.pattern.permute.xlu0 0
        %2835 = vperm.xlu0 %2834, %v2741
        %v2836 = vpop.permute.xlu0 %2835
        %2839 = vset.pattern.permute.xlu0 0
        %2840 = vperm.xlu0 %2839, %v2742
        %v2841 = vpop.permute.xlu0 %2840
        %2844 = vset.pattern.permute.xlu0 0
        %2845 = vperm.xlu0 %2844, %v2743
        %v2846 = vpop.permute.xlu0 %2845
        %2849 = vset.pattern.permute.xlu0 0
        %2850 = vperm.xlu0 %2849, %v2744
        %v2851 = vpop.permute.xlu0 %2850
        %2854 = vset.pattern.permute.xlu0 0
        %2855 = vperm.xlu0 %2854, %v2745
        %v2856 = vpop.permute.xlu0 %2855
        %2859 = vset.pattern.permute.xlu0 0
        %2860 = vperm.xlu0 %2859, %v2746
        %v2861 = vpop.permute.xlu0 %2860
        %2864 = vset.pattern.permute.xlu0 0
        %2865 = vperm.xlu0 %2864, %v2747
        %v2866 = vpop.permute.xlu0 %2865
        %2869 = vset.pattern.permute.xlu0 0
        %2870 = vperm.xlu0 %2869, %v2748
        %v2871 = vpop.permute.xlu0 %2870
        %2874 = vset.pattern.permute.xlu0 0
        %2875 = vperm.xlu0 %2874, %v2749
        %v2876 = vpop.permute.xlu0 %2875
        %2879 = vset.pattern.permute.xlu0 0
        %2880 = vperm.xlu0 %2879, %v2750
        %v2881 = vpop.permute.xlu0 %2880
        %2884 = vset.pattern.permute.xlu0 0
        %2885 = vperm.xlu0 %2884, %v2751
        %v2886 = vpop.permute.xlu0 %2885
        %2889 = vset.pattern.permute.xlu0 0
        %2890 = vperm.xlu0 %2889, %v2752
        %v2891 = vpop.permute.xlu0 %2890
        %2894 = vset.pattern.permute.xlu0 0
        %2895 = vperm.xlu0 %2894, %v2753
        %v2896 = vpop.permute.xlu0 %2895
        %2899 = vset.pattern.permute.xlu0 0
        %2900 = vperm.xlu0 %2899, %v2754
        %v2901 = vpop.permute.xlu0 %2900
        %2904 = vset.pattern.permute.xlu0 0
        %2905 = vperm.xlu0 %2904, %v2755
        %v2906 = vpop.permute.xlu0 %2905
        %2909 = vset.pattern.permute.xlu0 0
        %2910 = vperm.xlu0 %2909, %v2756
        %v2911 = vpop.permute.xlu0 %2910
        %2914 = vset.pattern.permute.xlu0 0
        %2915 = vperm.xlu0 %2914, %v2757
        %v2916 = vpop.permute.xlu0 %2915
        %v2950 = vunpack.c.l.b16 %v2662
        %v2951 = vunpack.c.h.b16 %v2662
        %v2952 = vunpack.c.l.b16 %v2663
        %v2953 = vunpack.c.h.b16 %v2663
        %v2954 = vunpack.c.l.b16 %v2664
        %v2955 = vunpack.c.h.b16 %v2664
        %v2956 = vunpack.c.l.b16 %v2665
        %v2957 = vunpack.c.h.b16 %v2665
        %v2958 = vunpack.c.l.b16 %v2666
        %v2959 = vunpack.c.h.b16 %v2666
        %v2960 = vunpack.c.l.b16 %v2667
        %v2961 = vunpack.c.h.b16 %v2667
        %v2962 = vunpack.c.l.b16 %v2668
        %v2963 = vunpack.c.h.b16 %v2668
        %v2964 = vunpack.c.l.b16 %v2669
        %v2965 = vunpack.c.h.b16 %v2669
        %v2966 = vunpack.c.l.b16 %v2670
        %v2967 = vunpack.c.h.b16 %v2670
        %v2968 = vunpack.c.l.b16 %v2671
        %v2969 = vunpack.c.h.b16 %v2671
        %v2970 = vunpack.c.l.b16 %v2672
        %v2971 = vunpack.c.h.b16 %v2672
        %v2972 = vunpack.c.l.b16 %v2673
        %v2973 = vunpack.c.h.b16 %v2673
        %v2974 = vunpack.c.l.b16 %v2674
        %v2975 = vunpack.c.h.b16 %v2674
        %v2976 = vunpack.c.l.b16 %v2675
        %v2977 = vunpack.c.h.b16 %v2675
        %v2978 = vunpack.c.l.b16 %v2676
        %v2979 = vunpack.c.h.b16 %v2676
        %v2980 = vunpack.c.l.b16 %v2677
        %v2981 = vunpack.c.h.b16 %v2677
        %v2982 = vunpack.c.l.b16 %v2678
        %v2983 = vunpack.c.h.b16 %v2678
        %v2984 = vunpack.c.l.b16 %v2679
        %v2985 = vunpack.c.h.b16 %v2679
        %v2986 = vunpack.c.l.b16 %v2680
        %v2987 = vunpack.c.h.b16 %v2680
        %v2988 = vunpack.c.l.b16 %v2681
        %v2989 = vunpack.c.h.b16 %v2681
        %v2990 = vunpack.c.l.b16 %v2682
        %v2991 = vunpack.c.h.b16 %v2682
        %v2992 = vunpack.c.l.b16 %v2683
        %v2993 = vunpack.c.h.b16 %v2683
        %v2994 = vunpack.c.l.b16 %v2684
        %v2995 = vunpack.c.h.b16 %v2684
        %v2996 = vunpack.c.l.b16 %v2685
        %v2997 = vunpack.c.h.b16 %v2685
        %v2998 = vunpack.c.l.b16 %v2686
        %v2999 = vunpack.c.h.b16 %v2686
        %v3000 = vunpack.c.l.b16 %v2687
        %v3001 = vunpack.c.h.b16 %v2687
        %v3002 = vunpack.c.l.b16 %v2688
        %v3003 = vunpack.c.h.b16 %v2688
        %v3004 = vunpack.c.l.b16 %v2689
        %v3005 = vunpack.c.h.b16 %v2689
        %v3006 = vunpack.c.l.b16 %v2690
        %v3007 = vunpack.c.h.b16 %v2690
        %v3008 = vunpack.c.l.b16 %v2691
        %v3009 = vunpack.c.h.b16 %v2691
        %v3010 = vunpack.c.l.b16 %v2692
        %v3011 = vunpack.c.h.b16 %v2692
        %v3012 = vunpack.c.l.b16 %v2693
        %v3013 = vunpack.c.h.b16 %v2693
        %v3014 = vpack.c.b16 %v2952, %v2950
        %v3015 = vpack.c.b16 %v2953, %v2951
        %v3016 = vpack.c.b16 %v2956, %v2954
        %v3017 = vpack.c.b16 %v2957, %v2955
        %v3018 = vpack.c.b16 %v2960, %v2958
        %v3019 = vpack.c.b16 %v2961, %v2959
        %v3020 = vpack.c.b16 %v2964, %v2962
        %v3021 = vpack.c.b16 %v2965, %v2963
        %v3022 = vpack.c.b16 %v2968, %v2966
        %v3023 = vpack.c.b16 %v2969, %v2967
        %v3024 = vpack.c.b16 %v2972, %v2970
        %v3025 = vpack.c.b16 %v2973, %v2971
        %v3026 = vpack.c.b16 %v2976, %v2974
        %v3027 = vpack.c.b16 %v2977, %v2975
        %v3028 = vpack.c.b16 %v2980, %v2978
        %v3029 = vpack.c.b16 %v2981, %v2979
        %v3030 = vpack.c.b16 %v2984, %v2982
        %v3031 = vpack.c.b16 %v2985, %v2983
        %v3032 = vpack.c.b16 %v2988, %v2986
        %v3033 = vpack.c.b16 %v2989, %v2987
        %v3034 = vpack.c.b16 %v2992, %v2990
        %v3035 = vpack.c.b16 %v2993, %v2991
        %v3036 = vpack.c.b16 %v2996, %v2994
        %v3037 = vpack.c.b16 %v2997, %v2995
        %v3038 = vpack.c.b16 %v3000, %v2998
        %v3039 = vpack.c.b16 %v3001, %v2999
        %v3040 = vpack.c.b16 %v3004, %v3002
        %v3041 = vpack.c.b16 %v3005, %v3003
        %v3042 = vpack.c.b16 %v3008, %v3006
        %v3043 = vpack.c.b16 %v3009, %v3007
        %v3044 = vpack.c.b16 %v3012, %v3010
        %v3045 = vpack.c.b16 %v3013, %v3011
        %3078 = vmatpush.bf16.msra.mxu0 %v2708
        %3079 = vmatpush.bf16.msra.mxu0 %v2706
        %3080 = vmatpush.bf16.msra.mxu0 %v2704
        %3081 = vmatpush.bf16.msra.mxu0 %v2702
        %3082 = vmatpush.bf16.msra.mxu0 %v2700
        %3083 = vmatpush.bf16.msra.mxu0 %v2698
        %3084 = vmatpush.bf16.msra.mxu0 %v2696
        %3085 = vmatpush.bf16.msra.mxu0 %v2694
        %3086 = vmatmul.bf16.gmra.mxu0 %v3014
        %v3087 = vpop.f32.mrf.mxu0
        %v3088 = vadd.f32 %v2761, %v3087
        %v3089 = vpop.f32.mrf.mxu0
        %v3090 = vadd.f32 %v2766, %v3089
        %3091 = vmatmul.bf16.gmra.mxu0 %v3016
        %v3092 = vpop.f32.mrf.mxu0
        %v3093 = vadd.f32 %v2771, %v3092
        %v3094 = vpop.f32.mrf.mxu0
        %v3095 = vadd.f32 %v2776, %v3094
        %3096 = vmatmul.bf16.gmra.mxu0 %v3018
        %v3097 = vpop.f32.mrf.mxu0
        %v3098 = vadd.f32 %v2781, %v3097
        %v3099 = vpop.f32.mrf.mxu0
        %v3100 = vadd.f32 %v2786, %v3099
        %3101 = vmatmul.bf16.gmra.mxu0 %v3020
        %v3102 = vpop.f32.mrf.mxu0
        %v3103 = vadd.f32 %v2791, %v3102
        %v3104 = vpop.f32.mrf.mxu0
        %v3105 = vadd.f32 %v2796, %v3104
        %3106 = vmatmul.bf16.gmra.mxu0 %v3022
        %v3107 = vpop.f32.mrf.mxu0
        %v3108 = vadd.f32 %v2801, %v3107
        %v3109 = vpop.f32.mrf.mxu0
        %v3110 = vadd.f32 %v2806, %v3109
        %3111 = vmatmul.bf16.gmra.mxu0 %v3024
        %v3112 = vpop.f32.mrf.mxu0
        %v3113 = vadd.f32 %v2811, %v3112
        %v3114 = vpop.f32.mrf.mxu0
        %v3115 = vadd.f32 %v2816, %v3114
        %3116 = vmatmul.bf16.gmra.mxu0 %v3026
        %v3117 = vpop.f32.mrf.mxu0
        %v3118 = vadd.f32 %v2821, %v3117
        %v3119 = vpop.f32.mrf.mxu0
        %v3120 = vadd.f32 %v2826, %v3119
        %3121 = vmatmul.bf16.gmra.mxu0 %v3028
        %v3122 = vpop.f32.mrf.mxu0
        %v3123 = vadd.f32 %v2831, %v3122
        %v3124 = vpop.f32.mrf.mxu0
        %v3125 = vadd.f32 %v2836, %v3124
        %3126 = vmatmul.bf16.gmra.mxu0 %v3030
        %v3127 = vpop.f32.mrf.mxu0
        %v3128 = vadd.f32 %v2841, %v3127
        %v3129 = vpop.f32.mrf.mxu0
        %v3130 = vadd.f32 %v2846, %v3129
        %3131 = vmatmul.bf16.gmra.mxu0 %v3032
        %v3132 = vpop.f32.mrf.mxu0
        %v3133 = vadd.f32 %v2851, %v3132
        %v3134 = vpop.f32.mrf.mxu0
        %v3135 = vadd.f32 %v2856, %v3134
        %3136 = vmatmul.bf16.gmra.mxu0 %v3034
        %v3137 = vpop.f32.mrf.mxu0
        %v3138 = vadd.f32 %v2861, %v3137
        %v3139 = vpop.f32.mrf.mxu0
        %v3140 = vadd.f32 %v2866, %v3139
        %3141 = vmatmul.bf16.gmra.mxu0 %v3036
        %v3142 = vpop.f32.mrf.mxu0
        %v3143 = vadd.f32 %v2871, %v3142
        %v3144 = vpop.f32.mrf.mxu0
        %v3145 = vadd.f32 %v2876, %v3144
        %3146 = vmatmul.bf16.gmra.mxu0 %v3038
        %v3147 = vpop.f32.mrf.mxu0
        %v3148 = vadd.f32 %v2881, %v3147
        %v3149 = vpop.f32.mrf.mxu0
        %v3150 = vadd.f32 %v2886, %v3149
        %3151 = vmatmul.bf16.gmra.mxu0 %v3040
        %v3152 = vpop.f32.mrf.mxu0
        %v3153 = vadd.f32 %v2891, %v3152
        %v3154 = vpop.f32.mrf.mxu0
        %v3155 = vadd.f32 %v2896, %v3154
        %3156 = vmatmul.bf16.gmra.mxu0 %v3042
        %v3157 = vpop.f32.mrf.mxu0
        %v3158 = vadd.f32 %v2901, %v3157
        %v3159 = vpop.f32.mrf.mxu0
        %v3160 = vadd.f32 %v2906, %v3159
        %3161 = vmatmul.bf16.gmra.mxu0 %v3044
        %v3162 = vpop.f32.mrf.mxu0
        %v3163 = vadd.f32 %v2911, %v3162
        %v3164 = vpop.f32.mrf.mxu0
        %v3165 = vadd.f32 %v2916, %v3164
        %3166 = vdwg.mxu0
        %3167 = vmatpush.bf16.msra.mxu0 %v2724
        %3168 = vmatpush.bf16.msra.mxu0 %v2722
        %3169 = vmatpush.bf16.msra.mxu0 %v2720
        %3170 = vmatpush.bf16.msra.mxu0 %v2718
        %3171 = vmatpush.bf16.msra.mxu0 %v2716
        %3172 = vmatpush.bf16.msra.mxu0 %v2714
        %3173 = vmatpush.bf16.msra.mxu0 %v2712
        %3174 = vmatpush.bf16.msra.mxu0 %v2710
        %3175 = vmatmul.bf16.gmra.mxu0 %v3015
        %v3176 = vpop.f32.mrf.mxu0
        %v3177 = vadd.f32 %v3088, %v3176
        %v3178 = vpop.f32.mrf.mxu0
        %v3179 = vadd.f32 %v3090, %v3178
        %3180 = vmatmul.bf16.gmra.mxu0 %v3017
        %v3181 = vpop.f32.mrf.mxu0
        %v3182 = vadd.f32 %v3093, %v3181
        %v3183 = vpop.f32.mrf.mxu0
        %v3184 = vadd.f32 %v3095, %v3183
        %3185 = vmatmul.bf16.gmra.mxu0 %v3019
        %v3186 = vpop.f32.mrf.mxu0
        %v3187 = vadd.f32 %v3098, %v3186
        %v3188 = vpop.f32.mrf.mxu0
        %v3189 = vadd.f32 %v3100, %v3188
        %3190 = vmatmul.bf16.gmra.mxu0 %v3021
        %v3191 = vpop.f32.mrf.mxu0
        %v3192 = vadd.f32 %v3103, %v3191
        %v3193 = vpop.f32.mrf.mxu0
        %v3194 = vadd.f32 %v3105, %v3193
        %3195 = vmatmul.bf16.gmra.mxu0 %v3023
        %v3196 = vpop.f32.mrf.mxu0
        %v3197 = vadd.f32 %v3108, %v3196
        %v3198 = vpop.f32.mrf.mxu0
        %v3199 = vadd.f32 %v3110, %v3198
        %3200 = vmatmul.bf16.gmra.mxu0 %v3025
        %v3201 = vpop.f32.mrf.mxu0
        %v3202 = vadd.f32 %v3113, %v3201
        %v3203 = vpop.f32.mrf.mxu0
        %v3204 = vadd.f32 %v3115, %v3203
        %3205 = vmatmul.bf16.gmra.mxu0 %v3027
        %v3206 = vpop.f32.mrf.mxu0
        %v3207 = vadd.f32 %v3118, %v3206
        %v3208 = vpop.f32.mrf.mxu0
        %v3209 = vadd.f32 %v3120, %v3208
        %3210 = vmatmul.bf16.gmra.mxu0 %v3029
        %v3211 = vpop.f32.mrf.mxu0
        %v3212 = vadd.f32 %v3123, %v3211
        %v3213 = vpop.f32.mrf.mxu0
        %v3214 = vadd.f32 %v3125, %v3213
        %3215 = vmatmul.bf16.gmra.mxu0 %v3031
        %v3216 = vpop.f32.mrf.mxu0
        %v3217 = vadd.f32 %v3128, %v3216
        %v3218 = vpop.f32.mrf.mxu0
        %v3219 = vadd.f32 %v3130, %v3218
        %3220 = vmatmul.bf16.gmra.mxu0 %v3033
        %v3221 = vpop.f32.mrf.mxu0
        %v3222 = vadd.f32 %v3133, %v3221
        %v3223 = vpop.f32.mrf.mxu0
        %v3224 = vadd.f32 %v3135, %v3223
        %3225 = vmatmul.bf16.gmra.mxu0 %v3035
        %v3226 = vpop.f32.mrf.mxu0
        %v3227 = vadd.f32 %v3138, %v3226
        %v3228 = vpop.f32.mrf.mxu0
        %v3229 = vadd.f32 %v3140, %v3228
        %3230 = vmatmul.bf16.gmra.mxu0 %v3037
        %v3231 = vpop.f32.mrf.mxu0
        %v3232 = vadd.f32 %v3143, %v3231
        %v3233 = vpop.f32.mrf.mxu0
        %v3234 = vadd.f32 %v3145, %v3233
        %3235 = vmatmul.bf16.gmra.mxu0 %v3039
        %v3236 = vpop.f32.mrf.mxu0
        %v3237 = vadd.f32 %v3148, %v3236
        %v3238 = vpop.f32.mrf.mxu0
        %v3239 = vadd.f32 %v3150, %v3238
        %3240 = vmatmul.bf16.gmra.mxu0 %v3041
        %v3241 = vpop.f32.mrf.mxu0
        %v3242 = vadd.f32 %v3153, %v3241
        %v3243 = vpop.f32.mrf.mxu0
        %v3244 = vadd.f32 %v3155, %v3243
        %3245 = vmatmul.bf16.gmra.mxu0 %v3043
        %v3246 = vpop.f32.mrf.mxu0
        %v3247 = vadd.f32 %v3158, %v3246
        %v3248 = vpop.f32.mrf.mxu0
        %v3249 = vadd.f32 %v3160, %v3248
        %3250 = vmatmul.bf16.gmra.mxu0 %v3045
        %v3251 = vpop.f32.mrf.mxu0
        %v3252 = vadd.f32 %v3163, %v3251
        %v3253 = vpop.f32.mrf.mxu0
        %v3254 = vadd.f32 %v3165, %v3253
        %3255 = vdwg.mxu0
        %3256 = vmatpush.bf16.msra.mxu0 %v2709
        %3257 = vmatpush.bf16.msra.mxu0 %v2707
        %3258 = vmatpush.bf16.msra.mxu0 %v2705
        %3259 = vmatpush.bf16.msra.mxu0 %v2703
        %3260 = vmatpush.bf16.msra.mxu0 %v2701
        %3261 = vmatpush.bf16.msra.mxu0 %v2699
        %3262 = vmatpush.bf16.msra.mxu0 %v2697
        %3263 = vmatpush.bf16.msra.mxu0 %v2695
        %3264 = vmatmul.bf16.gmra.mxu0 %v3014
        %v3265 = vpop.f32.mrf.mxu0
        %v3266 = vadd.f32 %v2761, %v3265
        %v3267 = vpop.f32.mrf.mxu0
        %v3268 = vadd.f32 %v2766, %v3267
        %3269 = vmatmul.bf16.gmra.mxu0 %v3016
        %v3270 = vpop.f32.mrf.mxu0
        %v3271 = vadd.f32 %v2771, %v3270
        %v3272 = vpop.f32.mrf.mxu0
        %v3273 = vadd.f32 %v2776, %v3272
        %3274 = vmatmul.bf16.gmra.mxu0 %v3018
        %v3275 = vpop.f32.mrf.mxu0
        %v3276 = vadd.f32 %v2781, %v3275
        %v3277 = vpop.f32.mrf.mxu0
        %v3278 = vadd.f32 %v2786, %v3277
        %3279 = vmatmul.bf16.gmra.mxu0 %v3020
        %v3280 = vpop.f32.mrf.mxu0
        %v3281 = vadd.f32 %v2791, %v3280
        %v3282 = vpop.f32.mrf.mxu0
        %v3283 = vadd.f32 %v2796, %v3282
        %3284 = vmatmul.bf16.gmra.mxu0 %v3022
        %v3285 = vpop.f32.mrf.mxu0
        %v3286 = vadd.f32 %v2801, %v3285
        %v3287 = vpop.f32.mrf.mxu0
        %v3288 = vadd.f32 %v2806, %v3287
        %3289 = vmatmul.bf16.gmra.mxu0 %v3024
        %v3290 = vpop.f32.mrf.mxu0
        %v3291 = vadd.f32 %v2811, %v3290
        %v3292 = vpop.f32.mrf.mxu0
        %v3293 = vadd.f32 %v2816, %v3292
        %3294 = vmatmul.bf16.gmra.mxu0 %v3026
        %v3295 = vpop.f32.mrf.mxu0
        %v3296 = vadd.f32 %v2821, %v3295
        %v3297 = vpop.f32.mrf.mxu0
        %v3298 = vadd.f32 %v2826, %v3297
        %3299 = vmatmul.bf16.gmra.mxu0 %v3028
        %v3300 = vpop.f32.mrf.mxu0
        %v3301 = vadd.f32 %v2831, %v3300
        %v3302 = vpop.f32.mrf.mxu0
        %v3303 = vadd.f32 %v2836, %v3302
        %3304 = vmatmul.bf16.gmra.mxu0 %v3030
        %v3305 = vpop.f32.mrf.mxu0
        %v3306 = vadd.f32 %v2841, %v3305
        %v3307 = vpop.f32.mrf.mxu0
        %v3308 = vadd.f32 %v2846, %v3307
        %3309 = vmatmul.bf16.gmra.mxu0 %v3032
        %v3310 = vpop.f32.mrf.mxu0
        %v3311 = vadd.f32 %v2851, %v3310
        %v3312 = vpop.f32.mrf.mxu0
        %v3313 = vadd.f32 %v2856, %v3312
        %3314 = vmatmul.bf16.gmra.mxu0 %v3034
        %v3315 = vpop.f32.mrf.mxu0
        %v3316 = vadd.f32 %v2861, %v3315
        %v3317 = vpop.f32.mrf.mxu0
        %v3318 = vadd.f32 %v2866, %v3317
        %3319 = vmatmul.bf16.gmra.mxu0 %v3036
        %v3320 = vpop.f32.mrf.mxu0
        %v3321 = vadd.f32 %v2871, %v3320
        %v3322 = vpop.f32.mrf.mxu0
        %v3323 = vadd.f32 %v2876, %v3322
        %3324 = vmatmul.bf16.gmra.mxu0 %v3038
        %v3325 = vpop.f32.mrf.mxu0
        %v3326 = vadd.f32 %v2881, %v3325
        %v3327 = vpop.f32.mrf.mxu0
        %v3328 = vadd.f32 %v2886, %v3327
        %3329 = vmatmul.bf16.gmra.mxu0 %v3040
        %v3330 = vpop.f32.mrf.mxu0
        %v3331 = vadd.f32 %v2891, %v3330
        %v3332 = vpop.f32.mrf.mxu0
        %v3333 = vadd.f32 %v2896, %v3332
        %3334 = vmatmul.bf16.gmra.mxu0 %v3042
        %v3335 = vpop.f32.mrf.mxu0
        %v3336 = vadd.f32 %v2901, %v3335
        %v3337 = vpop.f32.mrf.mxu0
        %v3338 = vadd.f32 %v2906, %v3337
        %3339 = vmatmul.bf16.gmra.mxu0 %v3044
        %v3340 = vpop.f32.mrf.mxu0
        %v3341 = vadd.f32 %v2911, %v3340
        %v3342 = vpop.f32.mrf.mxu0
        %v3343 = vadd.f32 %v2916, %v3342
        %3344 = vdwg.mxu0
        %3345 = vmatpush.bf16.msra.mxu0 %v2725
        %3346 = vmatpush.bf16.msra.mxu0 %v2723
        %3347 = vmatpush.bf16.msra.mxu0 %v2721
        %3348 = vmatpush.bf16.msra.mxu0 %v2719
        %3349 = vmatpush.bf16.msra.mxu0 %v2717
        %3350 = vmatpush.bf16.msra.mxu0 %v2715
        %3351 = vmatpush.bf16.msra.mxu0 %v2713
        %3352 = vmatpush.bf16.msra.mxu0 %v2711
        %3353 = vmatmul.bf16.gmra.mxu0 %v3015
        %v3354 = vpop.f32.mrf.mxu0
        %v3355 = vadd.f32 %v3266, %v3354
        %v3356 = vpop.f32.mrf.mxu0
        %v3357 = vadd.f32 %v3268, %v3356
        %3358 = vmatmul.bf16.gmra.mxu0 %v3017
        %v3359 = vpop.f32.mrf.mxu0
        %v3360 = vadd.f32 %v3271, %v3359
        %v3361 = vpop.f32.mrf.mxu0
        %v3362 = vadd.f32 %v3273, %v3361
        %3363 = vmatmul.bf16.gmra.mxu0 %v3019
        %v3364 = vpop.f32.mrf.mxu0
        %v3365 = vadd.f32 %v3276, %v3364
        %v3366 = vpop.f32.mrf.mxu0
        %v3367 = vadd.f32 %v3278, %v3366
        %3368 = vmatmul.bf16.gmra.mxu0 %v3021
        %v3369 = vpop.f32.mrf.mxu0
        %v3370 = vadd.f32 %v3281, %v3369
        %v3371 = vpop.f32.mrf.mxu0
        %v3372 = vadd.f32 %v3283, %v3371
        %3373 = vmatmul.bf16.gmra.mxu0 %v3023
        %v3374 = vpop.f32.mrf.mxu0
        %v3375 = vadd.f32 %v3286, %v3374
        %v3376 = vpop.f32.mrf.mxu0
        %v3377 = vadd.f32 %v3288, %v3376
        %3378 = vmatmul.bf16.gmra.mxu0 %v3025
        %v3379 = vpop.f32.mrf.mxu0
        %v3380 = vadd.f32 %v3291, %v3379
        %v3381 = vpop.f32.mrf.mxu0
        %v3382 = vadd.f32 %v3293, %v3381
        %3383 = vmatmul.bf16.gmra.mxu0 %v3027
        %v3384 = vpop.f32.mrf.mxu0
        %v3385 = vadd.f32 %v3296, %v3384
        %v3386 = vpop.f32.mrf.mxu0
        %v3387 = vadd.f32 %v3298, %v3386
        %3388 = vmatmul.bf16.gmra.mxu0 %v3029
        %v3389 = vpop.f32.mrf.mxu0
        %v3390 = vadd.f32 %v3301, %v3389
        %v3391 = vpop.f32.mrf.mxu0
        %v3392 = vadd.f32 %v3303, %v3391
        %3393 = vmatmul.bf16.gmra.mxu0 %v3031
        %v3394 = vpop.f32.mrf.mxu0
        %v3395 = vadd.f32 %v3306, %v3394
        %v3396 = vpop.f32.mrf.mxu0
        %v3397 = vadd.f32 %v3308, %v3396
        %3398 = vmatmul.bf16.gmra.mxu0 %v3033
        %v3399 = vpop.f32.mrf.mxu0
        %v3400 = vadd.f32 %v3311, %v3399
        %v3401 = vpop.f32.mrf.mxu0
        %v3402 = vadd.f32 %v3313, %v3401
        %3403 = vmatmul.bf16.gmra.mxu0 %v3035
        %v3404 = vpop.f32.mrf.mxu0
        %v3405 = vadd.f32 %v3316, %v3404
        %v3406 = vpop.f32.mrf.mxu0
        %v3407 = vadd.f32 %v3318, %v3406
        %3408 = vmatmul.bf16.gmra.mxu0 %v3037
        %v3409 = vpop.f32.mrf.mxu0
        %v3410 = vadd.f32 %v3321, %v3409
        %v3411 = vpop.f32.mrf.mxu0
        %v3412 = vadd.f32 %v3323, %v3411
        %3413 = vmatmul.bf16.gmra.mxu0 %v3039
        %v3414 = vpop.f32.mrf.mxu0
        %v3415 = vadd.f32 %v3326, %v3414
        %v3416 = vpop.f32.mrf.mxu0
        %v3417 = vadd.f32 %v3328, %v3416
        %3418 = vmatmul.bf16.gmra.mxu0 %v3041
        %v3419 = vpop.f32.mrf.mxu0
        %v3420 = vadd.f32 %v3331, %v3419
        %v3421 = vpop.f32.mrf.mxu0
        %v3422 = vadd.f32 %v3333, %v3421
        %3423 = vmatmul.bf16.gmra.mxu0 %v3043
        %v3424 = vpop.f32.mrf.mxu0
        %v3425 = vadd.f32 %v3336, %v3424
        %v3426 = vpop.f32.mrf.mxu0
        %v3427 = vadd.f32 %v3338, %v3426
        %3428 = vmatmul.bf16.gmra.mxu0 %v3045
        %v3429 = vpop.f32.mrf.mxu0
        %v3430 = vadd.f32 %v3341, %v3429
        %v3431 = vpop.f32.mrf.mxu0
        %v3432 = vadd.f32 %v3343, %v3431
        %3433 = vdwg.mxu0
        %vm3434 = vcmp.gt.f32.partialorder %v3177, 0.0
        %vm3435 = vcmp.gt.f32.partialorder %v3355, 0.0
        %vm3436 = vcmp.gt.f32.partialorder %v3179, 0.0
        %vm3437 = vcmp.gt.f32.partialorder %v3357, 0.0
        %vm3438 = vcmp.gt.f32.partialorder %v3182, 0.0
        %vm3439 = vcmp.gt.f32.partialorder %v3360, 0.0
        %vm3440 = vcmp.gt.f32.partialorder %v3184, 0.0
        %vm3441 = vcmp.gt.f32.partialorder %v3362, 0.0
        %vm3442 = vcmp.gt.f32.partialorder %v3187, 0.0
        %vm3443 = vcmp.gt.f32.partialorder %v3365, 0.0
        %vm3444 = vcmp.gt.f32.partialorder %v3189, 0.0
        %vm3445 = vcmp.gt.f32.partialorder %v3367, 0.0
        %vm3446 = vcmp.gt.f32.partialorder %v3192, 0.0
        %vm3447 = vcmp.gt.f32.partialorder %v3370, 0.0
        %vm3448 = vcmp.gt.f32.partialorder %v3194, 0.0
        %vm3449 = vcmp.gt.f32.partialorder %v3372, 0.0
        %vm3450 = vcmp.gt.f32.partialorder %v3197, 0.0
        %vm3451 = vcmp.gt.f32.partialorder %v3375, 0.0
        %vm3452 = vcmp.gt.f32.partialorder %v3199, 0.0
        %vm3453 = vcmp.gt.f32.partialorder %v3377, 0.0
        %vm3454 = vcmp.gt.f32.partialorder %v3202, 0.0
        %vm3455 = vcmp.gt.f32.partialorder %v3380, 0.0
        %vm3456 = vcmp.gt.f32.partialorder %v3204, 0.0
        %vm3457 = vcmp.gt.f32.partialorder %v3382, 0.0
        %vm3458 = vcmp.gt.f32.partialorder %v3207, 0.0
        %vm3459 = vcmp.gt.f32.partialorder %v3385, 0.0
        %vm3460 = vcmp.gt.f32.partialorder %v3209, 0.0
        %vm3461 = vcmp.gt.f32.partialorder %v3387, 0.0
        %vm3462 = vcmp.gt.f32.partialorder %v3212, 0.0
        %vm3463 = vcmp.gt.f32.partialorder %v3390, 0.0
        %vm3464 = vcmp.gt.f32.partialorder %v3214, 0.0
        %vm3465 = vcmp.gt.f32.partialorder %v3392, 0.0
        %vm3466 = vcmp.gt.f32.partialorder %v3217, 0.0
        %vm3467 = vcmp.gt.f32.partialorder %v3395, 0.0
        %vm3468 = vcmp.gt.f32.partialorder %v3219, 0.0
        %vm3469 = vcmp.gt.f32.partialorder %v3397, 0.0
        %vm3470 = vcmp.gt.f32.partialorder %v3222, 0.0
        %vm3471 = vcmp.gt.f32.partialorder %v3400, 0.0
        %vm3472 = vcmp.gt.f32.partialorder %v3224, 0.0
        %vm3473 = vcmp.gt.f32.partialorder %v3402, 0.0
        %vm3474 = vcmp.gt.f32.partialorder %v3227, 0.0
        %vm3475 = vcmp.gt.f32.partialorder %v3405, 0.0
        %vm3476 = vcmp.gt.f32.partialorder %v3229, 0.0
        %vm3477 = vcmp.gt.f32.partialorder %v3407, 0.0
        %vm3478 = vcmp.gt.f32.partialorder %v3232, 0.0
        %vm3479 = vcmp.gt.f32.partialorder %v3410, 0.0
        %vm3480 = vcmp.gt.f32.partialorder %v3234, 0.0
        %vm3481 = vcmp.gt.f32.partialorder %v3412, 0.0
        %vm3482 = vcmp.gt.f32.partialorder %v3237, 0.0
        %vm3483 = vcmp.gt.f32.partialorder %v3415, 0.0
        %vm3484 = vcmp.gt.f32.partialorder %v3239, 0.0
        %vm3485 = vcmp.gt.f32.partialorder %v3417, 0.0
        %vm3486 = vcmp.gt.f32.partialorder %v3242, 0.0
        %vm3487 = vcmp.gt.f32.partialorder %v3420, 0.0
        %vm3488 = vcmp.gt.f32.partialorder %v3244, 0.0
        %vm3489 = vcmp.gt.f32.partialorder %v3422, 0.0
        %vm3490 = vcmp.gt.f32.partialorder %v3247, 0.0
        %vm3491 = vcmp.gt.f32.partialorder %v3425, 0.0
        %vm3492 = vcmp.gt.f32.partialorder %v3249, 0.0
        %vm3493 = vcmp.gt.f32.partialorder %v3427, 0.0
        %vm3494 = vcmp.gt.f32.partialorder %v3252, 0.0
        %vm3495 = vcmp.gt.f32.partialorder %v3430, 0.0
        %vm3496 = vcmp.gt.f32.partialorder %v3254, 0.0
        %vm3497 = vcmp.gt.f32.partialorder %v3432, 0.0
        %v3498 = vmul.f32 %v3177, 0.2
        %v3499 = vmul.f32 %v3355, 0.2
        %v3500 = vmul.f32 %v3179, 0.2
        %v3501 = vmul.f32 %v3357, 0.2
        %v3502 = vmul.f32 %v3182, 0.2
        %v3503 = vmul.f32 %v3360, 0.2
        %v3504 = vmul.f32 %v3184, 0.2
        %v3505 = vmul.f32 %v3362, 0.2
        %v3506 = vmul.f32 %v3187, 0.2
        %v3507 = vmul.f32 %v3365, 0.2
        %v3508 = vmul.f32 %v3189, 0.2
        %v3509 = vmul.f32 %v3367, 0.2
        %v3510 = vmul.f32 %v3192, 0.2
        %v3511 = vmul.f32 %v3370, 0.2
        %v3512 = vmul.f32 %v3194, 0.2
        %v3513 = vmul.f32 %v3372, 0.2
        %v3514 = vmul.f32 %v3197, 0.2
        %v3515 = vmul.f32 %v3375, 0.2
        %v3516 = vmul.f32 %v3199, 0.2
        %v3517 = vmul.f32 %v3377, 0.2
        %v3518 = vmul.f32 %v3202, 0.2
        %v3519 = vmul.f32 %v3380, 0.2
        %v3520 = vmul.f32 %v3204, 0.2
        %v3521 = vmul.f32 %v3382, 0.2
        %v3522 = vmul.f32 %v3207, 0.2
        %v3523 = vmul.f32 %v3385, 0.2
        %v3524 = vmul.f32 %v3209, 0.2
        %v3525 = vmul.f32 %v3387, 0.2
        %v3526 = vmul.f32 %v3212, 0.2
        %v3527 = vmul.f32 %v3390, 0.2
        %v3528 = vmul.f32 %v3214, 0.2
        %v3529 = vmul.f32 %v3392, 0.2
        %v3530 = vmul.f32 %v3217, 0.2
        %v3531 = vmul.f32 %v3395, 0.2
        %v3532 = vmul.f32 %v3219, 0.2
        %v3533 = vmul.f32 %v3397, 0.2
        %v3534 = vmul.f32 %v3222, 0.2
        %v3535 = vmul.f32 %v3400, 0.2
        %v3536 = vmul.f32 %v3224, 0.2
        %v3537 = vmul.f32 %v3402, 0.2
        %v3538 = vmul.f32 %v3227, 0.2
        %v3539 = vmul.f32 %v3405, 0.2
        %v3540 = vmul.f32 %v3229, 0.2
        %v3541 = vmul.f32 %v3407, 0.2
        %v3542 = vmul.f32 %v3232, 0.2
        %v3543 = vmul.f32 %v3410, 0.2
        %v3544 = vmul.f32 %v3234, 0.2
        %v3545 = vmul.f32 %v3412, 0.2
        %v3546 = vmul.f32 %v3237, 0.2
        %v3547 = vmul.f32 %v3415, 0.2
        %v3548 = vmul.f32 %v3239, 0.2
        %v3549 = vmul.f32 %v3417, 0.2
        %v3550 = vmul.f32 %v3242, 0.2
        %v3551 = vmul.f32 %v3420, 0.2
        %v3552 = vmul.f32 %v3244, 0.2
        %v3553 = vmul.f32 %v3422, 0.2
        %v3554 = vmul.f32 %v3247, 0.2
        %v3555 = vmul.f32 %v3425, 0.2
        %v3556 = vmul.f32 %v3249, 0.2
        %v3557 = vmul.f32 %v3427, 0.2
        %v3558 = vmul.f32 %v3252, 0.2
        %v3559 = vmul.f32 %v3430, 0.2
        %v3560 = vmul.f32 %v3254, 0.2
        %v3561 = vmul.f32 %v3432, 0.2
        %v3562 = vsel %vm3434, %v3177, %v3498
        %v3563 = vsel %vm3435, %v3355, %v3499
        %v3564 = vsel %vm3436, %v3179, %v3500
        %v3565 = vsel %vm3437, %v3357, %v3501
        %v3566 = vsel %vm3438, %v3182, %v3502
        %v3567 = vsel %vm3439, %v3360, %v3503
        %v3568 = vsel %vm3440, %v3184, %v3504
        %v3569 = vsel %vm3441, %v3362, %v3505
        %v3570 = vsel %vm3442, %v3187, %v3506
        %v3571 = vsel %vm3443, %v3365, %v3507
        %v3572 = vsel %vm3444, %v3189, %v3508
        %v3573 = vsel %vm3445, %v3367, %v3509
        %v3574 = vsel %vm3446, %v3192, %v3510
        %v3575 = vsel %vm3447, %v3370, %v3511
        %v3576 = vsel %vm3448, %v3194, %v3512
        %v3577 = vsel %vm3449, %v3372, %v3513
        %v3578 = vsel %vm3450, %v3197, %v3514
        %v3579 = vsel %vm3451, %v3375, %v3515
        %v3580 = vsel %vm3452, %v3199, %v3516
        %v3581 = vsel %vm3453, %v3377, %v3517
        %v3582 = vsel %vm3454, %v3202, %v3518
        %v3583 = vsel %vm3455, %v3380, %v3519
        %v3584 = vsel %vm3456, %v3204, %v3520
        %v3585 = vsel %vm3457, %v3382, %v3521
        %v3586 = vsel %vm3458, %v3207, %v3522
        %v3587 = vsel %vm3459, %v3385, %v3523
        %v3588 = vsel %vm3460, %v3209, %v3524
        %v3589 = vsel %vm3461, %v3387, %v3525
        %v3590 = vsel %vm3462, %v3212, %v3526
        %v3591 = vsel %vm3463, %v3390, %v3527
        %v3592 = vsel %vm3464, %v3214, %v3528
        %v3593 = vsel %vm3465, %v3392, %v3529
        %v3594 = vsel %vm3466, %v3217, %v3530
        %v3595 = vsel %vm3467, %v3395, %v3531
        %v3596 = vsel %vm3468, %v3219, %v3532
        %v3597 = vsel %vm3469, %v3397, %v3533
        %v3598 = vsel %vm3470, %v3222, %v3534
        %v3599 = vsel %vm3471, %v3400, %v3535
        %v3600 = vsel %vm3472, %v3224, %v3536
        %v3601 = vsel %vm3473, %v3402, %v3537
        %v3602 = vsel %vm3474, %v3227, %v3538
        %v3603 = vsel %vm3475, %v3405, %v3539
        %v3604 = vsel %vm3476, %v3229, %v3540
        %v3605 = vsel %vm3477, %v3407, %v3541
        %v3606 = vsel %vm3478, %v3232, %v3542
        %v3607 = vsel %vm3479, %v3410, %v3543
        %v3608 = vsel %vm3480, %v3234, %v3544
        %v3609 = vsel %vm3481, %v3412, %v3545
        %v3610 = vsel %vm3482, %v3237, %v3546
        %v3611 = vsel %vm3483, %v3415, %v3547
        %v3612 = vsel %vm3484, %v3239, %v3548
        %v3613 = vsel %vm3485, %v3417, %v3549
        %v3614 = vsel %vm3486, %v3242, %v3550
        %v3615 = vsel %vm3487, %v3420, %v3551
        %v3616 = vsel %vm3488, %v3244, %v3552
        %v3617 = vsel %vm3489, %v3422, %v3553
        %v3618 = vsel %vm3490, %v3247, %v3554
        %v3619 = vsel %vm3491, %v3425, %v3555
        %v3620 = vsel %vm3492, %v3249, %v3556
        %v3621 = vsel %vm3493, %v3427, %v3557
        %v3622 = vsel %vm3494, %v3252, %v3558
        %v3623 = vsel %vm3495, %v3430, %v3559
        %v3624 = vsel %vm3496, %v3254, %v3560
        %v3625 = vsel %vm3497, %v3432, %v3561
        %v3626 = vld [vmem:[%s9] sm:$0xff]
        %v3627 = vld [vmem:[%s9 + $0x8] sm:$0xff]
        %v3628 = vld [vmem:[%s9 + $0x10] sm:$0xff]
        %v3629 = vld [vmem:[%s9 + $0x18] sm:$0xff]
        %v3630 = vld [vmem:[%s9 + $0x20] sm:$0xff]
        %v3631 = vld [vmem:[%s9 + $0x28] sm:$0xff]
        %v3632 = vld [vmem:[%s9 + $0x30] sm:$0xff]
        %v3633 = vld [vmem:[%s9 + $0x38] sm:$0xff]
        %v3634 = vld [vmem:[%s9 + $0x40] sm:$0xff]
        %v3635 = vld [vmem:[%s9 + $0x48] sm:$0xff]
        %v3636 = vld [vmem:[%s9 + $0x50] sm:$0xff]
        %v3637 = vld [vmem:[%s9 + $0x58] sm:$0xff]
        %v3638 = vld [vmem:[%s9 + $0x60] sm:$0xff]
        %v3639 = vld [vmem:[%s9 + $0x68] sm:$0xff]
        %v3640 = vld [vmem:[%s9 + $0x70] sm:$0xff]
        %v3641 = vld [vmem:[%s9 + $0x78] sm:$0xff]
        %v3642 = vld [vmem:[%s9 + $0x80] sm:$0xff]
        %v3643 = vld [vmem:[%s9 + $0x88] sm:$0xff]
        %v3644 = vld [vmem:[%s9 + $0x90] sm:$0xff]
        %v3645 = vld [vmem:[%s9 + $0x98] sm:$0xff]
        %v3646 = vld [vmem:[%s9 + $0xa0] sm:$0xff]
        %v3647 = vld [vmem:[%s9 + $0xa8] sm:$0xff]
        %v3648 = vld [vmem:[%s9 + $0xb0] sm:$0xff]
        %v3649 = vld [vmem:[%s9 + $0xb8] sm:$0xff]
        %v3650 = vld [vmem:[%s9 + $0xc0] sm:$0xff]
        %v3651 = vld [vmem:[%s9 + $0xc8] sm:$0xff]
        %v3652 = vld [vmem:[%s9 + $0xd0] sm:$0xff]
        %v3653 = vld [vmem:[%s9 + $0xd8] sm:$0xff]
        %v3654 = vld [vmem:[%s9 + $0xe0] sm:$0xff]
        %v3655 = vld [vmem:[%s9 + $0xe8] sm:$0xff]
        %v3656 = vld [vmem:[%s9 + $0xf0] sm:$0xff]
        %v3657 = vld [vmem:[%s9 + $0xf8] sm:$0xff]
        %v3658 = vpack.c.bf16 %v3564, %v3562
        %v3659 = vpack.c.bf16 %v3565, %v3563
        %v3660 = vpack.c.bf16 %v3568, %v3566
        %v3661 = vpack.c.bf16 %v3569, %v3567
        %v3662 = vpack.c.bf16 %v3572, %v3570
        %v3663 = vpack.c.bf16 %v3573, %v3571
        %v3664 = vpack.c.bf16 %v3576, %v3574
        %v3665 = vpack.c.bf16 %v3577, %v3575
        %v3666 = vpack.c.bf16 %v3580, %v3578
        %v3667 = vpack.c.bf16 %v3581, %v3579
        %v3668 = vpack.c.bf16 %v3584, %v3582
        %v3669 = vpack.c.bf16 %v3585, %v3583
        %v3670 = vpack.c.bf16 %v3588, %v3586
        %v3671 = vpack.c.bf16 %v3589, %v3587
        %v3672 = vpack.c.bf16 %v3592, %v3590
        %v3673 = vpack.c.bf16 %v3593, %v3591
        %v3674 = vpack.c.bf16 %v3596, %v3594
        %v3675 = vpack.c.bf16 %v3597, %v3595
        %v3676 = vpack.c.bf16 %v3600, %v3598
        %v3677 = vpack.c.bf16 %v3601, %v3599
        %v3678 = vpack.c.bf16 %v3604, %v3602
        %v3679 = vpack.c.bf16 %v3605, %v3603
        %v3680 = vpack.c.bf16 %v3608, %v3606
        %v3681 = vpack.c.bf16 %v3609, %v3607
        %v3682 = vpack.c.bf16 %v3612, %v3610
        %v3683 = vpack.c.bf16 %v3613, %v3611
        %v3684 = vpack.c.bf16 %v3616, %v3614
        %v3685 = vpack.c.bf16 %v3617, %v3615
        %v3686 = vpack.c.bf16 %v3620, %v3618
        %v3687 = vpack.c.bf16 %v3621, %v3619
        %v3688 = vpack.c.bf16 %v3624, %v3622
        %v3689 = vpack.c.bf16 %v3625, %v3623
        %v3690 = vld [vmem:[%s10] sm:$0xff]
        %v3691 = vld [vmem:[%s10 + $0x8] sm:$0xff]
        %v3692 = vld [vmem:[%s10 + $0x10] sm:$0xff]
        %v3693 = vld [vmem:[%s10 + $0x18] sm:$0xff]
        %v3694 = vld [vmem:[%s10 + $0x20] sm:$0xff]
        %v3695 = vld [vmem:[%s10 + $0x28] sm:$0xff]
        %v3696 = vld [vmem:[%s10 + $0x30] sm:$0xff]
        %v3697 = vld [vmem:[%s10 + $0x38] sm:$0xff]
        %v3698 = vld [vmem:[%s10 + $0x40] sm:$0xff]
        %v3699 = vld [vmem:[%s10 + $0x48] sm:$0xff]
        %v3700 = vld [vmem:[%s10 + $0x50] sm:$0xff]
        %v3701 = vld [vmem:[%s10 + $0x58] sm:$0xff]
        %v3702 = vld [vmem:[%s10 + $0x60] sm:$0xff]
        %v3703 = vld [vmem:[%s10 + $0x68] sm:$0xff]
        %v3704 = vld [vmem:[%s10 + $0x70] sm:$0xff]
        %v3705 = vld [vmem:[%s10 + $0x78] sm:$0xff]
        %v3706 = vld [vmem:[%s10 + $0x80] sm:$0xff]
        %v3707 = vld [vmem:[%s10 + $0x88] sm:$0xff]
        %v3708 = vld [vmem:[%s10 + $0x90] sm:$0xff]
        %v3709 = vld [vmem:[%s10 + $0x98] sm:$0xff]
        %v3710 = vld [vmem:[%s10 + $0xa0] sm:$0xff]
        %v3711 = vld [vmem:[%s10 + $0xa8] sm:$0xff]
        %v3712 = vld [vmem:[%s10 + $0xb0] sm:$0xff]
        %v3713 = vld [vmem:[%s10 + $0xb8] sm:$0xff]
        %v3714 = vld [vmem:[%s10 + $0xc0] sm:$0xff]
        %v3715 = vld [vmem:[%s10 + $0xc8] sm:$0xff]
        %v3716 = vld [vmem:[%s10 + $0xd0] sm:$0xff]
        %v3717 = vld [vmem:[%s10 + $0xd8] sm:$0xff]
        %v3718 = vld [vmem:[%s10 + $0xe0] sm:$0xff]
        %v3719 = vld [vmem:[%s10 + $0xe8] sm:$0xff]
        %v3720 = vld [vmem:[%s10 + $0xf0] sm:$0xff]
        %v3721 = vld [vmem:[%s10 + $0xf8] sm:$0xff]
        %3723 = vset.pattern.permute.xlu0 0
        %3724 = vperm.xlu0 %3723, %v3690
        %v3725 = vpop.permute.xlu0 %3724
        %3728 = vset.pattern.permute.xlu0 0
        %3729 = vperm.xlu0 %3728, %v3691
        %v3730 = vpop.permute.xlu0 %3729
        %3733 = vset.pattern.permute.xlu0 0
        %3734 = vperm.xlu0 %3733, %v3692
        %v3735 = vpop.permute.xlu0 %3734
        %3738 = vset.pattern.permute.xlu0 0
        %3739 = vperm.xlu0 %3738, %v3693
        %v3740 = vpop.permute.xlu0 %3739
        %3743 = vset.pattern.permute.xlu0 0
        %3744 = vperm.xlu0 %3743, %v3694
        %v3745 = vpop.permute.xlu0 %3744
        %3748 = vset.pattern.permute.xlu0 0
        %3749 = vperm.xlu0 %3748, %v3695
        %v3750 = vpop.permute.xlu0 %3749
        %3753 = vset.pattern.permute.xlu0 0
        %3754 = vperm.xlu0 %3753, %v3696
        %v3755 = vpop.permute.xlu0 %3754
        %3758 = vset.pattern.permute.xlu0 0
        %3759 = vperm.xlu0 %3758, %v3697
        %v3760 = vpop.permute.xlu0 %3759
        %3763 = vset.pattern.permute.xlu0 0
        %3764 = vperm.xlu0 %3763, %v3698
        %v3765 = vpop.permute.xlu0 %3764
        %3768 = vset.pattern.permute.xlu0 0
        %3769 = vperm.xlu0 %3768, %v3699
        %v3770 = vpop.permute.xlu0 %3769
        %3773 = vset.pattern.permute.xlu0 0
        %3774 = vperm.xlu0 %3773, %v3700
        %v3775 = vpop.permute.xlu0 %3774
        %3778 = vset.pattern.permute.xlu0 0
        %3779 = vperm.xlu0 %3778, %v3701
        %v3780 = vpop.permute.xlu0 %3779
        %3783 = vset.pattern.permute.xlu0 0
        %3784 = vperm.xlu0 %3783, %v3702
        %v3785 = vpop.permute.xlu0 %3784
        %3788 = vset.pattern.permute.xlu0 0
        %3789 = vperm.xlu0 %3788, %v3703
        %v3790 = vpop.permute.xlu0 %3789
        %3793 = vset.pattern.permute.xlu0 0
        %3794 = vperm.xlu0 %3793, %v3704
        %v3795 = vpop.permute.xlu0 %3794
        %3798 = vset.pattern.permute.xlu0 0
        %3799 = vperm.xlu0 %3798, %v3705
        %v3800 = vpop.permute.xlu0 %3799
        %3803 = vset.pattern.permute.xlu0 0
        %3804 = vperm.xlu0 %3803, %v3706
        %v3805 = vpop.permute.xlu0 %3804
        %3808 = vset.pattern.permute.xlu0 0
        %3809 = vperm.xlu0 %3808, %v3707
        %v3810 = vpop.permute.xlu0 %3809
        %3813 = vset.pattern.permute.xlu0 0
        %3814 = vperm.xlu0 %3813, %v3708
        %v3815 = vpop.permute.xlu0 %3814
        %3818 = vset.pattern.permute.xlu0 0
        %3819 = vperm.xlu0 %3818, %v3709
        %v3820 = vpop.permute.xlu0 %3819
        %3823 = vset.pattern.permute.xlu0 0
        %3824 = vperm.xlu0 %3823, %v3710
        %v3825 = vpop.permute.xlu0 %3824
        %3828 = vset.pattern.permute.xlu0 0
        %3829 = vperm.xlu0 %3828, %v3711
        %v3830 = vpop.permute.xlu0 %3829
        %3833 = vset.pattern.permute.xlu0 0
        %3834 = vperm.xlu0 %3833, %v3712
        %v3835 = vpop.permute.xlu0 %3834
        %3838 = vset.pattern.permute.xlu0 0
        %3839 = vperm.xlu0 %3838, %v3713
        %v3840 = vpop.permute.xlu0 %3839
        %3843 = vset.pattern.permute.xlu0 0
        %3844 = vperm.xlu0 %3843, %v3714
        %v3845 = vpop.permute.xlu0 %3844
        %3848 = vset.pattern.permute.xlu0 0
        %3849 = vperm.xlu0 %3848, %v3715
        %v3850 = vpop.permute.xlu0 %3849
        %3853 = vset.pattern.permute.xlu0 0
        %3854 = vperm.xlu0 %3853, %v3716
        %v3855 = vpop.permute.xlu0 %3854
        %3858 = vset.pattern.permute.xlu0 0
        %3859 = vperm.xlu0 %3858, %v3717
        %v3860 = vpop.permute.xlu0 %3859
        %3863 = vset.pattern.permute.xlu0 0
        %3864 = vperm.xlu0 %3863, %v3718
        %v3865 = vpop.permute.xlu0 %3864
        %3868 = vset.pattern.permute.xlu0 0
        %3869 = vperm.xlu0 %3868, %v3719
        %v3870 = vpop.permute.xlu0 %3869
        %3873 = vset.pattern.permute.xlu0 0
        %3874 = vperm.xlu0 %3873, %v3720
        %v3875 = vpop.permute.xlu0 %3874
        %3878 = vset.pattern.permute.xlu0 0
        %3879 = vperm.xlu0 %3878, %v3721
        %v3880 = vpop.permute.xlu0 %3879
        %v3914 = vunpack.c.l.b16 %v3626
        %v3915 = vunpack.c.h.b16 %v3626
        %v3916 = vunpack.c.l.b16 %v3627
        %v3917 = vunpack.c.h.b16 %v3627
        %v3918 = vunpack.c.l.b16 %v3628
        %v3919 = vunpack.c.h.b16 %v3628
        %v3920 = vunpack.c.l.b16 %v3629
        %v3921 = vunpack.c.h.b16 %v3629
        %v3922 = vunpack.c.l.b16 %v3630
        %v3923 = vunpack.c.h.b16 %v3630
        %v3924 = vunpack.c.l.b16 %v3631
        %v3925 = vunpack.c.h.b16 %v3631
        %v3926 = vunpack.c.l.b16 %v3632
        %v3927 = vunpack.c.h.b16 %v3632
        %v3928 = vunpack.c.l.b16 %v3633
        %v3929 = vunpack.c.h.b16 %v3633
        %v3930 = vunpack.c.l.b16 %v3634
        %v3931 = vunpack.c.h.b16 %v3634
        %v3932 = vunpack.c.l.b16 %v3635
        %v3933 = vunpack.c.h.b16 %v3635
        %v3934 = vunpack.c.l.b16 %v3636
        %v3935 = vunpack.c.h.b16 %v3636
        %v3936 = vunpack.c.l.b16 %v3637
        %v3937 = vunpack.c.h.b16 %v3637
        %v3938 = vunpack.c.l.b16 %v3638
        %v3939 = vunpack.c.h.b16 %v3638
        %v3940 = vunpack.c.l.b16 %v3639
        %v3941 = vunpack.c.h.b16 %v3639
        %v3942 = vunpack.c.l.b16 %v3640
        %v3943 = vunpack.c.h.b16 %v3640
        %v3944 = vunpack.c.l.b16 %v3641
        %v3945 = vunpack.c.h.b16 %v3641
        %v3946 = vunpack.c.l.b16 %v3642
        %v3947 = vunpack.c.h.b16 %v3642
        %v3948 = vunpack.c.l.b16 %v3643
        %v3949 = vunpack.c.h.b16 %v3643
        %v3950 = vunpack.c.l.b16 %v3644
        %v3951 = vunpack.c.h.b16 %v3644
        %v3952 = vunpack.c.l.b16 %v3645
        %v3953 = vunpack.c.h.b16 %v3645
        %v3954 = vunpack.c.l.b16 %v3646
        %v3955 = vunpack.c.h.b16 %v3646
        %v3956 = vunpack.c.l.b16 %v3647
        %v3957 = vunpack.c.h.b16 %v3647
        %v3958 = vunpack.c.l.b16 %v3648
        %v3959 = vunpack.c.h.b16 %v3648
        %v3960 = vunpack.c.l.b16 %v3649
        %v3961 = vunpack.c.h.b16 %v3649
        %v3962 = vunpack.c.l.b16 %v3650
        %v3963 = vunpack.c.h.b16 %v3650
        %v3964 = vunpack.c.l.b16 %v3651
        %v3965 = vunpack.c.h.b16 %v3651
        %v3966 = vunpack.c.l.b16 %v3652
        %v3967 = vunpack.c.h.b16 %v3652
        %v3968 = vunpack.c.l.b16 %v3653
        %v3969 = vunpack.c.h.b16 %v3653
        %v3970 = vunpack.c.l.b16 %v3654
        %v3971 = vunpack.c.h.b16 %v3654
        %v3972 = vunpack.c.l.b16 %v3655
        %v3973 = vunpack.c.h.b16 %v3655
        %v3974 = vunpack.c.l.b16 %v3656
        %v3975 = vunpack.c.h.b16 %v3656
        %v3976 = vunpack.c.l.b16 %v3657
        %v3977 = vunpack.c.h.b16 %v3657
        %v3978 = vpack.c.b16 %v3916, %v3914
        %v3979 = vpack.c.b16 %v3917, %v3915
        %v3980 = vpack.c.b16 %v3920, %v3918
        %v3981 = vpack.c.b16 %v3921, %v3919
        %v3982 = vpack.c.b16 %v3924, %v3922
        %v3983 = vpack.c.b16 %v3925, %v3923
        %v3984 = vpack.c.b16 %v3928, %v3926
        %v3985 = vpack.c.b16 %v3929, %v3927
        %v3986 = vpack.c.b16 %v3932, %v3930
        %v3987 = vpack.c.b16 %v3933, %v3931
        %v3988 = vpack.c.b16 %v3936, %v3934
        %v3989 = vpack.c.b16 %v3937, %v3935
        %v3990 = vpack.c.b16 %v3940, %v3938
        %v3991 = vpack.c.b16 %v3941, %v3939
        %v3992 = vpack.c.b16 %v3944, %v3942
        %v3993 = vpack.c.b16 %v3945, %v3943
        %v3994 = vpack.c.b16 %v3948, %v3946
        %v3995 = vpack.c.b16 %v3949, %v3947
        %v3996 = vpack.c.b16 %v3952, %v3950
        %v3997 = vpack.c.b16 %v3953, %v3951
        %v3998 = vpack.c.b16 %v3956, %v3954
        %v3999 = vpack.c.b16 %v3957, %v3955
        %v4000 = vpack.c.b16 %v3960, %v3958
        %v4001 = vpack.c.b16 %v3961, %v3959
        %v4002 = vpack.c.b16 %v3964, %v3962
        %v4003 = vpack.c.b16 %v3965, %v3963
        %v4004 = vpack.c.b16 %v3968, %v3966
        %v4005 = vpack.c.b16 %v3969, %v3967
        %v4006 = vpack.c.b16 %v3972, %v3970
        %v4007 = vpack.c.b16 %v3973, %v3971
        %v4008 = vpack.c.b16 %v3976, %v3974
        %v4009 = vpack.c.b16 %v3977, %v3975
        %4042 = vmatpush.bf16.msra.mxu0 %v3672
        %4043 = vmatpush.bf16.msra.mxu0 %v3670
        %4044 = vmatpush.bf16.msra.mxu0 %v3668
        %4045 = vmatpush.bf16.msra.mxu0 %v3666
        %4046 = vmatpush.bf16.msra.mxu0 %v3664
        %4047 = vmatpush.bf16.msra.mxu0 %v3662
        %4048 = vmatpush.bf16.msra.mxu0 %v3660
        %4049 = vmatpush.bf16.msra.mxu0 %v3658
        %4050 = vmatmul.bf16.gmra.mxu0 %v3978
        %v4051 = vpop.f32.mrf.mxu0
        %v4052 = vadd.f32 %v3725, %v4051
        %v4053 = vpop.f32.mrf.mxu0
        %v4054 = vadd.f32 %v3730, %v4053
        %4055 = vmatmul.bf16.gmra.mxu0 %v3980
        %v4056 = vpop.f32.mrf.mxu0
        %v4057 = vadd.f32 %v3735, %v4056
        %v4058 = vpop.f32.mrf.mxu0
        %v4059 = vadd.f32 %v3740, %v4058
        %4060 = vmatmul.bf16.gmra.mxu0 %v3982
        %v4061 = vpop.f32.mrf.mxu0
        %v4062 = vadd.f32 %v3745, %v4061
        %v4063 = vpop.f32.mrf.mxu0
        %v4064 = vadd.f32 %v3750, %v4063
        %4065 = vmatmul.bf16.gmra.mxu0 %v3984
        %v4066 = vpop.f32.mrf.mxu0
        %v4067 = vadd.f32 %v3755, %v4066
        %v4068 = vpop.f32.mrf.mxu0
        %v4069 = vadd.f32 %v3760, %v4068
        %4070 = vmatmul.bf16.gmra.mxu0 %v3986
        %v4071 = vpop.f32.mrf.mxu0
        %v4072 = vadd.f32 %v3765, %v4071
        %v4073 = vpop.f32.mrf.mxu0
        %v4074 = vadd.f32 %v3770, %v4073
        %4075 = vmatmul.bf16.gmra.mxu0 %v3988
        %v4076 = vpop.f32.mrf.mxu0
        %v4077 = vadd.f32 %v3775, %v4076
        %v4078 = vpop.f32.mrf.mxu0
        %v4079 = vadd.f32 %v3780, %v4078
        %4080 = vmatmul.bf16.gmra.mxu0 %v3990
        %v4081 = vpop.f32.mrf.mxu0
        %v4082 = vadd.f32 %v3785, %v4081
        %v4083 = vpop.f32.mrf.mxu0
        %v4084 = vadd.f32 %v3790, %v4083
        %4085 = vmatmul.bf16.gmra.mxu0 %v3992
        %v4086 = vpop.f32.mrf.mxu0
        %v4087 = vadd.f32 %v3795, %v4086
        %v4088 = vpop.f32.mrf.mxu0
        %v4089 = vadd.f32 %v3800, %v4088
        %4090 = vmatmul.bf16.gmra.mxu0 %v3994
        %v4091 = vpop.f32.mrf.mxu0
        %v4092 = vadd.f32 %v3805, %v4091
        %v4093 = vpop.f32.mrf.mxu0
        %v4094 = vadd.f32 %v3810, %v4093
        %4095 = vmatmul.bf16.gmra.mxu0 %v3996
        %v4096 = vpop.f32.mrf.mxu0
        %v4097 = vadd.f32 %v3815, %v4096
        %v4098 = vpop.f32.mrf.mxu0
        %v4099 = vadd.f32 %v3820, %v4098
        %4100 = vmatmul.bf16.gmra.mxu0 %v3998
        %v4101 = vpop.f32.mrf.mxu0
        %v4102 = vadd.f32 %v3825, %v4101
        %v4103 = vpop.f32.mrf.mxu0
        %v4104 = vadd.f32 %v3830, %v4103
        %4105 = vmatmul.bf16.gmra.mxu0 %v4000
        %v4106 = vpop.f32.mrf.mxu0
        %v4107 = vadd.f32 %v3835, %v4106
        %v4108 = vpop.f32.mrf.mxu0
        %v4109 = vadd.f32 %v3840, %v4108
        %4110 = vmatmul.bf16.gmra.mxu0 %v4002
        %v4111 = vpop.f32.mrf.mxu0
        %v4112 = vadd.f32 %v3845, %v4111
        %v4113 = vpop.f32.mrf.mxu0
        %v4114 = vadd.f32 %v3850, %v4113
        %4115 = vmatmul.bf16.gmra.mxu0 %v4004
        %v4116 = vpop.f32.mrf.mxu0
        %v4117 = vadd.f32 %v3855, %v4116
        %v4118 = vpop.f32.mrf.mxu0
        %v4119 = vadd.f32 %v3860, %v4118
        %4120 = vmatmul.bf16.gmra.mxu0 %v4006
        %v4121 = vpop.f32.mrf.mxu0
        %v4122 = vadd.f32 %v3865, %v4121
        %v4123 = vpop.f32.mrf.mxu0
        %v4124 = vadd.f32 %v3870, %v4123
        %4125 = vmatmul.bf16.gmra.mxu0 %v4008
        %v4126 = vpop.f32.mrf.mxu0
        %v4127 = vadd.f32 %v3875, %v4126
        %v4128 = vpop.f32.mrf.mxu0
        %v4129 = vadd.f32 %v3880, %v4128
        %4130 = vdwg.mxu0
        %4131 = vmatpush.bf16.msra.mxu0 %v3688
        %4132 = vmatpush.bf16.msra.mxu0 %v3686
        %4133 = vmatpush.bf16.msra.mxu0 %v3684
        %4134 = vmatpush.bf16.msra.mxu0 %v3682
        %4135 = vmatpush.bf16.msra.mxu0 %v3680
        %4136 = vmatpush.bf16.msra.mxu0 %v3678
        %4137 = vmatpush.bf16.msra.mxu0 %v3676
        %4138 = vmatpush.bf16.msra.mxu0 %v3674
        %4139 = vmatmul.bf16.gmra.mxu0 %v3979
        %v4140 = vpop.f32.mrf.mxu0
        %v4141 = vadd.f32 %v4052, %v4140
        %v4142 = vpop.f32.mrf.mxu0
        %v4143 = vadd.f32 %v4054, %v4142
        %4144 = vmatmul.bf16.gmra.mxu0 %v3981
        %v4145 = vpop.f32.mrf.mxu0
        %v4146 = vadd.f32 %v4057, %v4145
        %v4147 = vpop.f32.mrf.mxu0
        %v4148 = vadd.f32 %v4059, %v4147
        %4149 = vmatmul.bf16.gmra.mxu0 %v3983
        %v4150 = vpop.f32.mrf.mxu0
        %v4151 = vadd.f32 %v4062, %v4150
        %v4152 = vpop.f32.mrf.mxu0
        %v4153 = vadd.f32 %v4064, %v4152
        %4154 = vmatmul.bf16.gmra.mxu0 %v3985
        %v4155 = vpop.f32.mrf.mxu0
        %v4156 = vadd.f32 %v4067, %v4155
        %v4157 = vpop.f32.mrf.mxu0
        %v4158 = vadd.f32 %v4069, %v4157
        %4159 = vmatmul.bf16.gmra.mxu0 %v3987
        %v4160 = vpop.f32.mrf.mxu0
        %v4161 = vadd.f32 %v4072, %v4160
        %v4162 = vpop.f32.mrf.mxu0
        %v4163 = vadd.f32 %v4074, %v4162
        %4164 = vmatmul.bf16.gmra.mxu0 %v3989
        %v4165 = vpop.f32.mrf.mxu0
        %v4166 = vadd.f32 %v4077, %v4165
        %v4167 = vpop.f32.mrf.mxu0
        %v4168 = vadd.f32 %v4079, %v4167
        %4169 = vmatmul.bf16.gmra.mxu0 %v3991
        %v4170 = vpop.f32.mrf.mxu0
        %v4171 = vadd.f32 %v4082, %v4170
        %v4172 = vpop.f32.mrf.mxu0
        %v4173 = vadd.f32 %v4084, %v4172
        %4174 = vmatmul.bf16.gmra.mxu0 %v3993
        %v4175 = vpop.f32.mrf.mxu0
        %v4176 = vadd.f32 %v4087, %v4175
        %v4177 = vpop.f32.mrf.mxu0
        %v4178 = vadd.f32 %v4089, %v4177
        %4179 = vmatmul.bf16.gmra.mxu0 %v3995
        %v4180 = vpop.f32.mrf.mxu0
        %v4181 = vadd.f32 %v4092, %v4180
        %v4182 = vpop.f32.mrf.mxu0
        %v4183 = vadd.f32 %v4094, %v4182
        %4184 = vmatmul.bf16.gmra.mxu0 %v3997
        %v4185 = vpop.f32.mrf.mxu0
        %v4186 = vadd.f32 %v4097, %v4185
        %v4187 = vpop.f32.mrf.mxu0
        %v4188 = vadd.f32 %v4099, %v4187
        %4189 = vmatmul.bf16.gmra.mxu0 %v3999
        %v4190 = vpop.f32.mrf.mxu0
        %v4191 = vadd.f32 %v4102, %v4190
        %v4192 = vpop.f32.mrf.mxu0
        %v4193 = vadd.f32 %v4104, %v4192
        %4194 = vmatmul.bf16.gmra.mxu0 %v4001
        %v4195 = vpop.f32.mrf.mxu0
        %v4196 = vadd.f32 %v4107, %v4195
        %v4197 = vpop.f32.mrf.mxu0
        %v4198 = vadd.f32 %v4109, %v4197
        %4199 = vmatmul.bf16.gmra.mxu0 %v4003
        %v4200 = vpop.f32.mrf.mxu0
        %v4201 = vadd.f32 %v4112, %v4200
        %v4202 = vpop.f32.mrf.mxu0
        %v4203 = vadd.f32 %v4114, %v4202
        %4204 = vmatmul.bf16.gmra.mxu0 %v4005
        %v4205 = vpop.f32.mrf.mxu0
        %v4206 = vadd.f32 %v4117, %v4205
        %v4207 = vpop.f32.mrf.mxu0
        %v4208 = vadd.f32 %v4119, %v4207
        %4209 = vmatmul.bf16.gmra.mxu0 %v4007
        %v4210 = vpop.f32.mrf.mxu0
        %v4211 = vadd.f32 %v4122, %v4210
        %v4212 = vpop.f32.mrf.mxu0
        %v4213 = vadd.f32 %v4124, %v4212
        %4214 = vmatmul.bf16.gmra.mxu0 %v4009
        %v4215 = vpop.f32.mrf.mxu0
        %v4216 = vadd.f32 %v4127, %v4215
        %v4217 = vpop.f32.mrf.mxu0
        %v4218 = vadd.f32 %v4129, %v4217
        %4219 = vdwg.mxu0
        %4220 = vmatpush.bf16.msra.mxu0 %v3673
        %4221 = vmatpush.bf16.msra.mxu0 %v3671
        %4222 = vmatpush.bf16.msra.mxu0 %v3669
        %4223 = vmatpush.bf16.msra.mxu0 %v3667
        %4224 = vmatpush.bf16.msra.mxu0 %v3665
        %4225 = vmatpush.bf16.msra.mxu0 %v3663
        %4226 = vmatpush.bf16.msra.mxu0 %v3661
        %4227 = vmatpush.bf16.msra.mxu0 %v3659
        %4228 = vmatmul.bf16.gmra.mxu0 %v3978
        %v4229 = vpop.f32.mrf.mxu0
        %v4230 = vadd.f32 %v3725, %v4229
        %v4231 = vpop.f32.mrf.mxu0
        %v4232 = vadd.f32 %v3730, %v4231
        %4233 = vmatmul.bf16.gmra.mxu0 %v3980
        %v4234 = vpop.f32.mrf.mxu0
        %v4235 = vadd.f32 %v3735, %v4234
        %v4236 = vpop.f32.mrf.mxu0
        %v4237 = vadd.f32 %v3740, %v4236
        %4238 = vmatmul.bf16.gmra.mxu0 %v3982
        %v4239 = vpop.f32.mrf.mxu0
        %v4240 = vadd.f32 %v3745, %v4239
        %v4241 = vpop.f32.mrf.mxu0
        %v4242 = vadd.f32 %v3750, %v4241
        %4243 = vmatmul.bf16.gmra.mxu0 %v3984
        %v4244 = vpop.f32.mrf.mxu0
        %v4245 = vadd.f32 %v3755, %v4244
        %v4246 = vpop.f32.mrf.mxu0
        %v4247 = vadd.f32 %v3760, %v4246
        %4248 = vmatmul.bf16.gmra.mxu0 %v3986
        %v4249 = vpop.f32.mrf.mxu0
        %v4250 = vadd.f32 %v3765, %v4249
        %v4251 = vpop.f32.mrf.mxu0
        %v4252 = vadd.f32 %v3770, %v4251
        %4253 = vmatmul.bf16.gmra.mxu0 %v3988
        %v4254 = vpop.f32.mrf.mxu0
        %v4255 = vadd.f32 %v3775, %v4254
        %v4256 = vpop.f32.mrf.mxu0
        %v4257 = vadd.f32 %v3780, %v4256
        %4258 = vmatmul.bf16.gmra.mxu0 %v3990
        %v4259 = vpop.f32.mrf.mxu0
        %v4260 = vadd.f32 %v3785, %v4259
        %v4261 = vpop.f32.mrf.mxu0
        %v4262 = vadd.f32 %v3790, %v4261
        %4263 = vmatmul.bf16.gmra.mxu0 %v3992
        %v4264 = vpop.f32.mrf.mxu0
        %v4265 = vadd.f32 %v3795, %v4264
        %v4266 = vpop.f32.mrf.mxu0
        %v4267 = vadd.f32 %v3800, %v4266
        %4268 = vmatmul.bf16.gmra.mxu0 %v3994
        %v4269 = vpop.f32.mrf.mxu0
        %v4270 = vadd.f32 %v3805, %v4269
        %v4271 = vpop.f32.mrf.mxu0
        %v4272 = vadd.f32 %v3810, %v4271
        %4273 = vmatmul.bf16.gmra.mxu0 %v3996
        %v4274 = vpop.f32.mrf.mxu0
        %v4275 = vadd.f32 %v3815, %v4274
        %v4276 = vpop.f32.mrf.mxu0
        %v4277 = vadd.f32 %v3820, %v4276
        %4278 = vmatmul.bf16.gmra.mxu0 %v3998
        %v4279 = vpop.f32.mrf.mxu0
        %v4280 = vadd.f32 %v3825, %v4279
        %v4281 = vpop.f32.mrf.mxu0
        %v4282 = vadd.f32 %v3830, %v4281
        %4283 = vmatmul.bf16.gmra.mxu0 %v4000
        %v4284 = vpop.f32.mrf.mxu0
        %v4285 = vadd.f32 %v3835, %v4284
        %v4286 = vpop.f32.mrf.mxu0
        %v4287 = vadd.f32 %v3840, %v4286
        %4288 = vmatmul.bf16.gmra.mxu0 %v4002
        %v4289 = vpop.f32.mrf.mxu0
        %v4290 = vadd.f32 %v3845, %v4289
        %v4291 = vpop.f32.mrf.mxu0
        %v4292 = vadd.f32 %v3850, %v4291
        %4293 = vmatmul.bf16.gmra.mxu0 %v4004
        %v4294 = vpop.f32.mrf.mxu0
        %v4295 = vadd.f32 %v3855, %v4294
        %v4296 = vpop.f32.mrf.mxu0
        %v4297 = vadd.f32 %v3860, %v4296
        %4298 = vmatmul.bf16.gmra.mxu0 %v4006
        %v4299 = vpop.f32.mrf.mxu0
        %v4300 = vadd.f32 %v3865, %v4299
        %v4301 = vpop.f32.mrf.mxu0
        %v4302 = vadd.f32 %v3870, %v4301
        %4303 = vmatmul.bf16.gmra.mxu0 %v4008
        %v4304 = vpop.f32.mrf.mxu0
        %v4305 = vadd.f32 %v3875, %v4304
        %v4306 = vpop.f32.mrf.mxu0
        %v4307 = vadd.f32 %v3880, %v4306
        %4308 = vdwg.mxu0
        %4309 = vmatpush.bf16.msra.mxu0 %v3689
        %4310 = vmatpush.bf16.msra.mxu0 %v3687
        %4311 = vmatpush.bf16.msra.mxu0 %v3685
        %4312 = vmatpush.bf16.msra.mxu0 %v3683
        %4313 = vmatpush.bf16.msra.mxu0 %v3681
        %4314 = vmatpush.bf16.msra.mxu0 %v3679
        %4315 = vmatpush.bf16.msra.mxu0 %v3677
        %4316 = vmatpush.bf16.msra.mxu0 %v3675
        %4317 = vmatmul.bf16.gmra.mxu0 %v3979
        %v4318 = vpop.f32.mrf.mxu0
        %v4319 = vadd.f32 %v4230, %v4318
        %v4320 = vpop.f32.mrf.mxu0
        %v4321 = vadd.f32 %v4232, %v4320
        %4322 = vmatmul.bf16.gmra.mxu0 %v3981
        %v4323 = vpop.f32.mrf.mxu0
        %v4324 = vadd.f32 %v4235, %v4323
        %v4325 = vpop.f32.mrf.mxu0
        %v4326 = vadd.f32 %v4237, %v4325
        %4327 = vmatmul.bf16.gmra.mxu0 %v3983
        %v4328 = vpop.f32.mrf.mxu0
        %v4329 = vadd.f32 %v4240, %v4328
        %v4330 = vpop.f32.mrf.mxu0
        %v4331 = vadd.f32 %v4242, %v4330
        %4332 = vmatmul.bf16.gmra.mxu0 %v3985
        %v4333 = vpop.f32.mrf.mxu0
        %v4334 = vadd.f32 %v4245, %v4333
        %v4335 = vpop.f32.mrf.mxu0
        %v4336 = vadd.f32 %v4247, %v4335
        %4337 = vmatmul.bf16.gmra.mxu0 %v3987
        %v4338 = vpop.f32.mrf.mxu0
        %v4339 = vadd.f32 %v4250, %v4338
        %v4340 = vpop.f32.mrf.mxu0
        %v4341 = vadd.f32 %v4252, %v4340
        %4342 = vmatmul.bf16.gmra.mxu0 %v3989
        %v4343 = vpop.f32.mrf.mxu0
        %v4344 = vadd.f32 %v4255, %v4343
        %v4345 = vpop.f32.mrf.mxu0
        %v4346 = vadd.f32 %v4257, %v4345
        %4347 = vmatmul.bf16.gmra.mxu0 %v3991
        %v4348 = vpop.f32.mrf.mxu0
        %v4349 = vadd.f32 %v4260, %v4348
        %v4350 = vpop.f32.mrf.mxu0
        %v4351 = vadd.f32 %v4262, %v4350
        %4352 = vmatmul.bf16.gmra.mxu0 %v3993
        %v4353 = vpop.f32.mrf.mxu0
        %v4354 = vadd.f32 %v4265, %v4353
        %v4355 = vpop.f32.mrf.mxu0
        %v4356 = vadd.f32 %v4267, %v4355
        %4357 = vmatmul.bf16.gmra.mxu0 %v3995
        %v4358 = vpop.f32.mrf.mxu0
        %v4359 = vadd.f32 %v4270, %v4358
        %v4360 = vpop.f32.mrf.mxu0
        %v4361 = vadd.f32 %v4272, %v4360
        %4362 = vmatmul.bf16.gmra.mxu0 %v3997
        %v4363 = vpop.f32.mrf.mxu0
        %v4364 = vadd.f32 %v4275, %v4363
        %v4365 = vpop.f32.mrf.mxu0
        %v4366 = vadd.f32 %v4277, %v4365
        %4367 = vmatmul.bf16.gmra.mxu0 %v3999
        %v4368 = vpop.f32.mrf.mxu0
        %v4369 = vadd.f32 %v4280, %v4368
        %v4370 = vpop.f32.mrf.mxu0
        %v4371 = vadd.f32 %v4282, %v4370
        %4372 = vmatmul.bf16.gmra.mxu0 %v4001
        %v4373 = vpop.f32.mrf.mxu0
        %v4374 = vadd.f32 %v4285, %v4373
        %v4375 = vpop.f32.mrf.mxu0
        %v4376 = vadd.f32 %v4287, %v4375
        %4377 = vmatmul.bf16.gmra.mxu0 %v4003
        %v4378 = vpop.f32.mrf.mxu0
        %v4379 = vadd.f32 %v4290, %v4378
        %v4380 = vpop.f32.mrf.mxu0
        %v4381 = vadd.f32 %v4292, %v4380
        %4382 = vmatmul.bf16.gmra.mxu0 %v4005
        %v4383 = vpop.f32.mrf.mxu0
        %v4384 = vadd.f32 %v4295, %v4383
        %v4385 = vpop.f32.mrf.mxu0
        %v4386 = vadd.f32 %v4297, %v4385
        %4387 = vmatmul.bf16.gmra.mxu0 %v4007
        %v4388 = vpop.f32.mrf.mxu0
        %v4389 = vadd.f32 %v4300, %v4388
        %v4390 = vpop.f32.mrf.mxu0
        %v4391 = vadd.f32 %v4302, %v4390
        %4392 = vmatmul.bf16.gmra.mxu0 %v4009
        %v4393 = vpop.f32.mrf.mxu0
        %v4394 = vadd.f32 %v4305, %v4393
        %v4395 = vpop.f32.mrf.mxu0
        %v4396 = vadd.f32 %v4307, %v4395
        %4397 = vdwg.mxu0
        %vm4398 = vcmp.gt.f32.partialorder %v4141, 0.0
        %vm4399 = vcmp.gt.f32.partialorder %v4319, 0.0
        %vm4400 = vcmp.gt.f32.partialorder %v4143, 0.0
        %vm4401 = vcmp.gt.f32.partialorder %v4321, 0.0
        %vm4402 = vcmp.gt.f32.partialorder %v4146, 0.0
        %vm4403 = vcmp.gt.f32.partialorder %v4324, 0.0
        %vm4404 = vcmp.gt.f32.partialorder %v4148, 0.0
        %vm4405 = vcmp.gt.f32.partialorder %v4326, 0.0
        %vm4406 = vcmp.gt.f32.partialorder %v4151, 0.0
        %vm4407 = vcmp.gt.f32.partialorder %v4329, 0.0
        %vm4408 = vcmp.gt.f32.partialorder %v4153, 0.0
        %vm4409 = vcmp.gt.f32.partialorder %v4331, 0.0
        %vm4410 = vcmp.gt.f32.partialorder %v4156, 0.0
        %vm4411 = vcmp.gt.f32.partialorder %v4334, 0.0
        %vm4412 = vcmp.gt.f32.partialorder %v4158, 0.0
        %vm4413 = vcmp.gt.f32.partialorder %v4336, 0.0
        %vm4414 = vcmp.gt.f32.partialorder %v4161, 0.0
        %vm4415 = vcmp.gt.f32.partialorder %v4339, 0.0
        %vm4416 = vcmp.gt.f32.partialorder %v4163, 0.0
        %vm4417 = vcmp.gt.f32.partialorder %v4341, 0.0
        %vm4418 = vcmp.gt.f32.partialorder %v4166, 0.0
        %vm4419 = vcmp.gt.f32.partialorder %v4344, 0.0
        %vm4420 = vcmp.gt.f32.partialorder %v4168, 0.0
        %vm4421 = vcmp.gt.f32.partialorder %v4346, 0.0
        %vm4422 = vcmp.gt.f32.partialorder %v4171, 0.0
        %vm4423 = vcmp.gt.f32.partialorder %v4349, 0.0
        %vm4424 = vcmp.gt.f32.partialorder %v4173, 0.0
        %vm4425 = vcmp.gt.f32.partialorder %v4351, 0.0
        %vm4426 = vcmp.gt.f32.partialorder %v4176, 0.0
        %vm4427 = vcmp.gt.f32.partialorder %v4354, 0.0
        %vm4428 = vcmp.gt.f32.partialorder %v4178, 0.0
        %vm4429 = vcmp.gt.f32.partialorder %v4356, 0.0
        %vm4430 = vcmp.gt.f32.partialorder %v4181, 0.0
        %vm4431 = vcmp.gt.f32.partialorder %v4359, 0.0
        %vm4432 = vcmp.gt.f32.partialorder %v4183, 0.0
        %vm4433 = vcmp.gt.f32.partialorder %v4361, 0.0
        %vm4434 = vcmp.gt.f32.partialorder %v4186, 0.0
        %vm4435 = vcmp.gt.f32.partialorder %v4364, 0.0
        %vm4436 = vcmp.gt.f32.partialorder %v4188, 0.0
        %vm4437 = vcmp.gt.f32.partialorder %v4366, 0.0
        %vm4438 = vcmp.gt.f32.partialorder %v4191, 0.0
        %vm4439 = vcmp.gt.f32.partialorder %v4369, 0.0
        %vm4440 = vcmp.gt.f32.partialorder %v4193, 0.0
        %vm4441 = vcmp.gt.f32.partialorder %v4371, 0.0
        %vm4442 = vcmp.gt.f32.partialorder %v4196, 0.0
        %vm4443 = vcmp.gt.f32.partialorder %v4374, 0.0
        %vm4444 = vcmp.gt.f32.partialorder %v4198, 0.0
        %vm4445 = vcmp.gt.f32.partialorder %v4376, 0.0
        %vm4446 = vcmp.gt.f32.partialorder %v4201, 0.0
        %vm4447 = vcmp.gt.f32.partialorder %v4379, 0.0
        %vm4448 = vcmp.gt.f32.partialorder %v4203, 0.0
        %vm4449 = vcmp.gt.f32.partialorder %v4381, 0.0
        %vm4450 = vcmp.gt.f32.partialorder %v4206, 0.0
        %vm4451 = vcmp.gt.f32.partialorder %v4384, 0.0
        %vm4452 = vcmp.gt.f32.partialorder %v4208, 0.0
        %vm4453 = vcmp.gt.f32.partialorder %v4386, 0.0
        %vm4454 = vcmp.gt.f32.partialorder %v4211, 0.0
        %vm4455 = vcmp.gt.f32.partialorder %v4389, 0.0
        %vm4456 = vcmp.gt.f32.partialorder %v4213, 0.0
        %vm4457 = vcmp.gt.f32.partialorder %v4391, 0.0
        %vm4458 = vcmp.gt.f32.partialorder %v4216, 0.0
        %vm4459 = vcmp.gt.f32.partialorder %v4394, 0.0
        %vm4460 = vcmp.gt.f32.partialorder %v4218, 0.0
        %vm4461 = vcmp.gt.f32.partialorder %v4396, 0.0
        %v4462 = vmul.f32 %v4141, 0.2
        %v4463 = vmul.f32 %v4319, 0.2
        %v4464 = vmul.f32 %v4143, 0.2
        %v4465 = vmul.f32 %v4321, 0.2
        %v4466 = vmul.f32 %v4146, 0.2
        %v4467 = vmul.f32 %v4324, 0.2
        %v4468 = vmul.f32 %v4148, 0.2
        %v4469 = vmul.f32 %v4326, 0.2
        %v4470 = vmul.f32 %v4151, 0.2
        %v4471 = vmul.f32 %v4329, 0.2
        %v4472 = vmul.f32 %v4153, 0.2
        %v4473 = vmul.f32 %v4331, 0.2
        %v4474 = vmul.f32 %v4156, 0.2
        %v4475 = vmul.f32 %v4334, 0.2
        %v4476 = vmul.f32 %v4158, 0.2
        %v4477 = vmul.f32 %v4336, 0.2
        %v4478 = vmul.f32 %v4161, 0.2
        %v4479 = vmul.f32 %v4339, 0.2
        %v4480 = vmul.f32 %v4163, 0.2
        %v4481 = vmul.f32 %v4341, 0.2
        %v4482 = vmul.f32 %v4166, 0.2
        %v4483 = vmul.f32 %v4344, 0.2
        %v4484 = vmul.f32 %v4168, 0.2
        %v4485 = vmul.f32 %v4346, 0.2
        %v4486 = vmul.f32 %v4171, 0.2
        %v4487 = vmul.f32 %v4349, 0.2
        %v4488 = vmul.f32 %v4173, 0.2
        %v4489 = vmul.f32 %v4351, 0.2
        %v4490 = vmul.f32 %v4176, 0.2
        %v4491 = vmul.f32 %v4354, 0.2
        %v4492 = vmul.f32 %v4178, 0.2
        %v4493 = vmul.f32 %v4356, 0.2
        %v4494 = vmul.f32 %v4181, 0.2
        %v4495 = vmul.f32 %v4359, 0.2
        %v4496 = vmul.f32 %v4183, 0.2
        %v4497 = vmul.f32 %v4361, 0.2
        %v4498 = vmul.f32 %v4186, 0.2
        %v4499 = vmul.f32 %v4364, 0.2
        %v4500 = vmul.f32 %v4188, 0.2
        %v4501 = vmul.f32 %v4366, 0.2
        %v4502 = vmul.f32 %v4191, 0.2
        %v4503 = vmul.f32 %v4369, 0.2
        %v4504 = vmul.f32 %v4193, 0.2
        %v4505 = vmul.f32 %v4371, 0.2
        %v4506 = vmul.f32 %v4196, 0.2
        %v4507 = vmul.f32 %v4374, 0.2
        %v4508 = vmul.f32 %v4198, 0.2
        %v4509 = vmul.f32 %v4376, 0.2
        %v4510 = vmul.f32 %v4201, 0.2
        %v4511 = vmul.f32 %v4379, 0.2
        %v4512 = vmul.f32 %v4203, 0.2
        %v4513 = vmul.f32 %v4381, 0.2
        %v4514 = vmul.f32 %v4206, 0.2
        %v4515 = vmul.f32 %v4384, 0.2
        %v4516 = vmul.f32 %v4208, 0.2
        %v4517 = vmul.f32 %v4386, 0.2
        %v4518 = vmul.f32 %v4211, 0.2
        %v4519 = vmul.f32 %v4389, 0.2
        %v4520 = vmul.f32 %v4213, 0.2
        %v4521 = vmul.f32 %v4391, 0.2
        %v4522 = vmul.f32 %v4216, 0.2
        %v4523 = vmul.f32 %v4394, 0.2
        %v4524 = vmul.f32 %v4218, 0.2
        %v4525 = vmul.f32 %v4396, 0.2
        %v4526 = vsel %vm4398, %v4141, %v4462
        %v4527 = vsel %vm4399, %v4319, %v4463
        %v4528 = vsel %vm4400, %v4143, %v4464
        %v4529 = vsel %vm4401, %v4321, %v4465
        %v4530 = vsel %vm4402, %v4146, %v4466
        %v4531 = vsel %vm4403, %v4324, %v4467
        %v4532 = vsel %vm4404, %v4148, %v4468
        %v4533 = vsel %vm4405, %v4326, %v4469
        %v4534 = vsel %vm4406, %v4151, %v4470
        %v4535 = vsel %vm4407, %v4329, %v4471
        %v4536 = vsel %vm4408, %v4153, %v4472
        %v4537 = vsel %vm4409, %v4331, %v4473
        %v4538 = vsel %vm4410, %v4156, %v4474
        %v4539 = vsel %vm4411, %v4334, %v4475
        %v4540 = vsel %vm4412, %v4158, %v4476
        %v4541 = vsel %vm4413, %v4336, %v4477
        %v4542 = vsel %vm4414, %v4161, %v4478
        %v4543 = vsel %vm4415, %v4339, %v4479
        %v4544 = vsel %vm4416, %v4163, %v4480
        %v4545 = vsel %vm4417, %v4341, %v4481
        %v4546 = vsel %vm4418, %v4166, %v4482
        %v4547 = vsel %vm4419, %v4344, %v4483
        %v4548 = vsel %vm4420, %v4168, %v4484
        %v4549 = vsel %vm4421, %v4346, %v4485
        %v4550 = vsel %vm4422, %v4171, %v4486
        %v4551 = vsel %vm4423, %v4349, %v4487
        %v4552 = vsel %vm4424, %v4173, %v4488
        %v4553 = vsel %vm4425, %v4351, %v4489
        %v4554 = vsel %vm4426, %v4176, %v4490
        %v4555 = vsel %vm4427, %v4354, %v4491
        %v4556 = vsel %vm4428, %v4178, %v4492
        %v4557 = vsel %vm4429, %v4356, %v4493
        %v4558 = vsel %vm4430, %v4181, %v4494
        %v4559 = vsel %vm4431, %v4359, %v4495
        %v4560 = vsel %vm4432, %v4183, %v4496
        %v4561 = vsel %vm4433, %v4361, %v4497
        %v4562 = vsel %vm4434, %v4186, %v4498
        %v4563 = vsel %vm4435, %v4364, %v4499
        %v4564 = vsel %vm4436, %v4188, %v4500
        %v4565 = vsel %vm4437, %v4366, %v4501
        %v4566 = vsel %vm4438, %v4191, %v4502
        %v4567 = vsel %vm4439, %v4369, %v4503
        %v4568 = vsel %vm4440, %v4193, %v4504
        %v4569 = vsel %vm4441, %v4371, %v4505
        %v4570 = vsel %vm4442, %v4196, %v4506
        %v4571 = vsel %vm4443, %v4374, %v4507
        %v4572 = vsel %vm4444, %v4198, %v4508
        %v4573 = vsel %vm4445, %v4376, %v4509
        %v4574 = vsel %vm4446, %v4201, %v4510
        %v4575 = vsel %vm4447, %v4379, %v4511
        %v4576 = vsel %vm4448, %v4203, %v4512
        %v4577 = vsel %vm4449, %v4381, %v4513
        %v4578 = vsel %vm4450, %v4206, %v4514
        %v4579 = vsel %vm4451, %v4384, %v4515
        %v4580 = vsel %vm4452, %v4208, %v4516
        %v4581 = vsel %vm4453, %v4386, %v4517
        %v4582 = vsel %vm4454, %v4211, %v4518
        %v4583 = vsel %vm4455, %v4389, %v4519
        %v4584 = vsel %vm4456, %v4213, %v4520
        %v4585 = vsel %vm4457, %v4391, %v4521
        %v4586 = vsel %vm4458, %v4216, %v4522
        %v4587 = vsel %vm4459, %v4394, %v4523
        %v4588 = vsel %vm4460, %v4218, %v4524
        %v4589 = vsel %vm4461, %v4396, %v4525
        %v4590 = vld [vmem:[%s11] sm:$0xff]
        %v4591 = vld [vmem:[%s11 + $0x8] sm:$0xff]
        %v4592 = vld [vmem:[%s11 + $0x10] sm:$0xff]
        %v4593 = vld [vmem:[%s11 + $0x18] sm:$0xff]
        %v4594 = vld [vmem:[%s11 + $0x20] sm:$0xff]
        %v4595 = vld [vmem:[%s11 + $0x28] sm:$0xff]
        %v4596 = vld [vmem:[%s11 + $0x30] sm:$0xff]
        %v4597 = vld [vmem:[%s11 + $0x38] sm:$0xff]
        %v4598 = vld [vmem:[%s11 + $0x40] sm:$0xff]
        %v4599 = vld [vmem:[%s11 + $0x48] sm:$0xff]
        %v4600 = vld [vmem:[%s11 + $0x50] sm:$0xff]
        %v4601 = vld [vmem:[%s11 + $0x58] sm:$0xff]
        %v4602 = vld [vmem:[%s11 + $0x60] sm:$0xff]
        %v4603 = vld [vmem:[%s11 + $0x68] sm:$0xff]
        %v4604 = vld [vmem:[%s11 + $0x70] sm:$0xff]
        %v4605 = vld [vmem:[%s11 + $0x78] sm:$0xff]
        %v4606 = vpack.c.bf16 %v4528, %v4526
        %v4607 = vpack.c.bf16 %v4529, %v4527
        %v4608 = vpack.c.bf16 %v4532, %v4530
        %v4609 = vpack.c.bf16 %v4533, %v4531
        %v4610 = vpack.c.bf16 %v4536, %v4534
        %v4611 = vpack.c.bf16 %v4537, %v4535
        %v4612 = vpack.c.bf16 %v4540, %v4538
        %v4613 = vpack.c.bf16 %v4541, %v4539
        %v4614 = vpack.c.bf16 %v4544, %v4542
        %v4615 = vpack.c.bf16 %v4545, %v4543
        %v4616 = vpack.c.bf16 %v4548, %v4546
        %v4617 = vpack.c.bf16 %v4549, %v4547
        %v4618 = vpack.c.bf16 %v4552, %v4550
        %v4619 = vpack.c.bf16 %v4553, %v4551
        %v4620 = vpack.c.bf16 %v4556, %v4554
        %v4621 = vpack.c.bf16 %v4557, %v4555
        %v4622 = vpack.c.bf16 %v4560, %v4558
        %v4623 = vpack.c.bf16 %v4561, %v4559
        %v4624 = vpack.c.bf16 %v4564, %v4562
        %v4625 = vpack.c.bf16 %v4565, %v4563
        %v4626 = vpack.c.bf16 %v4568, %v4566
        %v4627 = vpack.c.bf16 %v4569, %v4567
        %v4628 = vpack.c.bf16 %v4572, %v4570
        %v4629 = vpack.c.bf16 %v4573, %v4571
        %v4630 = vpack.c.bf16 %v4576, %v4574
        %v4631 = vpack.c.bf16 %v4577, %v4575
        %v4632 = vpack.c.bf16 %v4580, %v4578
        %v4633 = vpack.c.bf16 %v4581, %v4579
        %v4634 = vpack.c.bf16 %v4584, %v4582
        %v4635 = vpack.c.bf16 %v4585, %v4583
        %v4636 = vpack.c.bf16 %v4588, %v4586
        %v4637 = vpack.c.bf16 %v4589, %v4587
        %v4638 = vld [vmem:[%s12] sm:$0xff]
        %v4639 = vld [vmem:[%s12 + $0x8] sm:$0xff]
        %v4640 = vld [vmem:[%s12 + $0x10] sm:$0xff]
        %v4641 = vld [vmem:[%s12 + $0x18] sm:$0xff]
        %v4642 = vld [vmem:[%s12 + $0x20] sm:$0xff]
        %v4643 = vld [vmem:[%s12 + $0x28] sm:$0xff]
        %v4644 = vld [vmem:[%s12 + $0x30] sm:$0xff]
        %v4645 = vld [vmem:[%s12 + $0x38] sm:$0xff]
        %v4646 = vld [vmem:[%s12 + $0x40] sm:$0xff]
        %v4647 = vld [vmem:[%s12 + $0x48] sm:$0xff]
        %v4648 = vld [vmem:[%s12 + $0x50] sm:$0xff]
        %v4649 = vld [vmem:[%s12 + $0x58] sm:$0xff]
        %v4650 = vld [vmem:[%s12 + $0x60] sm:$0xff]
        %v4651 = vld [vmem:[%s12 + $0x68] sm:$0xff]
        %v4652 = vld [vmem:[%s12 + $0x70] sm:$0xff]
        %v4653 = vld [vmem:[%s12 + $0x78] sm:$0xff]
        %4655 = vset.pattern.permute.xlu0 0
        %4656 = vperm.xlu0 %4655, %v4638
        %v4657 = vpop.permute.xlu0 %4656
        %4660 = vset.pattern.permute.xlu0 0
        %4661 = vperm.xlu0 %4660, %v4639
        %v4662 = vpop.permute.xlu0 %4661
        %4665 = vset.pattern.permute.xlu0 0
        %4666 = vperm.xlu0 %4665, %v4640
        %v4667 = vpop.permute.xlu0 %4666
        %4670 = vset.pattern.permute.xlu0 0
        %4671 = vperm.xlu0 %4670, %v4641
        %v4672 = vpop.permute.xlu0 %4671
        %4675 = vset.pattern.permute.xlu0 0
        %4676 = vperm.xlu0 %4675, %v4642
        %v4677 = vpop.permute.xlu0 %4676
        %4680 = vset.pattern.permute.xlu0 0
        %4681 = vperm.xlu0 %4680, %v4643
        %v4682 = vpop.permute.xlu0 %4681
        %4685 = vset.pattern.permute.xlu0 0
        %4686 = vperm.xlu0 %4685, %v4644
        %v4687 = vpop.permute.xlu0 %4686
        %4690 = vset.pattern.permute.xlu0 0
        %4691 = vperm.xlu0 %4690, %v4645
        %v4692 = vpop.permute.xlu0 %4691
        %4695 = vset.pattern.permute.xlu0 0
        %4696 = vperm.xlu0 %4695, %v4646
        %v4697 = vpop.permute.xlu0 %4696
        %4700 = vset.pattern.permute.xlu0 0
        %4701 = vperm.xlu0 %4700, %v4647
        %v4702 = vpop.permute.xlu0 %4701
        %4705 = vset.pattern.permute.xlu0 0
        %4706 = vperm.xlu0 %4705, %v4648
        %v4707 = vpop.permute.xlu0 %4706
        %4710 = vset.pattern.permute.xlu0 0
        %4711 = vperm.xlu0 %4710, %v4649
        %v4712 = vpop.permute.xlu0 %4711
        %4715 = vset.pattern.permute.xlu0 0
        %4716 = vperm.xlu0 %4715, %v4650
        %v4717 = vpop.permute.xlu0 %4716
        %4720 = vset.pattern.permute.xlu0 0
        %4721 = vperm.xlu0 %4720, %v4651
        %v4722 = vpop.permute.xlu0 %4721
        %4725 = vset.pattern.permute.xlu0 0
        %4726 = vperm.xlu0 %4725, %v4652
        %v4727 = vpop.permute.xlu0 %4726
        %4730 = vset.pattern.permute.xlu0 0
        %4731 = vperm.xlu0 %4730, %v4653
        %v4732 = vpop.permute.xlu0 %4731
        %v4750 = vunpack.c.l.b16 %v4590
        %v4751 = vunpack.c.h.b16 %v4590
        %v4752 = vunpack.c.l.b16 %v4591
        %v4753 = vunpack.c.h.b16 %v4591
        %v4754 = vunpack.c.l.b16 %v4592
        %v4755 = vunpack.c.h.b16 %v4592
        %v4756 = vunpack.c.l.b16 %v4593
        %v4757 = vunpack.c.h.b16 %v4593
        %v4758 = vunpack.c.l.b16 %v4594
        %v4759 = vunpack.c.h.b16 %v4594
        %v4760 = vunpack.c.l.b16 %v4595
        %v4761 = vunpack.c.h.b16 %v4595
        %v4762 = vunpack.c.l.b16 %v4596
        %v4763 = vunpack.c.h.b16 %v4596
        %v4764 = vunpack.c.l.b16 %v4597
        %v4765 = vunpack.c.h.b16 %v4597
        %v4766 = vunpack.c.l.b16 %v4598
        %v4767 = vunpack.c.h.b16 %v4598
        %v4768 = vunpack.c.l.b16 %v4599
        %v4769 = vunpack.c.h.b16 %v4599
        %v4770 = vunpack.c.l.b16 %v4600
        %v4771 = vunpack.c.h.b16 %v4600
        %v4772 = vunpack.c.l.b16 %v4601
        %v4773 = vunpack.c.h.b16 %v4601
        %v4774 = vunpack.c.l.b16 %v4602
        %v4775 = vunpack.c.h.b16 %v4602
        %v4776 = vunpack.c.l.b16 %v4603
        %v4777 = vunpack.c.h.b16 %v4603
        %v4778 = vunpack.c.l.b16 %v4604
        %v4779 = vunpack.c.h.b16 %v4604
        %v4780 = vunpack.c.l.b16 %v4605
        %v4781 = vunpack.c.h.b16 %v4605
        %v4782 = vpack.c.b16 %v4752, %v4750
        %v4783 = vpack.c.b16 %v4753, %v4751
        %v4784 = vpack.c.b16 %v4756, %v4754
        %v4785 = vpack.c.b16 %v4757, %v4755
        %v4786 = vpack.c.b16 %v4760, %v4758
        %v4787 = vpack.c.b16 %v4761, %v4759
        %v4788 = vpack.c.b16 %v4764, %v4762
        %v4789 = vpack.c.b16 %v4765, %v4763
        %v4790 = vpack.c.b16 %v4768, %v4766
        %v4791 = vpack.c.b16 %v4769, %v4767
        %v4792 = vpack.c.b16 %v4772, %v4770
        %v4793 = vpack.c.b16 %v4773, %v4771
        %v4794 = vpack.c.b16 %v4776, %v4774
        %v4795 = vpack.c.b16 %v4777, %v4775
        %v4796 = vpack.c.b16 %v4780, %v4778
        %v4797 = vpack.c.b16 %v4781, %v4779
        %4814 = vmatpush.bf16.msra.mxu0 %v4620
        %4815 = vmatpush.bf16.msra.mxu0 %v4618
        %4816 = vmatpush.bf16.msra.mxu0 %v4616
        %4817 = vmatpush.bf16.msra.mxu0 %v4614
        %4818 = vmatpush.bf16.msra.mxu0 %v4612
        %4819 = vmatpush.bf16.msra.mxu0 %v4610
        %4820 = vmatpush.bf16.msra.mxu0 %v4608
        %4821 = vmatpush.bf16.msra.mxu0 %v4606
        %4822 = vmatmul.bf16.gmra.mxu0 %v4782
        %v4823 = vpop.f32.mrf.mxu0
        %v4824 = vadd.f32 %v4657, %v4823
        %v4825 = vpop.f32.mrf.mxu0
        %v4826 = vadd.f32 %v4662, %v4825
        %4827 = vmatmul.bf16.gmra.mxu0 %v4784
        %v4828 = vpop.f32.mrf.mxu0
        %v4829 = vadd.f32 %v4667, %v4828
        %v4830 = vpop.f32.mrf.mxu0
        %v4831 = vadd.f32 %v4672, %v4830
        %4832 = vmatmul.bf16.gmra.mxu0 %v4786
        %v4833 = vpop.f32.mrf.mxu0
        %v4834 = vadd.f32 %v4677, %v4833
        %v4835 = vpop.f32.mrf.mxu0
        %v4836 = vadd.f32 %v4682, %v4835
        %4837 = vmatmul.bf16.gmra.mxu0 %v4788
        %v4838 = vpop.f32.mrf.mxu0
        %v4839 = vadd.f32 %v4687, %v4838
        %v4840 = vpop.f32.mrf.mxu0
        %v4841 = vadd.f32 %v4692, %v4840
        %4842 = vmatmul.bf16.gmra.mxu0 %v4790
        %v4843 = vpop.f32.mrf.mxu0
        %v4844 = vadd.f32 %v4697, %v4843
        %v4845 = vpop.f32.mrf.mxu0
        %v4846 = vadd.f32 %v4702, %v4845
        %4847 = vmatmul.bf16.gmra.mxu0 %v4792
        %v4848 = vpop.f32.mrf.mxu0
        %v4849 = vadd.f32 %v4707, %v4848
        %v4850 = vpop.f32.mrf.mxu0
        %v4851 = vadd.f32 %v4712, %v4850
        %4852 = vmatmul.bf16.gmra.mxu0 %v4794
        %v4853 = vpop.f32.mrf.mxu0
        %v4854 = vadd.f32 %v4717, %v4853
        %v4855 = vpop.f32.mrf.mxu0
        %v4856 = vadd.f32 %v4722, %v4855
        %4857 = vmatmul.bf16.gmra.mxu0 %v4796
        %v4858 = vpop.f32.mrf.mxu0
        %v4859 = vadd.f32 %v4727, %v4858
        %v4860 = vpop.f32.mrf.mxu0
        %v4861 = vadd.f32 %v4732, %v4860
        %4862 = vdwg.mxu0
        %4863 = vmatpush.bf16.msra.mxu0 %v4636
        %4864 = vmatpush.bf16.msra.mxu0 %v4634
        %4865 = vmatpush.bf16.msra.mxu0 %v4632
        %4866 = vmatpush.bf16.msra.mxu0 %v4630
        %4867 = vmatpush.bf16.msra.mxu0 %v4628
        %4868 = vmatpush.bf16.msra.mxu0 %v4626
        %4869 = vmatpush.bf16.msra.mxu0 %v4624
        %4870 = vmatpush.bf16.msra.mxu0 %v4622
        %4871 = vmatmul.bf16.gmra.mxu0 %v4783
        %v4872 = vpop.f32.mrf.mxu0
        %v4873 = vadd.f32 %v4824, %v4872
        %v4874 = vpop.f32.mrf.mxu0
        %v4875 = vadd.f32 %v4826, %v4874
        %4876 = vmatmul.bf16.gmra.mxu0 %v4785
        %v4877 = vpop.f32.mrf.mxu0
        %v4878 = vadd.f32 %v4829, %v4877
        %v4879 = vpop.f32.mrf.mxu0
        %v4880 = vadd.f32 %v4831, %v4879
        %4881 = vmatmul.bf16.gmra.mxu0 %v4787
        %v4882 = vpop.f32.mrf.mxu0
        %v4883 = vadd.f32 %v4834, %v4882
        %v4884 = vpop.f32.mrf.mxu0
        %v4885 = vadd.f32 %v4836, %v4884
        %4886 = vmatmul.bf16.gmra.mxu0 %v4789
        %v4887 = vpop.f32.mrf.mxu0
        %v4888 = vadd.f32 %v4839, %v4887
        %v4889 = vpop.f32.mrf.mxu0
        %v4890 = vadd.f32 %v4841, %v4889
        %4891 = vmatmul.bf16.gmra.mxu0 %v4791
        %v4892 = vpop.f32.mrf.mxu0
        %v4893 = vadd.f32 %v4844, %v4892
        %v4894 = vpop.f32.mrf.mxu0
        %v4895 = vadd.f32 %v4846, %v4894
        %4896 = vmatmul.bf16.gmra.mxu0 %v4793
        %v4897 = vpop.f32.mrf.mxu0
        %v4898 = vadd.f32 %v4849, %v4897
        %v4899 = vpop.f32.mrf.mxu0
        %v4900 = vadd.f32 %v4851, %v4899
        %4901 = vmatmul.bf16.gmra.mxu0 %v4795
        %v4902 = vpop.f32.mrf.mxu0
        %v4903 = vadd.f32 %v4854, %v4902
        %v4904 = vpop.f32.mrf.mxu0
        %v4905 = vadd.f32 %v4856, %v4904
        %4906 = vmatmul.bf16.gmra.mxu0 %v4797
        %v4907 = vpop.f32.mrf.mxu0
        %v4908 = vadd.f32 %v4859, %v4907
        %v4909 = vpop.f32.mrf.mxu0
        %v4910 = vadd.f32 %v4861, %v4909
        %4911 = vdwg.mxu0
        %4912 = vmatpush.bf16.msra.mxu0 %v4621
        %4913 = vmatpush.bf16.msra.mxu0 %v4619
        %4914 = vmatpush.bf16.msra.mxu0 %v4617
        %4915 = vmatpush.bf16.msra.mxu0 %v4615
        %4916 = vmatpush.bf16.msra.mxu0 %v4613
        %4917 = vmatpush.bf16.msra.mxu0 %v4611
        %4918 = vmatpush.bf16.msra.mxu0 %v4609
        %4919 = vmatpush.bf16.msra.mxu0 %v4607
        %4920 = vmatmul.bf16.gmra.mxu0 %v4782
        %v4921 = vpop.f32.mrf.mxu0
        %v4922 = vadd.f32 %v4657, %v4921
        %v4923 = vpop.f32.mrf.mxu0
        %v4924 = vadd.f32 %v4662, %v4923
        %4925 = vmatmul.bf16.gmra.mxu0 %v4784
        %v4926 = vpop.f32.mrf.mxu0
        %v4927 = vadd.f32 %v4667, %v4926
        %v4928 = vpop.f32.mrf.mxu0
        %v4929 = vadd.f32 %v4672, %v4928
        %4930 = vmatmul.bf16.gmra.mxu0 %v4786
        %v4931 = vpop.f32.mrf.mxu0
        %v4932 = vadd.f32 %v4677, %v4931
        %v4933 = vpop.f32.mrf.mxu0
        %v4934 = vadd.f32 %v4682, %v4933
        %4935 = vmatmul.bf16.gmra.mxu0 %v4788
        %v4936 = vpop.f32.mrf.mxu0
        %v4937 = vadd.f32 %v4687, %v4936
        %v4938 = vpop.f32.mrf.mxu0
        %v4939 = vadd.f32 %v4692, %v4938
        %4940 = vmatmul.bf16.gmra.mxu0 %v4790
        %v4941 = vpop.f32.mrf.mxu0
        %v4942 = vadd.f32 %v4697, %v4941
        %v4943 = vpop.f32.mrf.mxu0
        %v4944 = vadd.f32 %v4702, %v4943
        %4945 = vmatmul.bf16.gmra.mxu0 %v4792
        %v4946 = vpop.f32.mrf.mxu0
        %v4947 = vadd.f32 %v4707, %v4946
        %v4948 = vpop.f32.mrf.mxu0
        %v4949 = vadd.f32 %v4712, %v4948
        %4950 = vmatmul.bf16.gmra.mxu0 %v4794
        %v4951 = vpop.f32.mrf.mxu0
        %v4952 = vadd.f32 %v4717, %v4951
        %v4953 = vpop.f32.mrf.mxu0
        %v4954 = vadd.f32 %v4722, %v4953
        %4955 = vmatmul.bf16.gmra.mxu0 %v4796
        %v4956 = vpop.f32.mrf.mxu0
        %v4957 = vadd.f32 %v4727, %v4956
        %v4958 = vpop.f32.mrf.mxu0
        %v4959 = vadd.f32 %v4732, %v4958
        %4960 = vdwg.mxu0
        %4961 = vmatpush.bf16.msra.mxu0 %v4637
        %4962 = vmatpush.bf16.msra.mxu0 %v4635
        %4963 = vmatpush.bf16.msra.mxu0 %v4633
        %4964 = vmatpush.bf16.msra.mxu0 %v4631
        %4965 = vmatpush.bf16.msra.mxu0 %v4629
        %4966 = vmatpush.bf16.msra.mxu0 %v4627
        %4967 = vmatpush.bf16.msra.mxu0 %v4625
        %4968 = vmatpush.bf16.msra.mxu0 %v4623
        %4969 = vmatmul.bf16.gmra.mxu0 %v4783
        %v4970 = vpop.f32.mrf.mxu0
        %v4971 = vadd.f32 %v4922, %v4970
        %v4972 = vpop.f32.mrf.mxu0
        %v4973 = vadd.f32 %v4924, %v4972
        %4974 = vmatmul.bf16.gmra.mxu0 %v4785
        %v4975 = vpop.f32.mrf.mxu0
        %v4976 = vadd.f32 %v4927, %v4975
        %v4977 = vpop.f32.mrf.mxu0
        %v4978 = vadd.f32 %v4929, %v4977
        %4979 = vmatmul.bf16.gmra.mxu0 %v4787
        %v4980 = vpop.f32.mrf.mxu0
        %v4981 = vadd.f32 %v4932, %v4980
        %v4982 = vpop.f32.mrf.mxu0
        %v4983 = vadd.f32 %v4934, %v4982
        %4984 = vmatmul.bf16.gmra.mxu0 %v4789
        %v4985 = vpop.f32.mrf.mxu0
        %v4986 = vadd.f32 %v4937, %v4985
        %v4987 = vpop.f32.mrf.mxu0
        %v4988 = vadd.f32 %v4939, %v4987
        %4989 = vmatmul.bf16.gmra.mxu0 %v4791
        %v4990 = vpop.f32.mrf.mxu0
        %v4991 = vadd.f32 %v4942, %v4990
        %v4992 = vpop.f32.mrf.mxu0
        %v4993 = vadd.f32 %v4944, %v4992
        %4994 = vmatmul.bf16.gmra.mxu0 %v4793
        %v4995 = vpop.f32.mrf.mxu0
        %v4996 = vadd.f32 %v4947, %v4995
        %v4997 = vpop.f32.mrf.mxu0
        %v4998 = vadd.f32 %v4949, %v4997
        %4999 = vmatmul.bf16.gmra.mxu0 %v4795
        %v5000 = vpop.f32.mrf.mxu0
        %v5001 = vadd.f32 %v4952, %v5000
        %v5002 = vpop.f32.mrf.mxu0
        %v5003 = vadd.f32 %v4954, %v5002
        %5004 = vmatmul.bf16.gmra.mxu0 %v4797
        %v5005 = vpop.f32.mrf.mxu0
        %v5006 = vadd.f32 %v4957, %v5005
        %v5007 = vpop.f32.mrf.mxu0
        %v5008 = vadd.f32 %v4959, %v5007
        %5009 = vdwg.mxu0
        %vm5010 = vcmp.gt.f32.partialorder %v4873, 0.0
        %vm5011 = vcmp.gt.f32.partialorder %v4971, 0.0
        %vm5012 = vcmp.gt.f32.partialorder %v4875, 0.0
        %vm5013 = vcmp.gt.f32.partialorder %v4973, 0.0
        %vm5014 = vcmp.gt.f32.partialorder %v4878, 0.0
        %vm5015 = vcmp.gt.f32.partialorder %v4976, 0.0
        %vm5016 = vcmp.gt.f32.partialorder %v4880, 0.0
        %vm5017 = vcmp.gt.f32.partialorder %v4978, 0.0
        %vm5018 = vcmp.gt.f32.partialorder %v4883, 0.0
        %vm5019 = vcmp.gt.f32.partialorder %v4981, 0.0
        %vm5020 = vcmp.gt.f32.partialorder %v4885, 0.0
        %vm5021 = vcmp.gt.f32.partialorder %v4983, 0.0
        %vm5022 = vcmp.gt.f32.partialorder %v4888, 0.0
        %vm5023 = vcmp.gt.f32.partialorder %v4986, 0.0
        %vm5024 = vcmp.gt.f32.partialorder %v4890, 0.0
        %vm5025 = vcmp.gt.f32.partialorder %v4988, 0.0
        %vm5026 = vcmp.gt.f32.partialorder %v4893, 0.0
        %vm5027 = vcmp.gt.f32.partialorder %v4991, 0.0
        %vm5028 = vcmp.gt.f32.partialorder %v4895, 0.0
        %vm5029 = vcmp.gt.f32.partialorder %v4993, 0.0
        %vm5030 = vcmp.gt.f32.partialorder %v4898, 0.0
        %vm5031 = vcmp.gt.f32.partialorder %v4996, 0.0
        %vm5032 = vcmp.gt.f32.partialorder %v4900, 0.0
        %vm5033 = vcmp.gt.f32.partialorder %v4998, 0.0
        %vm5034 = vcmp.gt.f32.partialorder %v4903, 0.0
        %vm5035 = vcmp.gt.f32.partialorder %v5001, 0.0
        %vm5036 = vcmp.gt.f32.partialorder %v4905, 0.0
        %vm5037 = vcmp.gt.f32.partialorder %v5003, 0.0
        %vm5038 = vcmp.gt.f32.partialorder %v4908, 0.0
        %vm5039 = vcmp.gt.f32.partialorder %v5006, 0.0
        %vm5040 = vcmp.gt.f32.partialorder %v4910, 0.0
        %vm5041 = vcmp.gt.f32.partialorder %v5008, 0.0
        %v5042 = vmul.f32 %v4873, 0.2
        %v5043 = vmul.f32 %v4971, 0.2
        %v5044 = vmul.f32 %v4875, 0.2
        %v5045 = vmul.f32 %v4973, 0.2
        %v5046 = vmul.f32 %v4878, 0.2
        %v5047 = vmul.f32 %v4976, 0.2
        %v5048 = vmul.f32 %v4880, 0.2
        %v5049 = vmul.f32 %v4978, 0.2
        %v5050 = vmul.f32 %v4883, 0.2
        %v5051 = vmul.f32 %v4981, 0.2
        %v5052 = vmul.f32 %v4885, 0.2
        %v5053 = vmul.f32 %v4983, 0.2
        %v5054 = vmul.f32 %v4888, 0.2
        %v5055 = vmul.f32 %v4986, 0.2
        %v5056 = vmul.f32 %v4890, 0.2
        %v5057 = vmul.f32 %v4988, 0.2
        %v5058 = vmul.f32 %v4893, 0.2
        %v5059 = vmul.f32 %v4991, 0.2
        %v5060 = vmul.f32 %v4895, 0.2
        %v5061 = vmul.f32 %v4993, 0.2
        %v5062 = vmul.f32 %v4898, 0.2
        %v5063 = vmul.f32 %v4996, 0.2
        %v5064 = vmul.f32 %v4900, 0.2
        %v5065 = vmul.f32 %v4998, 0.2
        %v5066 = vmul.f32 %v4903, 0.2
        %v5067 = vmul.f32 %v5001, 0.2
        %v5068 = vmul.f32 %v4905, 0.2
        %v5069 = vmul.f32 %v5003, 0.2
        %v5070 = vmul.f32 %v4908, 0.2
        %v5071 = vmul.f32 %v5006, 0.2
        %v5072 = vmul.f32 %v4910, 0.2
        %v5073 = vmul.f32 %v5008, 0.2
        %v5074 = vsel %vm5010, %v4873, %v5042
        %v5075 = vsel %vm5011, %v4971, %v5043
        %v5076 = vsel %vm5012, %v4875, %v5044
        %v5077 = vsel %vm5013, %v4973, %v5045
        %v5078 = vsel %vm5014, %v4878, %v5046
        %v5079 = vsel %vm5015, %v4976, %v5047
        %v5080 = vsel %vm5016, %v4880, %v5048
        %v5081 = vsel %vm5017, %v4978, %v5049
        %v5082 = vsel %vm5018, %v4883, %v5050
        %v5083 = vsel %vm5019, %v4981, %v5051
        %v5084 = vsel %vm5020, %v4885, %v5052
        %v5085 = vsel %vm5021, %v4983, %v5053
        %v5086 = vsel %vm5022, %v4888, %v5054
        %v5087 = vsel %vm5023, %v4986, %v5055
        %v5088 = vsel %vm5024, %v4890, %v5056
        %v5089 = vsel %vm5025, %v4988, %v5057
        %v5090 = vsel %vm5026, %v4893, %v5058
        %v5091 = vsel %vm5027, %v4991, %v5059
        %v5092 = vsel %vm5028, %v4895, %v5060
        %v5093 = vsel %vm5029, %v4993, %v5061
        %v5094 = vsel %vm5030, %v4898, %v5062
        %v5095 = vsel %vm5031, %v4996, %v5063
        %v5096 = vsel %vm5032, %v4900, %v5064
        %v5097 = vsel %vm5033, %v4998, %v5065
        %v5098 = vsel %vm5034, %v4903, %v5066
        %v5099 = vsel %vm5035, %v5001, %v5067
        %v5100 = vsel %vm5036, %v4905, %v5068
        %v5101 = vsel %vm5037, %v5003, %v5069
        %v5102 = vsel %vm5038, %v4908, %v5070
        %v5103 = vsel %vm5039, %v5006, %v5071
        %v5104 = vsel %vm5040, %v4910, %v5072
        %v5105 = vsel %vm5041, %v5008, %v5073
        %v5106 = vld [vmem:[%s13] sm:$0xff]
        %v5107 = vld [vmem:[%s13 + $0x8] sm:$0xff]
        %v5108 = vld [vmem:[%s13 + $0x10] sm:$0xff]
        %v5109 = vld [vmem:[%s13 + $0x18] sm:$0xff]
        %v5110 = vld [vmem:[%s13 + $0x20] sm:$0xff]
        %v5111 = vld [vmem:[%s13 + $0x28] sm:$0xff]
        %v5112 = vld [vmem:[%s13 + $0x30] sm:$0xff]
        %v5113 = vld [vmem:[%s13 + $0x38] sm:$0xff]
        %v5114 = vld [vmem:[%s13 + $0x40] sm:$0xff]
        %v5115 = vld [vmem:[%s13 + $0x48] sm:$0xff]
        %v5116 = vld [vmem:[%s13 + $0x50] sm:$0xff]
        %v5117 = vld [vmem:[%s13 + $0x58] sm:$0xff]
        %v5118 = vld [vmem:[%s13 + $0x60] sm:$0xff]
        %v5119 = vld [vmem:[%s13 + $0x68] sm:$0xff]
        %v5120 = vld [vmem:[%s13 + $0x70] sm:$0xff]
        %v5121 = vld [vmem:[%s13 + $0x78] sm:$0xff]
        %5123 = vset.pattern.permute.xlu0 0
        %5124 = vperm.xlu0 %5123, %v5106
        %v5125 = vpop.permute.xlu0 %5124
        %5128 = vset.pattern.permute.xlu0 0
        %5129 = vperm.xlu0 %5128, %v5107
        %v5130 = vpop.permute.xlu0 %5129
        %5133 = vset.pattern.permute.xlu0 0
        %5134 = vperm.xlu0 %5133, %v5108
        %v5135 = vpop.permute.xlu0 %5134
        %5138 = vset.pattern.permute.xlu0 0
        %5139 = vperm.xlu0 %5138, %v5109
        %v5140 = vpop.permute.xlu0 %5139
        %5143 = vset.pattern.permute.xlu0 0
        %5144 = vperm.xlu0 %5143, %v5110
        %v5145 = vpop.permute.xlu0 %5144
        %5148 = vset.pattern.permute.xlu0 0
        %5149 = vperm.xlu0 %5148, %v5111
        %v5150 = vpop.permute.xlu0 %5149
        %5153 = vset.pattern.permute.xlu0 0
        %5154 = vperm.xlu0 %5153, %v5112
        %v5155 = vpop.permute.xlu0 %5154
        %5158 = vset.pattern.permute.xlu0 0
        %5159 = vperm.xlu0 %5158, %v5113
        %v5160 = vpop.permute.xlu0 %5159
        %5163 = vset.pattern.permute.xlu0 0
        %5164 = vperm.xlu0 %5163, %v5114
        %v5165 = vpop.permute.xlu0 %5164
        %5168 = vset.pattern.permute.xlu0 0
        %5169 = vperm.xlu0 %5168, %v5115
        %v5170 = vpop.permute.xlu0 %5169
        %5173 = vset.pattern.permute.xlu0 0
        %5174 = vperm.xlu0 %5173, %v5116
        %v5175 = vpop.permute.xlu0 %5174
        %5178 = vset.pattern.permute.xlu0 0
        %5179 = vperm.xlu0 %5178, %v5117
        %v5180 = vpop.permute.xlu0 %5179
        %5183 = vset.pattern.permute.xlu0 0
        %5184 = vperm.xlu0 %5183, %v5118
        %v5185 = vpop.permute.xlu0 %5184
        %5188 = vset.pattern.permute.xlu0 0
        %5189 = vperm.xlu0 %5188, %v5119
        %v5190 = vpop.permute.xlu0 %5189
        %5193 = vset.pattern.permute.xlu0 0
        %5194 = vperm.xlu0 %5193, %v5120
        %v5195 = vpop.permute.xlu0 %5194
        %5198 = vset.pattern.permute.xlu0 0
        %5199 = vperm.xlu0 %5198, %v5121
        %v5200 = vpop.permute.xlu0 %5199
        %v5202 = vmul.f32 %v5074, %v5125
        %v5203 = vmul.f32 %v5075, %v5125
        %v5204 = vmul.f32 %v5076, %v5130
        %v5205 = vmul.f32 %v5077, %v5130
        %v5206 = vmul.f32 %v5078, %v5135
        %v5207 = vmul.f32 %v5079, %v5135
        %v5208 = vmul.f32 %v5080, %v5140
        %v5209 = vmul.f32 %v5081, %v5140
        %v5210 = vmul.f32 %v5082, %v5145
        %v5211 = vmul.f32 %v5083, %v5145
        %v5212 = vmul.f32 %v5084, %v5150
        %v5213 = vmul.f32 %v5085, %v5150
        %v5214 = vmul.f32 %v5086, %v5155
        %v5215 = vmul.f32 %v5087, %v5155
        %v5216 = vmul.f32 %v5088, %v5160
        %v5217 = vmul.f32 %v5089, %v5160
        %v5218 = vmul.f32 %v5090, %v5165
        %v5219 = vmul.f32 %v5091, %v5165
        %v5220 = vmul.f32 %v5092, %v5170
        %v5221 = vmul.f32 %v5093, %v5170
        %v5222 = vmul.f32 %v5094, %v5175
        %v5223 = vmul.f32 %v5095, %v5175
        %v5224 = vmul.f32 %v5096, %v5180
        %v5225 = vmul.f32 %v5097, %v5180
        %v5226 = vmul.f32 %v5098, %v5185
        %v5227 = vmul.f32 %v5099, %v5185
        %v5228 = vmul.f32 %v5100, %v5190
        %v5229 = vmul.f32 %v5101, %v5190
        %v5230 = vmul.f32 %v5102, %v5195
        %v5231 = vmul.f32 %v5103, %v5195
        %v5232 = vmul.f32 %v5104, %v5200
        %v5233 = vmul.f32 %v5105, %v5200
        %v5234 = vadd.f32 %v5202, %v5204
        %v5235 = vadd.f32 %v5234, %v5206
        %v5236 = vadd.f32 %v5235, %v5208
        %v5237 = vadd.f32 %v5236, %v5210
        %v5238 = vadd.f32 %v5237, %v5212
        %v5239 = vadd.f32 %v5238, %v5214
        %v5240 = vadd.f32 %v5239, %v5216
        %v5241 = vadd.f32 %v5240, %v5218
        %v5242 = vadd.f32 %v5241, %v5220
        %v5243 = vadd.f32 %v5242, %v5222
        %v5244 = vadd.f32 %v5243, %v5224
        %v5245 = vadd.f32 %v5244, %v5226
        %v5246 = vadd.f32 %v5245, %v5228
        %v5247 = vadd.f32 %v5246, %v5230
        %v5248 = vadd.f32 %v5247, %v5232
        %v5249 = vrot.slane %v5248, 4
        %v5250 = vadd.f32 %v5248, %v5249
        %v5251 = vrot.slane %v5250, 2
        %v5252 = vadd.f32 %v5250, %v5251
        %v5253 = vrot.slane %v5252, 1
        %v5254 = vadd.f32 %v5252, %v5253
        %v5255 = vadd.f32 %v5203, %v5205
        %v5256 = vadd.f32 %v5255, %v5207
        %v5257 = vadd.f32 %v5256, %v5209
        %v5258 = vadd.f32 %v5257, %v5211
        %v5259 = vadd.f32 %v5258, %v5213
        %v5260 = vadd.f32 %v5259, %v5215
        %v5261 = vadd.f32 %v5260, %v5217
        %v5262 = vadd.f32 %v5261, %v5219
        %v5263 = vadd.f32 %v5262, %v5221
        %v5264 = vadd.f32 %v5263, %v5223
        %v5265 = vadd.f32 %v5264, %v5225
        %v5266 = vadd.f32 %v5265, %v5227
        %v5267 = vadd.f32 %v5266, %v5229
        %v5268 = vadd.f32 %v5267, %v5231
        %v5269 = vadd.f32 %v5268, %v5233
        %v5270 = vrot.slane %v5269, 4
        %v5271 = vadd.f32 %v5269, %v5270
        %v5272 = vrot.slane %v5271, 2
        %v5273 = vadd.f32 %v5271, %v5272
        %v5274 = vrot.slane %v5273, 1
        %v5275 = vadd.f32 %v5273, %v5274
        %v5276 = vld [vmem:[#allocation2] sm:$0x1]
        %5278 = vset.pattern.permute.xlu0 0
        %5279 = vperm.xlu0 %5278, %v5276
        %v5280 = vpop.permute.xlu0 %5279
        %v5282 = vperm.slane %v5280, 0
        %v5283 = vadd.f32 %v5254, %v5282
        %v5284 = vadd.f32 %v5275, %v5282
        %v5285 = vxor.u32 %v5283, 2147483648
        %v5286 = vxor.u32 %v5284, 2147483648
        %v5287 = vmul.f32 %v5285, 1.442695
        %v5288 = vpow.pop %v5287
        %v5289 = vmul.f32 %v5286, 1.442695
        %v5290 = vpow.pop %v5289
        %v5291 = vadd.f32 %v5288, 1.0
        %v5292 = vadd.f32 %v5290, 1.0
        %v5293 = vrcp.pop %v5291
        %v5294 = vmul.f32 %v5291, %v5293
        %v5295 = vsub.f32 1.0, %v5294
        %v5296 = vmul.f32 %v5293, %v5295
        %v5297 = vadd.f32 %v5293, %v5296
        %vm5298 = vweird.f32 %v5291
        %vm5299 = vweird.f32 %v5293
        %vm5300 = vmor %vm5298, %vm5299
        %v5301 = vsel %vm5300, %v5293, %v5297
        %v5302 = vand.u32 2147483647, %v5291
        %vm5303 = vcmp.eq.f32.partialorder %v5302, 8.507059e+37
        %v5304 = vand.u32 %v5291, 2147483648
        %v5305 = vor.u32 1.1754944e-38, %v5304
        %v5306 = vsel %vm5303, %v5305, %v5301
        %v5307 = vmul.f32 1.0, %v5306
        %v5308 = vrcp.pop %v5292
        %v5309 = vmul.f32 %v5292, %v5308
        %v5310 = vsub.f32 1.0, %v5309
        %v5311 = vmul.f32 %v5308, %v5310
        %v5312 = vadd.f32 %v5308, %v5311
        %vm5313 = vweird.f32 %v5292
        %vm5314 = vweird.f32 %v5308
        %vm5315 = vmor %vm5313, %vm5314
        %v5316 = vsel %vm5315, %v5308, %v5312
        %v5317 = vand.u32 2147483647, %v5292
        %vm5318 = vcmp.eq.f32.partialorder %v5317, 8.507059e+37
        %v5319 = vand.u32 %v5292, 2147483648
        %v5320 = vor.u32 1.1754944e-38, %v5319
        %v5321 = vsel %vm5318, %v5320, %v5316
        %v5322 = vmul.f32 1.0, %v5321
        %v5323 = vmul.f32 %v5307, -8.0
        %v5324 = vmul.f32 %v5322, -8.0
        %v5327 = vrot.slane %v5324, 7
        %vm5328 = vcmask 1040384
        %v5329 = vsel %vm5328, %v5323, %v5327
        %v5331 = vlaneseq
        %vm5332 = vcmp.ge.s32.totalorder %v5331, 0
        %vm5333 = vcmp.lt.s32.totalorder %v5331, 256
        %vm5334 = vmand %vm5332, %vm5333
        %5335 = vst.msk [vmem:[%s490] sm:$0x3] %vm5334, %v5329
        %s5336 = sand.u32 %s359, 1
        %s5337 = scalar_lea.sflag [#allocation4], %s5336
        %s5338 = sand.u32 %s359, 1
        %s5339 = smul.addr %s5338, 2
        %s5340 = scalar_lea.vmem [#allocation3], %s5339
        // Predicated region
        $region81: #{tpu_custom_call.1} parent=79 // pred_check
          %p5341 = pneg %p369
        $region82: #{tpu_custom_call.1} parent=79 // pred_check_branch
          %5343 = sbr.rel (%p5341) target = $region84
        $region83: #{tpu_custom_call.1} parent=79 // pred_region
          %s5344 = smul.u32 2, %s31
          %5346 = vsyncadd %s5337, 0
          %s5347 = scalar_lea.hbm %s15, %s5344
          %s5349 = sshll.u32 %s5340, 4
          %s5350 = int_to_ptr.vmem [resolvable:$true] %s5349
          %s5351 = sshll.u32 %s5347, 4
          %s5352 = int_to_ptr.hbm [resolvable:$true] %s5351
          %5354 = dma.vmem_to_hbm [thread:$0]  %s5350, 32, %s5352, %s5337
        $region84: #{tpu_custom_call.1} parent=79 // pred_fallthru
          _
      $region80: #{tpu_custom_call.1} parent=5 // pred_fallthru
        _
      %p5355 = scmp.le.s32.totalorder 2, %s26
      // Predicated region
      $region85: #{tpu_custom_call.1} parent=5 // pred_check
        %p5356 = pneg %p5355
      $region86: #{tpu_custom_call.1} parent=5 // pred_check_branch
        %5358 = sbr.rel (%p5356) target = $region88
      $region87: #{tpu_custom_call.1} parent=5 // pred_region
        %s5359 = ssub.s32 %s26, 2
        // Predicated region
        $region89: #{tpu_custom_call.1} parent=87 // pred_check
          %p5360 = pneg %p375
        $region90: #{tpu_custom_call.1} parent=87 // pred_check_branch
          %5362 = sbr.rel (%p5360) target = $region92
        $region91: #{tpu_custom_call.1} parent=87 // pred_region
          %s5363 = sand.u32 %s360, 1
          %s5364 = scalar_lea.sflag [#allocation4], %s5363
          %s5365 = sand.u32 %s360, 1
          %s5366 = smul.addr %s5365, 2
          %s5367 = scalar_lea.vmem [#allocation3], %s5366
          %5369 = dma.done %s5364, 32
        $region92: #{tpu_custom_call.1} parent=87 // pred_fallthru
          _
      $region88: #{tpu_custom_call.1} parent=5 // pred_fallthru
        _
    $region6: #{tpu_custom_call.1} parent=1 // loop_footer
      %s30 = sadd.s32 1, %s26
    $region7: #{tpu_custom_call.1} parent=1 // loop_footer_branch
      %25 = sbr.rel target = $region3
    $region8: #{tpu_custom_call.1} parent=1 // loop_exit
      _
    %5370 = vsyncpa [#allocation4], 1
    %s5371 = scalar_lea.sflag [#allocation4], 1
    %5372 = vsyncpa %s5371, 1

</llo_original>
